<compile_context>
chip_gen: v7x
topology: tpu7x:2x2x1
jax: 0.10.0
libtpu: 0.0.40
codegen_flags: <defaults>
</compile_context>

<pallas_src>
import jax
import jax.numpy as jnp
from jax import lax
from jax.experimental import pallas as pl
from jax.experimental.pallas import tpu as pltpu

HIDDEN = 128
OUT_CH = 8
BN_EPS = 1e-5
_INV_SQRT2 = 0.7071067811865476
# Pixel-tile cap: (128 x 2048) f32 intermediates are a few MiB -> comfortable on
# v7x (64 MiB VMEM) as well as v5e/v6e (128 MiB).
_TM_CAP = 2048


def _gelu_exact(x):
    # PyTorch nn.GELU() default: exact erf formulation.
    return 0.5 * x * (1.0 + lax.erf(x * _INV_SQRT2))


def _conv1_rank1(x, w1, b1):
    """1x1 conv with tiny contraction depth on the VPU (rank-1 FMA updates).

    x: (C_in, TM) f32, w1: (C_out, C_in) f32, b1: (C_out, 1) f32 -> (C_out, TM) f32."""
    c_out = w1.shape[0]
    tm = x.shape[1]
    h = jnp.broadcast_to(b1, (c_out, tm))
    for k in range(x.shape[0]):  # C_in is small and static -> unrolled FMAs
        h = h + w1[:, k:k + 1] * x[k:k + 1, :]
    return h


def _bn_apply(h, bn):
    # bn: (C, 2); column 0 = scale (= gamma * rsqrt(var+eps)), column 1 = shift.
    return h * bn[:, 0:1] + bn[:, 1:2]


def _mxu_matmul(w_bf16, a_f32, b_f32):
    # bf16 operands on the MXU, f32 accumulation, f32 bias add.
    return jnp.dot(w_bf16, a_f32.astype(jnp.bfloat16),
                   preferred_element_type=jnp.float32) + b_f32


def _tile_stats(h):
    # Per-tile, per-channel [sum, sum of squares] over the pixel (lane) axis -> (C, 2).
    s = jnp.sum(h, axis=1, keepdims=True)
    q = jnp.sum(h * h, axis=1, keepdims=True)
    return jnp.concatenate([s, q], axis=1)


# ---------------- Pallas kernels (one per pass) ----------------

def _stats1_kernel(x_ref, w1_ref, b1_ref, stats_ref):
    h1 = _conv1_rank1(x_ref[0], w1_ref[...], b1_ref[...])
    st = _tile_stats(h1)
    stats_ref[...] = st.reshape((1, 1) + st.shape)


def _stats2_kernel(x_ref, w1_ref, b1_ref, bn1_ref, w2_ref, b2_ref, stats_ref):
    h1 = _conv1_rank1(x_ref[0], w1_ref[...], b1_ref[...])
    a1 = _gelu_exact(_bn_apply(h1, bn1_ref[...]))
    h2 = _mxu_matmul(w2_ref[...], a1, b2_ref[...])
    st = _tile_stats(h2)
    stats_ref[...] = st.reshape((1, 1) + st.shape)


def _final_kernel(x_ref, w1_ref, b1_ref, bn1_ref, w2_ref, b2_ref, bn2_ref,
                  w3_ref, b3_ref, o_ref):
    h1 = _conv1_rank1(x_ref[0], w1_ref[...], b1_ref[...])
    a1 = _gelu_exact(_bn_apply(h1, bn1_ref[...]))
    h2 = _mxu_matmul(w2_ref[...], a1, b2_ref[...])
    a2 = _gelu_exact(_bn_apply(h2, bn2_ref[...]))
    h3 = _mxu_matmul(w3_ref[...], a2, b3_ref[...])
    o_ref[0] = jnp.maximum(h3, 0.0)


# ---------------- Host-side helpers ----------------

def _pick_tile(hw, cap=_TM_CAP):
    """Largest multiple of 128 that divides HW (capped); fallback to full rows."""
    if hw % 128 != 0:
        return hw
    best = 128
    k = 256
    while k <= min(hw, cap):
        if hw % k == 0:
            best = k
        k += 128
    return best


def _finalize_bn(partial, inv_m, gamma, beta):
    # partial: (N, T, C, 2) per-tile [sum, sum^2] -> per-channel scale/shift (f32).
    sums = jnp.sum(partial, axis=(0, 1))                          # (C, 2)
    mean = sums[:, 0] * inv_m
    var = jnp.maximum(sums[:, 1] * inv_m - mean * mean, 0.0)      # biased variance
    scale = gamma * lax.rsqrt(var + BN_EPS)
    shift = beta - mean * scale
    return jnp.stack([scale, shift], axis=1)                      # (C, 2)


def init_params(key, c_in):
    """PyTorch-style init: Conv2d(k=1) weight (out, in), bias (out, 1); BN gamma=1, beta=0."""
    k1, k2, k3, kb1, kb2, kb3 = jax.random.split(key, 6)

    def conv_init(kw, kb, fan_in, fan_out):
        bound = 1.0 / float(fan_in) ** 0.5
        wgt = jax.random.uniform(kw, (fan_out, fan_in), jnp.float32, -bound, bound)
        b = jax.random.uniform(kb, (fan_out, 1), jnp.float32, -bound, bound)
        return wgt, b

    w1, b1 = conv_init(k1, kb1, c_in, HIDDEN)
    w2, b2 = conv_init(k2, kb2, HIDDEN, HIDDEN)
    w3, b3 = conv_init(k3, kb3, HIDDEN, OUT_CH)
    g1 = jnp.ones((HIDDEN,), jnp.float32)
    be1 = jnp.zeros((HIDDEN,), jnp.float32)
    g2 = jnp.ones((HIDDEN,), jnp.float32)
    be2 = jnp.zeros((HIDDEN,), jnp.float32)
    return (w1, b1, g1, be1, w2, b2, g2, be2, w3, b3)


@jax.jit
def arnet_forward(x_nchw, params):
    (w1, b1, g1, be1, w2, b2, g2, be2, w3, b3) = params
    n, c, h, w = x_nchw.shape
    hw = h * w
    m = n * hw
    tm = _pick_tile(hw)
    t = hw // tm

    # NCHW already has pixels contiguous per (n, channel): reshape only, no transpose.
    x3 = x_nchw.reshape(n, c, hw).astype(jnp.float32)
    w2b = w2.astype(jnp.bfloat16)
    w3b = w3.astype(jnp.bfloat16)

    grid = (n, t)
    cp = pltpu.CompilerParams(
        dimension_semantics=("parallel", "parallel"),  # both TCs on v7x
        vmem_limit_bytes=32 << 20,                     # modest; well under v7x's 64 MiB
    )

    x_spec = pl.BlockSpec((1, c, tm), lambda i, j: (i, 0, j))

    def resident(arr):
        # Small weights / BN params: whole-array block, constant index map -> stays
        # resident in VMEM (no per-step re-DMA).
        return pl.BlockSpec(arr.shape, lambda i, j: (0,) * arr.ndim)

    stats_spec = pl.BlockSpec((1, 1, HIDDEN, 2), lambda i, j: (i, j, 0, 0))
    stats_shape = jax.ShapeDtypeStruct((n, t, HIDDEN, 2), jnp.float32)
    inv_m = 1.0 / float(m)

    # Pass 1: BN1 batch statistics (conv1 only, VPU).
    part1 = pl.pallas_call(
        _stats1_kernel,
        out_shape=stats_shape,
        grid=grid,
        in_specs=[x_spec, resident(w1), resident(b1)],
        out_specs=stats_spec,
        compiler_params=cp,
    )(x3, w1, b1)
    bn1 = _finalize_bn(part1, inv_m, g1, be1)

    # Pass 2: BN2 batch statistics (recompute conv1/BN1/GELU, conv2 on MXU).
    part2 = pl.pallas_call(
        _stats2_kernel,
        out_shape=stats_shape,
        grid=grid,
        in_specs=[x_spec, resident(w1), resident(b1), resident(bn1),
                  resident(w2b), resident(b2)],
        out_specs=stats_spec,
        compiler_params=cp,
    )(x3, w1, b1, bn1, w2b, b2)
    bn2 = _finalize_bn(part2, inv_m, g2, be2)

    # Pass 3: full forward; lane-dense (1, 8, TM) output blocks.
    out3 = pl.pallas_call(
        _final_kernel,
        out_shape=jax.ShapeDtypeStruct((n, OUT_CH, hw), jnp.float32),
        grid=grid,
        in_specs=[x_spec, resident(w1), resident(b1), resident(bn1),
                  resident(w2b), resident(b2), resident(bn2),
                  resident(w3b), resident(b3)],
        out_specs=pl.BlockSpec((1, OUT_CH, tm), lambda i, j: (i, 0, j)),
        compiler_params=cp,
    )(x3, w1, b1, bn1, w2b, b2, bn2, w3b, b3)

    return out3.reshape(n, OUT_CH, h, w)


def arnet_reference(x_nchw, params):
    """Pure-JAX f32 reference (training-mode BN, exact-erf GELU) for a sanity check."""
    (w1, b1, g1, be1, w2, b2, g2, be2, w3, b3) = params
    n, c, h, w = x_nchw.shape
    x = x_nchw.reshape(n, c, h * w).astype(jnp.float32)

    def conv(inp, wgt, b):
        return jnp.einsum("oi,nim->nom", wgt, inp) + b[None, :, :]

    def bn(hh, g, be):
        mu = jnp.mean(hh, axis=(0, 2), keepdims=True)
        var = jnp.mean((hh - mu) ** 2, axis=(0, 2), keepdims=True)
        return (hh - mu) * lax.rsqrt(var + BN_EPS) * g[None, :, None] + be[None, :, None]

    a1 = _gelu_exact(bn(conv(x, w1, b1), g1, be1))
    a2 = _gelu_exact(bn(conv(a1, w2, b2), g2, be2))
    out = jnp.maximum(conv(a2, w3, b3), 0.0)
    return out.reshape(n, OUT_CH, h, w)


if __name__ == "__main__":
    key = jax.random.PRNGKey(0)
    kx, kp = jax.random.split(key)

    N, C, H, W = 2, 4, 16, 16
    x = jax.random.normal(kx, (N, C, H, W), jnp.float32)
    params = init_params(kp, C)

    out = arnet_forward(x, params)
    out = jax.block_until_ready(out)
    assert out.shape == (N, OUT_CH, H, W), out.shape
    assert out.dtype == jnp.float32
    assert bool(jnp.isfinite(out).all())

    # Loose check vs the f32 reference (bf16 MXU operands cause a small, bounded drift).
    ref = arnet_reference(x, params)
    max_err = float(jnp.max(jnp.abs(out - ref)))
    assert max_err < 0.25, max_err

    print("KERNEL_OK")
</pallas_src>

<mosaic_0001>
module attributes {stable_mosaic.version = 11 : i64} {
  func.func @_stats1_kernel(%arg0: i32, %arg1: i32, %arg2: memref<1x4x256xf32, #tpu.memory_space<vmem>>, %arg3: memref<128x4xf32, #tpu.memory_space<vmem>>, %arg4: memref<128x1xf32, #tpu.memory_space<vmem>>, %arg5: memref<1x1x128x2xf32, #tpu.memory_space<vmem>>) attributes {dimension_semantics = [#tpu.dimension_semantics<parallel>, #tpu.dimension_semantics<parallel>], iteration_bounds = array<i64: 2, 1>, scalar_prefetch = 0 : i64, scratch_operands = 0 : i64, tpu.core_type = #tpu.core_type<tc>, window_params = [{transform_indices = @transform_0, window_bounds = array<i64: 1, 4, 256>}, {pipeline_mode = #tpu.pipeline_mode<synchronous>, transform_indices = @transform_1, window_bounds = array<i64: 128, 4>}, {pipeline_mode = #tpu.pipeline_mode<synchronous>, transform_indices = @transform_2, window_bounds = array<i64: 128, 1>}, {transform_indices = @transform_3, window_bounds = array<i64: 1, 1, 128, 2>}]} {
    %c0 = arith.constant 0 : index
    %c0_0 = arith.constant 0 : index
    %c0_1 = arith.constant 0 : index
    %0 = vector.load %arg2[%c0, %c0_0, %c0_1] : memref<1x4x256xf32, #tpu.memory_space<vmem>>, vector<1x4x256xf32>
    %1 = vector.shape_cast %0 : vector<1x4x256xf32> to vector<4x256xf32>
    %c0_2 = arith.constant 0 : index
    %c0_3 = arith.constant 0 : index
    %2 = vector.load %arg3[%c0_2, %c0_3] : memref<128x4xf32, #tpu.memory_space<vmem>>, vector<128x4xf32>
    %c0_4 = arith.constant 0 : index
    %c0_5 = arith.constant 0 : index
    %3 = vector.load %arg4[%c0_4, %c0_5] : memref<128x1xf32, #tpu.memory_space<vmem>>, vector<128x1xf32>
    %4 = vector.shape_cast %3 : vector<128x1xf32> to vector<128x1xf32>
    %5 = vector.broadcast %4 : vector<128x1xf32> to vector<128x256xf32>
    %6 = vector.extract_strided_slice %2 {offsets = [0, 0], sizes = [128, 1], strides = [1, 1]} : vector<128x4xf32> to vector<128x1xf32>
    %7 = vector.extract_strided_slice %1 {offsets = [0, 0], sizes = [1, 256], strides = [1, 1]} : vector<4x256xf32> to vector<1x256xf32>
    %8 = vector.broadcast %6 : vector<128x1xf32> to vector<128x256xf32>
    %9 = vector.broadcast %7 : vector<1x256xf32> to vector<128x256xf32>
    %10 = arith.mulf %8, %9 : vector<128x256xf32>
    %11 = arith.addf %5, %10 : vector<128x256xf32>
    %12 = vector.extract_strided_slice %2 {offsets = [0, 1], sizes = [128, 1], strides = [1, 1]} : vector<128x4xf32> to vector<128x1xf32>
    %13 = vector.extract_strided_slice %1 {offsets = [1, 0], sizes = [1, 256], strides = [1, 1]} : vector<4x256xf32> to vector<1x256xf32>
    %14 = vector.broadcast %12 : vector<128x1xf32> to vector<128x256xf32>
    %15 = vector.broadcast %13 : vector<1x256xf32> to vector<128x256xf32>
    %16 = arith.mulf %14, %15 : vector<128x256xf32>
    %17 = arith.addf %11, %16 : vector<128x256xf32>
    %18 = vector.extract_strided_slice %2 {offsets = [0, 2], sizes = [128, 1], strides = [1, 1]} : vector<128x4xf32> to vector<128x1xf32>
    %19 = vector.extract_strided_slice %1 {offsets = [2, 0], sizes = [1, 256], strides = [1, 1]} : vector<4x256xf32> to vector<1x256xf32>
    %20 = vector.broadcast %18 : vector<128x1xf32> to vector<128x256xf32>
    %21 = vector.broadcast %19 : vector<1x256xf32> to vector<128x256xf32>
    %22 = arith.mulf %20, %21 : vector<128x256xf32>
    %23 = arith.addf %17, %22 : vector<128x256xf32>
    %24 = vector.extract_strided_slice %2 {offsets = [0, 3], sizes = [128, 1], strides = [1, 1]} : vector<128x4xf32> to vector<128x1xf32>
    %25 = vector.extract_strided_slice %1 {offsets = [3, 0], sizes = [1, 256], strides = [1, 1]} : vector<4x256xf32> to vector<1x256xf32>
    %26 = vector.broadcast %24 : vector<128x1xf32> to vector<128x256xf32>
    %27 = vector.broadcast %25 : vector<1x256xf32> to vector<128x256xf32>
    %28 = arith.mulf %26, %27 : vector<128x256xf32>
    %29 = arith.addf %23, %28 : vector<128x256xf32>
    %cst = arith.constant dense<0.000000e+00> : vector<128xf32>
    %30 = vector.multi_reduction <add>, %29, %cst [1] : vector<128x256xf32> to vector<128xf32>
    %31 = vector.shape_cast %30 : vector<128xf32> to vector<128x1xf32>
    %32 = arith.mulf %29, %29 : vector<128x256xf32>
    %cst_6 = arith.constant dense<0.000000e+00> : vector<128xf32>
    %33 = vector.multi_reduction <add>, %32, %cst_6 [1] : vector<128x256xf32> to vector<128xf32>
    %34 = vector.shape_cast %33 : vector<128xf32> to vector<128x1xf32>
    %35 = tpu.concatenate %31, %34 in 1 : vector<128x1xf32>, vector<128x1xf32> -> vector<128x2xf32>
    %36 = vector.shape_cast %35 : vector<128x2xf32> to vector<1x1x128x2xf32>
    %c0_7 = arith.constant 0 : index
    %c0_8 = arith.constant 0 : index
    %c0_9 = arith.constant 0 : index
    %c0_10 = arith.constant 0 : index
    %37 = vector.load %arg5[%c0_7, %c0_8, %c0_9, %c0_10] : memref<1x1x128x2xf32, #tpu.memory_space<vmem>>, vector<1x1x128x2xf32>
    tpu.vector_store %arg5[%c0_7, %c0_8, %c0_9, %c0_10], %36 {strides = array<i32>} : memref<1x1x128x2xf32, #tpu.memory_space<vmem>>, vector<1x1x128x2xf32>,
    return
  }
  func.func @transform_0(%arg0: i32, %arg1: i32) -> (i32, i32, i32) {
    %c0_i32 = arith.constant 0 : i32
    %c0_i32_0 = arith.constant 0 : i32
    return %arg0, %c0_i32, %arg1 : i32, i32, i32
  }
  func.func @transform_1(%arg0: i32, %arg1: i32) -> (i32, i32) {
    %c0_i32 = arith.constant 0 : i32
    %c0_i32_0 = arith.constant 0 : i32
    %c0_i32_1 = arith.constant 0 : i32
    return %c0_i32, %c0_i32_0 : i32, i32
  }
  func.func @transform_2(%arg0: i32, %arg1: i32) -> (i32, i32) {
    %c0_i32 = arith.constant 0 : i32
    %c0_i32_0 = arith.constant 0 : i32
    %c0_i32_1 = arith.constant 0 : i32
    return %c0_i32, %c0_i32_0 : i32, i32
  }
  func.func @transform_3(%arg0: i32, %arg1: i32) -> (i32, i32, i32, i32) {
    %c0_i32 = arith.constant 0 : i32
    %c0_i32_0 = arith.constant 0 : i32
    %c0_i32_1 = arith.constant 0 : i32
    return %arg0, %arg1, %c0_i32, %c0_i32_0 : i32, i32, i32, i32
  }
}

module attributes {stable_mosaic.version = 11 : i64} {
  func.func @_stats2_kernel(%arg0: i32, %arg1: i32, %arg2: memref<1x4x256xf32, #tpu.memory_space<vmem>>, %arg3: memref<128x4xf32, #tpu.memory_space<vmem>>, %arg4: memref<128x1xf32, #tpu.memory_space<vmem>>, %arg5: memref<128x2xf32, #tpu.memory_space<vmem>>, %arg6: memref<128x128xbf16, #tpu.memory_space<vmem>>, %arg7: memref<128x1xf32, #tpu.memory_space<vmem>>, %arg8: memref<1x1x128x2xf32, #tpu.memory_space<vmem>>) attributes {dimension_semantics = [#tpu.dimension_semantics<parallel>, #tpu.dimension_semantics<parallel>], iteration_bounds = array<i64: 2, 1>, scalar_prefetch = 0 : i64, scratch_operands = 0 : i64, tpu.core_type = #tpu.core_type<tc>, window_params = [{transform_indices = @transform_0, window_bounds = array<i64: 1, 4, 256>}, {pipeline_mode = #tpu.pipeline_mode<synchronous>, transform_indices = @transform_1, window_bounds = array<i64: 128, 4>}, {pipeline_mode = #tpu.pipeline_mode<synchronous>, transform_indices = @transform_2, window_bounds = array<i64: 128, 1>}, {pipeline_mode = #tpu.pipeline_mode<synchronous>, transform_indices = @transform_3, window_bounds = array<i64: 128, 2>}, {pipeline_mode = #tpu.pipeline_mode<synchronous>, transform_indices = @transform_4, window_bounds = array<i64: 128, 128>}, {pipeline_mode = #tpu.pipeline_mode<synchronous>, transform_indices = @transform_5, window_bounds = array<i64: 128, 1>}, {transform_indices = @transform_6, window_bounds = array<i64: 1, 1, 128, 2>}]} {
    %c0 = arith.constant 0 : index
    %c0_0 = arith.constant 0 : index
    %c0_1 = arith.constant 0 : index
    %0 = vector.load %arg2[%c0, %c0_0, %c0_1] : memref<1x4x256xf32, #tpu.memory_space<vmem>>, vector<1x4x256xf32>
    %1 = vector.shape_cast %0 : vector<1x4x256xf32> to vector<4x256xf32>
    %c0_2 = arith.constant 0 : index
    %c0_3 = arith.constant 0 : index
    %2 = vector.load %arg3[%c0_2, %c0_3] : memref<128x4xf32, #tpu.memory_space<vmem>>, vector<128x4xf32>
    %c0_4 = arith.constant 0 : index
    %c0_5 = arith.constant 0 : index
    %3 = vector.load %arg4[%c0_4, %c0_5] : memref<128x1xf32, #tpu.memory_space<vmem>>, vector<128x1xf32>
    %4 = vector.shape_cast %3 : vector<128x1xf32> to vector<128x1xf32>
    %5 = vector.broadcast %4 : vector<128x1xf32> to vector<128x256xf32>
    %6 = vector.extract_strided_slice %2 {offsets = [0, 0], sizes = [128, 1], strides = [1, 1]} : vector<128x4xf32> to vector<128x1xf32>
    %7 = vector.extract_strided_slice %1 {offsets = [0, 0], sizes = [1, 256], strides = [1, 1]} : vector<4x256xf32> to vector<1x256xf32>
    %8 = vector.broadcast %6 : vector<128x1xf32> to vector<128x256xf32>
    %9 = vector.broadcast %7 : vector<1x256xf32> to vector<128x256xf32>
    %10 = arith.mulf %8, %9 : vector<128x256xf32>
    %11 = arith.addf %5, %10 : vector<128x256xf32>
    %12 = vector.extract_strided_slice %2 {offsets = [0, 1], sizes = [128, 1], strides = [1, 1]} : vector<128x4xf32> to vector<128x1xf32>
    %13 = vector.extract_strided_slice %1 {offsets = [1, 0], sizes = [1, 256], strides = [1, 1]} : vector<4x256xf32> to vector<1x256xf32>
    %14 = vector.broadcast %12 : vector<128x1xf32> to vector<128x256xf32>
    %15 = vector.broadcast %13 : vector<1x256xf32> to vector<128x256xf32>
    %16 = arith.mulf %14, %15 : vector<128x256xf32>
    %17 = arith.addf %11, %16 : vector<128x256xf32>
    %18 = vector.extract_strided_slice %2 {offsets = [0, 2], sizes = [128, 1], strides = [1, 1]} : vector<128x4xf32> to vector<128x1xf32>
    %19 = vector.extract_strided_slice %1 {offsets = [2, 0], sizes = [1, 256], strides = [1, 1]} : vector<4x256xf32> to vector<1x256xf32>
    %20 = vector.broadcast %18 : vector<128x1xf32> to vector<128x256xf32>
    %21 = vector.broadcast %19 : vector<1x256xf32> to vector<128x256xf32>
    %22 = arith.mulf %20, %21 : vector<128x256xf32>
    %23 = arith.addf %17, %22 : vector<128x256xf32>
    %24 = vector.extract_strided_slice %2 {offsets = [0, 3], sizes = [128, 1], strides = [1, 1]} : vector<128x4xf32> to vector<128x1xf32>
    %25 = vector.extract_strided_slice %1 {offsets = [3, 0], sizes = [1, 256], strides = [1, 1]} : vector<4x256xf32> to vector<1x256xf32>
    %26 = vector.broadcast %24 : vector<128x1xf32> to vector<128x256xf32>
    %27 = vector.broadcast %25 : vector<1x256xf32> to vector<128x256xf32>
    %28 = arith.mulf %26, %27 : vector<128x256xf32>
    %29 = arith.addf %23, %28 : vector<128x256xf32>
    %c0_6 = arith.constant 0 : index
    %c0_7 = arith.constant 0 : index
    %30 = vector.load %arg5[%c0_6, %c0_7] : memref<128x2xf32, #tpu.memory_space<vmem>>, vector<128x2xf32>
    %31 = vector.extract_strided_slice %30 {offsets = [0, 0], sizes = [128, 1], strides = [1, 1]} : vector<128x2xf32> to vector<128x1xf32>
    %32 = vector.broadcast %31 : vector<128x1xf32> to vector<128x256xf32>
    %33 = arith.mulf %29, %32 : vector<128x256xf32>
    %34 = vector.extract_strided_slice %30 {offsets = [0, 1], sizes = [128, 1], strides = [1, 1]} : vector<128x2xf32> to vector<128x1xf32>
    %35 = vector.broadcast %34 : vector<128x1xf32> to vector<128x256xf32>
    %36 = arith.addf %33, %35 : vector<128x256xf32>
    %cst = arith.constant 5.000000e-01 : f32
    %37 = vector.broadcast %cst : f32 to vector<128x256xf32>
    %38 = arith.mulf %37, %36 : vector<128x256xf32>
    %cst_8 = arith.constant 0.707106769 : f32
    %39 = vector.broadcast %cst_8 : f32 to vector<128x256xf32>
    %40 = arith.mulf %36, %39 : vector<128x256xf32>
    %41 = math.erf %40 : vector<128x256xf32>
    %cst_9 = arith.constant 1.000000e+00 : f32
    %42 = vector.broadcast %cst_9 : f32 to vector<128x256xf32>
    %43 = arith.addf %42, %41 : vector<128x256xf32>
    %44 = arith.mulf %38, %43 : vector<128x256xf32>
    %c0_10 = arith.constant 0 : index
    %c0_11 = arith.constant 0 : index
    %45 = vector.load %arg6[%c0_10, %c0_11] : memref<128x128xbf16, #tpu.memory_space<vmem>>, vector<128x128xbf16>
    %c0_12 = arith.constant 0 : index
    %c0_13 = arith.constant 0 : index
    %46 = vector.load %arg7[%c0_12, %c0_13] : memref<128x1xf32, #tpu.memory_space<vmem>>, vector<128x1xf32>
    %47 = arith.truncf %44 : vector<128x256xf32> to vector<128x256xbf16>
    %cst_14 = arith.constant dense<0.000000e+00> : vector<128x256xf32>
    %48 = tpu.matmul %45, %47, %cst_14 {dimension_numbers = #tpu.dot_dimension_numbers<[1], [0], [0], [1], [0, 0, 1, 1], [], []>} : vector<128x128xbf16>, vector<128x256xbf16>, vector<128x256xf32> -> vector<128x256xf32>
    %49 = vector.broadcast %46 : vector<128x1xf32> to vector<128x256xf32>
    %50 = arith.addf %48, %49 : vector<128x256xf32>
    %cst_15 = arith.constant dense<0.000000e+00> : vector<128xf32>
    %51 = vector.multi_reduction <add>, %50, %cst_15 [1] : vector<128x256xf32> to vector<128xf32>
    %52 = vector.shape_cast %51 : vector<128xf32> to vector<128x1xf32>
    %53 = arith.mulf %50, %50 : vector<128x256xf32>
    %cst_16 = arith.constant dense<0.000000e+00> : vector<128xf32>
    %54 = vector.multi_reduction <add>, %53, %cst_16 [1] : vector<128x256xf32> to vector<128xf32>
    %55 = vector.shape_cast %54 : vector<128xf32> to vector<128x1xf32>
    %56 = tpu.concatenate %52, %55 in 1 : vector<128x1xf32>, vector<128x1xf32> -> vector<128x2xf32>
    %57 = vector.shape_cast %56 : vector<128x2xf32> to vector<1x1x128x2xf32>
    %c0_17 = arith.constant 0 : index
    %c0_18 = arith.constant 0 : index
    %c0_19 = arith.constant 0 : index
    %c0_20 = arith.constant 0 : index
    %58 = vector.load %arg8[%c0_17, %c0_18, %c0_19, %c0_20] : memref<1x1x128x2xf32, #tpu.memory_space<vmem>>, vector<1x1x128x2xf32>
    tpu.vector_store %arg8[%c0_17, %c0_18, %c0_19, %c0_20], %57 {strides = array<i32>} : memref<1x1x128x2xf32, #tpu.memory_space<vmem>>, vector<1x1x128x2xf32>,
    return
  }
  func.func @transform_0(%arg0: i32, %arg1: i32) -> (i32, i32, i32) {
    %c0_i32 = arith.constant 0 : i32
    %c0_i32_0 = arith.constant 0 : i32
    return %arg0, %c0_i32, %arg1 : i32, i32, i32
  }
  func.func @transform_1(%arg0: i32, %arg1: i32) -> (i32, i32) {
    %c0_i32 = arith.constant 0 : i32
    %c0_i32_0 = arith.constant 0 : i32
    %c0_i32_1 = arith.constant 0 : i32
    return %c0_i32, %c0_i32_0 : i32, i32
  }
  func.func @transform_2(%arg0: i32, %arg1: i32) -> (i32, i32) {
    %c0_i32 = arith.constant 0 : i32
    %c0_i32_0 = arith.constant 0 : i32
    %c0_i32_1 = arith.constant 0 : i32
    return %c0_i32, %c0_i32_0 : i32, i32
  }
  func.func @transform_3(%arg0: i32, %arg1: i32) -> (i32, i32) {
    %c0_i32 = arith.constant 0 : i32
    %c0_i32_0 = arith.constant 0 : i32
    %c0_i32_1 = arith.constant 0 : i32
    return %c0_i32, %c0_i32_0 : i32, i32
  }
  func.func @transform_4(%arg0: i32, %arg1: i32) -> (i32, i32) {
    %c0_i32 = arith.constant 0 : i32
    %c0_i32_0 = arith.constant 0 : i32
    %c0_i32_1 = arith.constant 0 : i32
    return %c0_i32, %c0_i32_0 : i32, i32
  }
  func.func @transform_5(%arg0: i32, %arg1: i32) -> (i32, i32) {
    %c0_i32 = arith.constant 0 : i32
    %c0_i32_0 = arith.constant 0 : i32
    %c0_i32_1 = arith.constant 0 : i32
    return %c0_i32, %c0_i32_0 : i32, i32
  }
  func.func @transform_6(%arg0: i32, %arg1: i32) -> (i32, i32, i32, i32) {
    %c0_i32 = arith.constant 0 : i32
    %c0_i32_0 = arith.constant 0 : i32
    %c0_i32_1 = arith.constant 0 : i32
    return %arg0, %arg1, %c0_i32, %c0_i32_0 : i32, i32, i32, i32
  }
}

module attributes {stable_mosaic.version = 11 : i64} {
  func.func @_final_kernel(%arg0: i32, %arg1: i32, %arg2: memref<1x4x256xf32, #tpu.memory_space<vmem>>, %arg3: memref<128x4xf32, #tpu.memory_space<vmem>>, %arg4: memref<128x1xf32, #tpu.memory_space<vmem>>, %arg5: memref<128x2xf32, #tpu.memory_space<vmem>>, %arg6: memref<128x128xbf16, #tpu.memory_space<vmem>>, %arg7: memref<128x1xf32, #tpu.memory_space<vmem>>, %arg8: memref<128x2xf32, #tpu.memory_space<vmem>>, %arg9: memref<8x128xbf16, #tpu.memory_space<vmem>>, %arg10: memref<8x1xf32, #tpu.memory_space<vmem>>, %arg11: memref<1x8x256xf32, #tpu.memory_space<vmem>>) attributes {dimension_semantics = [#tpu.dimension_semantics<parallel>, #tpu.dimension_semantics<parallel>], iteration_bounds = array<i64: 2, 1>, scalar_prefetch = 0 : i64, scratch_operands = 0 : i64, tpu.core_type = #tpu.core_type<tc>, window_params = [{transform_indices = @transform_0, window_bounds = array<i64: 1, 4, 256>}, {pipeline_mode = #tpu.pipeline_mode<synchronous>, transform_indices = @transform_1, window_bounds = array<i64: 128, 4>}, {pipeline_mode = #tpu.pipeline_mode<synchronous>, transform_indices = @transform_2, window_bounds = array<i64: 128, 1>}, {pipeline_mode = #tpu.pipeline_mode<synchronous>, transform_indices = @transform_3, window_bounds = array<i64: 128, 2>}, {pipeline_mode = #tpu.pipeline_mode<synchronous>, transform_indices = @transform_4, window_bounds = array<i64: 128, 128>}, {pipeline_mode = #tpu.pipeline_mode<synchronous>, transform_indices = @transform_5, window_bounds = array<i64: 128, 1>}, {pipeline_mode = #tpu.pipeline_mode<synchronous>, transform_indices = @transform_6, window_bounds = array<i64: 128, 2>}, {pipeline_mode = #tpu.pipeline_mode<synchronous>, transform_indices = @transform_7, window_bounds = array<i64: 8, 128>}, {pipeline_mode = #tpu.pipeline_mode<synchronous>, transform_indices = @transform_8, window_bounds = array<i64: 8, 1>}, {transform_indices = @transform_9, window_bounds = array<i64: 1, 8, 256>}]} {
    %c0 = arith.constant 0 : index
    %c0_0 = arith.constant 0 : index
    %c0_1 = arith.constant 0 : index
    %0 = vector.load %arg2[%c0, %c0_0, %c0_1] : memref<1x4x256xf32, #tpu.memory_space<vmem>>, vector<1x4x256xf32>
    %1 = vector.shape_cast %0 : vector<1x4x256xf32> to vector<4x256xf32>
    %c0_2 = arith.constant 0 : index
    %c0_3 = arith.constant 0 : index
    %2 = vector.load %arg3[%c0_2, %c0_3] : memref<128x4xf32, #tpu.memory_space<vmem>>, vector<128x4xf32>
    %c0_4 = arith.constant 0 : index
    %c0_5 = arith.constant 0 : index
    %3 = vector.load %arg4[%c0_4, %c0_5] : memref<128x1xf32, #tpu.memory_space<vmem>>, vector<128x1xf32>
    %4 = vector.shape_cast %3 : vector<128x1xf32> to vector<128x1xf32>
    %5 = vector.broadcast %4 : vector<128x1xf32> to vector<128x256xf32>
    %6 = vector.extract_strided_slice %2 {offsets = [0, 0], sizes = [128, 1], strides = [1, 1]} : vector<128x4xf32> to vector<128x1xf32>
    %7 = vector.extract_strided_slice %1 {offsets = [0, 0], sizes = [1, 256], strides = [1, 1]} : vector<4x256xf32> to vector<1x256xf32>
    %8 = vector.broadcast %6 : vector<128x1xf32> to vector<128x256xf32>
    %9 = vector.broadcast %7 : vector<1x256xf32> to vector<128x256xf32>
    %10 = arith.mulf %8, %9 : vector<128x256xf32>
    %11 = arith.addf %5, %10 : vector<128x256xf32>
    %12 = vector.extract_strided_slice %2 {offsets = [0, 1], sizes = [128, 1], strides = [1, 1]} : vector<128x4xf32> to vector<128x1xf32>
    %13 = vector.extract_strided_slice %1 {offsets = [1, 0], sizes = [1, 256], strides = [1, 1]} : vector<4x256xf32> to vector<1x256xf32>
    %14 = vector.broadcast %12 : vector<128x1xf32> to vector<128x256xf32>
    %15 = vector.broadcast %13 : vector<1x256xf32> to vector<128x256xf32>
    %16 = arith.mulf %14, %15 : vector<128x256xf32>
    %17 = arith.addf %11, %16 : vector<128x256xf32>
    %18 = vector.extract_strided_slice %2 {offsets = [0, 2], sizes = [128, 1], strides = [1, 1]} : vector<128x4xf32> to vector<128x1xf32>
    %19 = vector.extract_strided_slice %1 {offsets = [2, 0], sizes = [1, 256], strides = [1, 1]} : vector<4x256xf32> to vector<1x256xf32>
    %20 = vector.broadcast %18 : vector<128x1xf32> to vector<128x256xf32>
    %21 = vector.broadcast %19 : vector<1x256xf32> to vector<128x256xf32>
    %22 = arith.mulf %20, %21 : vector<128x256xf32>
    %23 = arith.addf %17, %22 : vector<128x256xf32>
    %24 = vector.extract_strided_slice %2 {offsets = [0, 3], sizes = [128, 1], strides = [1, 1]} : vector<128x4xf32> to vector<128x1xf32>
    %25 = vector.extract_strided_slice %1 {offsets = [3, 0], sizes = [1, 256], strides = [1, 1]} : vector<4x256xf32> to vector<1x256xf32>
    %26 = vector.broadcast %24 : vector<128x1xf32> to vector<128x256xf32>
    %27 = vector.broadcast %25 : vector<1x256xf32> to vector<128x256xf32>
    %28 = arith.mulf %26, %27 : vector<128x256xf32>
    %29 = arith.addf %23, %28 : vector<128x256xf32>
    %c0_6 = arith.constant 0 : index
    %c0_7 = arith.constant 0 : index
    %30 = vector.load %arg5[%c0_6, %c0_7] : memref<128x2xf32, #tpu.memory_space<vmem>>, vector<128x2xf32>
    %31 = vector.extract_strided_slice %30 {offsets = [0, 0], sizes = [128, 1], strides = [1, 1]} : vector<128x2xf32> to vector<128x1xf32>
    %32 = vector.broadcast %31 : vector<128x1xf32> to vector<128x256xf32>
    %33 = arith.mulf %29, %32 : vector<128x256xf32>
    %34 = vector.extract_strided_slice %30 {offsets = [0, 1], sizes = [128, 1], strides = [1, 1]} : vector<128x2xf32> to vector<128x1xf32>
    %35 = vector.broadcast %34 : vector<128x1xf32> to vector<128x256xf32>
    %36 = arith.addf %33, %35 : vector<128x256xf32>
    %cst = arith.constant 5.000000e-01 : f32
    %37 = vector.broadcast %cst : f32 to vector<128x256xf32>
    %38 = arith.mulf %37, %36 : vector<128x256xf32>
    %cst_8 = arith.constant 0.707106769 : f32
    %39 = vector.broadcast %cst_8 : f32 to vector<128x256xf32>
    %40 = arith.mulf %36, %39 : vector<128x256xf32>
    %41 = math.erf %40 : vector<128x256xf32>
    %cst_9 = arith.constant 1.000000e+00 : f32
    %42 = vector.broadcast %cst_9 : f32 to vector<128x256xf32>
    %43 = arith.addf %42, %41 : vector<128x256xf32>
    %44 = arith.mulf %38, %43 : vector<128x256xf32>
    %c0_10 = arith.constant 0 : index
    %c0_11 = arith.constant 0 : index
    %45 = vector.load %arg6[%c0_10, %c0_11] : memref<128x128xbf16, #tpu.memory_space<vmem>>, vector<128x128xbf16>
    %c0_12 = arith.constant 0 : index
    %c0_13 = arith.constant 0 : index
    %46 = vector.load %arg7[%c0_12, %c0_13] : memref<128x1xf32, #tpu.memory_space<vmem>>, vector<128x1xf32>
    %47 = arith.truncf %44 : vector<128x256xf32> to vector<128x256xbf16>
    %cst_14 = arith.constant dense<0.000000e+00> : vector<128x256xf32>
    %48 = tpu.matmul %45, %47, %cst_14 {dimension_numbers = #tpu.dot_dimension_numbers<[1], [0], [0], [1], [0, 0, 1, 1], [], []>} : vector<128x128xbf16>, vector<128x256xbf16>, vector<128x256xf32> -> vector<128x256xf32>
    %49 = vector.broadcast %46 : vector<128x1xf32> to vector<128x256xf32>
    %50 = arith.addf %48, %49 : vector<128x256xf32>
    %c0_15 = arith.constant 0 : index
    %c0_16 = arith.constant 0 : index
    %51 = vector.load %arg8[%c0_15, %c0_16] : memref<128x2xf32, #tpu.memory_space<vmem>>, vector<128x2xf32>
    %52 = vector.extract_strided_slice %51 {offsets = [0, 0], sizes = [128, 1], strides = [1, 1]} : vector<128x2xf32> to vector<128x1xf32>
    %53 = vector.broadcast %52 : vector<128x1xf32> to vector<128x256xf32>
    %54 = arith.mulf %50, %53 : vector<128x256xf32>
    %55 = vector.extract_strided_slice %51 {offsets = [0, 1], sizes = [128, 1], strides = [1, 1]} : vector<128x2xf32> to vector<128x1xf32>
    %56 = vector.broadcast %55 : vector<128x1xf32> to vector<128x256xf32>
    %57 = arith.addf %54, %56 : vector<128x256xf32>
    %cst_17 = arith.constant 5.000000e-01 : f32
    %58 = vector.broadcast %cst_17 : f32 to vector<128x256xf32>
    %59 = arith.mulf %58, %57 : vector<128x256xf32>
    %cst_18 = arith.constant 0.707106769 : f32
    %60 = vector.broadcast %cst_18 : f32 to vector<128x256xf32>
    %61 = arith.mulf %57, %60 : vector<128x256xf32>
    %62 = math.erf %61 : vector<128x256xf32>
    %cst_19 = arith.constant 1.000000e+00 : f32
    %63 = vector.broadcast %cst_19 : f32 to vector<128x256xf32>
    %64 = arith.addf %63, %62 : vector<128x256xf32>
    %65 = arith.mulf %59, %64 : vector<128x256xf32>
    %c0_20 = arith.constant 0 : index
    %c0_21 = arith.constant 0 : index
    %66 = vector.load %arg9[%c0_20, %c0_21] : memref<8x128xbf16, #tpu.memory_space<vmem>>, vector<8x128xbf16>
    %c0_22 = arith.constant 0 : index
    %c0_23 = arith.constant 0 : index
    %67 = vector.load %arg10[%c0_22, %c0_23] : memref<8x1xf32, #tpu.memory_space<vmem>>, vector<8x1xf32>
    %68 = arith.truncf %65 : vector<128x256xf32> to vector<128x256xbf16>
    %cst_24 = arith.constant dense<0.000000e+00> : vector<8x256xf32>
    %69 = tpu.matmul %66, %68, %cst_24 {dimension_numbers = #tpu.dot_dimension_numbers<[1], [0], [0], [1], [0, 0, 1, 1], [], []>} : vector<8x128xbf16>, vector<128x256xbf16>, vector<8x256xf32> -> vector<8x256xf32>
    %70 = vector.broadcast %67 : vector<8x1xf32> to vector<8x256xf32>
    %71 = arith.addf %69, %70 : vector<8x256xf32>
    %cst_25 = arith.constant 0.000000e+00 : f32
    %72 = vector.broadcast %cst_25 : f32 to vector<8x256xf32>
    %73 = arith.maximumf %71, %72 : vector<8x256xf32>
    %c0_26 = arith.constant 0 : index
    %c0_27 = arith.constant 0 : index
    %c0_28 = arith.constant 0 : index
    %74 = vector.load %arg11[%c0_26, %c0_27, %c0_28] : memref<1x8x256xf32, #tpu.memory_space<vmem>>, vector<1x8x256xf32>
    %75 = vector.shape_cast %74 : vector<1x8x256xf32> to vector<8x256xf32>
    %76 = vector.shape_cast %73 : vector<8x256xf32> to vector<1x8x256xf32>
    tpu.vector_store %arg11[%c0_26, %c0_27, %c0_28], %76 {strides = array<i32>} : memref<1x8x256xf32, #tpu.memory_space<vmem>>, vector<1x8x256xf32>,
    return
  }
  func.func @transform_0(%arg0: i32, %arg1: i32) -> (i32, i32, i32) {
    %c0_i32 = arith.constant 0 : i32
    %c0_i32_0 = arith.constant 0 : i32
    return %arg0, %c0_i32, %arg1 : i32, i32, i32
  }
  func.func @transform_1(%arg0: i32, %arg1: i32) -> (i32, i32) {
    %c0_i32 = arith.constant 0 : i32
    %c0_i32_0 = arith.constant 0 : i32
    %c0_i32_1 = arith.constant 0 : i32
    return %c0_i32, %c0_i32_0 : i32, i32
  }
  func.func @transform_2(%arg0: i32, %arg1: i32) -> (i32, i32) {
    %c0_i32 = arith.constant 0 : i32
    %c0_i32_0 = arith.constant 0 : i32
    %c0_i32_1 = arith.constant 0 : i32
    return %c0_i32, %c0_i32_0 : i32, i32
  }
  func.func @transform_3(%arg0: i32, %arg1: i32) -> (i32, i32) {
    %c0_i32 = arith.constant 0 : i32
    %c0_i32_0 = arith.constant 0 : i32
    %c0_i32_1 = arith.constant 0 : i32
    return %c0_i32, %c0_i32_0 : i32, i32
  }
  func.func @transform_4(%arg0: i32, %arg1: i32) -> (i32, i32) {
    %c0_i32 = arith.constant 0 : i32
    %c0_i32_0 = arith.constant 0 : i32
    %c0_i32_1 = arith.constant 0 : i32
    return %c0_i32, %c0_i32_0 : i32, i32
  }
  func.func @transform_5(%arg0: i32, %arg1: i32) -> (i32, i32) {
    %c0_i32 = arith.constant 0 : i32
    %c0_i32_0 = arith.constant 0 : i32
    %c0_i32_1 = arith.constant 0 : i32
    return %c0_i32, %c0_i32_0 : i32, i32
  }
  func.func @transform_6(%arg0: i32, %arg1: i32) -> (i32, i32) {
    %c0_i32 = arith.constant 0 : i32
    %c0_i32_0 = arith.constant 0 : i32
    %c0_i32_1 = arith.constant 0 : i32
    return %c0_i32, %c0_i32_0 : i32, i32
  }
  func.func @transform_7(%arg0: i32, %arg1: i32) -> (i32, i32) {
    %c0_i32 = arith.constant 0 : i32
    %c0_i32_0 = arith.constant 0 : i32
    %c0_i32_1 = arith.constant 0 : i32
    return %c0_i32, %c0_i32_0 : i32, i32
  }
  func.func @transform_8(%arg0: i32, %arg1: i32) -> (i32, i32) {
    %c0_i32 = arith.constant 0 : i32
    %c0_i32_0 = arith.constant 0 : i32
    %c0_i32_1 = arith.constant 0 : i32
    return %c0_i32, %c0_i32_0 : i32, i32
  }
  func.func @transform_9(%arg0: i32, %arg1: i32) -> (i32, i32, i32) {
    %c0_i32 = arith.constant 0 : i32
    %c0_i32_0 = arith.constant 0 : i32
    return %arg0, %c0_i32, %arg1 : i32, i32, i32
  }
}

</mosaic_0001>

<llo_original>
// kernel: arnet_forward.3
$region0: #{arnet_forward.3}
  #allocation0 [shape = 'u32[]', space=smem, size = 0x4, offset = 0x4, fixed_abs, tag = 'smem constant byte address 0x4 - core index']
  #allocation1 [shape = 'u32[144,128]{1,0:T(1,128)}', space=vmem, size = 0x12000, scoped, tag = 'internal scratch']
  %s0 = inlined_call_operand.vmem [shape: f32[2,4,256], index: 0, kind: input, shape index: {}]
  %s1 = inlined_call_operand.vmem [shape: f32[128,4], index: 1, kind: input, shape index: {}]
  %s2 = inlined_call_operand.vmem [shape: f32[128,1], index: 2, kind: input, shape index: {}]
  %s3 = inlined_call_operand.vmem [shape: f32[2,1,128,2], index: 3, kind: output, shape index: {}]
  %s4 = sld [smem:[#allocation0]]
  $region45: #{arnet_forward.3} parent=0
    _
  %s6 = ssub.s32 1, %s4
  %s7 = scalar_select 0, %s6, %s4
  loop: start=0, step=1, limit=4
  $region2: #{arnet_forward.3} parent=0 // loop_pre_header
    _
  $region3: #{arnet_forward.3} parent=0 // loop_header
    %s9 = sphi 0, %s13
    %p10 = scmp.ge.s32.totalorder %s9, 4
    %s16 = sphi 0, %s28
    %s17 = sphi 0, %s24
    %s18 = sphi 0, %s16
    %s19 = sphi 0, %s17
    %s20 = sphi 0, %s18
    %s21 = sphi 0, %s19
    %s33 = sphi 0, %s35
    %s36 = sphi 0, %s33
    %s37 = sphi 0, %s36
    %s53 = sphi 0, %s37
    %s57 = sphi 0, %s57
    %s59 = sphi 0, %s57
    %s60 = sphi 0, %s59
    %s74 = sphi 0, %s60
    %s78 = sphi 0, %s78
    %s80 = sphi 0, %s78
    %s81 = sphi 0, %s80
    %s95 = sphi 0, %s81
    %s103 = sphi 0, %s105
    %s106 = sphi 0, %s103
    %s107 = sphi 0, %s106
    %s123 = sphi 0, %s107
  $region4: #{arnet_forward.3} parent=0 // loop_header_branch
    %12 = sbr.rel (%p10) target = $region8
  $region5: #{arnet_forward.3} parent=0 // loop_body
    %s14 = ssub.s32 %s9, 1
    %s15 = ssub.s32 %s9, 2
    %s22 = sadd.s32 1, %s17
    %p23 = scmp.ge.s32.totalorder %s22, 1
    %s24 = scalar_select %p23, 0, %s22
    %s25 = sadd.s32 1, %s16
    %s26 = scalar_select %p23, %s25, %s16
    %p27 = scmp.ge.s32.totalorder %s26, 2
    %s28 = scalar_select %p27, 0, %s26
    %s29 = ssub.s32 %s16, %s28
    %s30 = ssub.s32 %s17, %s24
    %s31 = sor.u32 %s29, %s30
    %p32 = scmp.eq.s32.totalorder %s31, 0
    %s34 = sadd.s32 %s33, 1
    %s35 = scalar_select %p32, %s33, %s34
    %p38 = pneg %p32
    %p39 = scmp.eq.s32.totalorder %s9, 1
    %p40 = por %p38, %p39
    %p41 = scmp.ne.s32.totalorder %s33, %s36
    %p42 = scmp.eq.s32.totalorder %s9, 0
    %p43 = por %p41, %p42
    %p44 = scmp.ne.s32.totalorder %s33, %s36
    %p45 = scmp.eq.s32.totalorder %s14, 1
    %p46 = por %p44, %p45
    %p47 = scmp.ne.s32.totalorder %s36, %s37
    %p48 = scmp.eq.s32.totalorder %s14, 0
    %p49 = por %p47, %p48
    %p50 = scmp.ne.s32.totalorder %s36, %s37
    %p51 = scmp.eq.s32.totalorder %s15, 1
    %p52 = por %p50, %p51
    %p54 = scmp.ne.s32.totalorder %s37, %s53
    %p55 = scmp.eq.s32.totalorder %s15, 0
    %p56 = por %p54, %p55
    %s58 = sadd.s32 %s57, 1
    %p61 = scmp.eq.s32.totalorder %s9, 1
    %p62 = scmp.ne.s32.totalorder %s57, %s59
    %p63 = scmp.eq.s32.totalorder %s9, 0
    %p64 = por %p62, %p63
    %p65 = scmp.ne.s32.totalorder %s57, %s59
    %p66 = scmp.eq.s32.totalorder %s14, 1
    %p67 = por %p65, %p66
    %p68 = scmp.ne.s32.totalorder %s59, %s60
    %p69 = scmp.eq.s32.totalorder %s14, 0
    %p70 = por %p68, %p69
    %p71 = scmp.ne.s32.totalorder %s59, %s60
    %p72 = scmp.eq.s32.totalorder %s15, 1
    %p73 = por %p71, %p72
    %p75 = scmp.ne.s32.totalorder %s60, %s74
    %p76 = scmp.eq.s32.totalorder %s15, 0
    %p77 = por %p75, %p76
    %s79 = sadd.s32 %s78, 1
    %p82 = scmp.eq.s32.totalorder %s9, 1
    %p83 = scmp.ne.s32.totalorder %s78, %s80
    %p84 = scmp.eq.s32.totalorder %s9, 0
    %p85 = por %p83, %p84
    %p86 = scmp.ne.s32.totalorder %s78, %s80
    %p87 = scmp.eq.s32.totalorder %s14, 1
    %p88 = por %p86, %p87
    %p89 = scmp.ne.s32.totalorder %s80, %s81
    %p90 = scmp.eq.s32.totalorder %s14, 0
    %p91 = por %p89, %p90
    %p92 = scmp.ne.s32.totalorder %s80, %s81
    %p93 = scmp.eq.s32.totalorder %s15, 1
    %p94 = por %p92, %p93
    %p96 = scmp.ne.s32.totalorder %s81, %s95
    %p97 = scmp.eq.s32.totalorder %s15, 0
    %p98 = por %p96, %p97
    %s99 = ssub.s32 %s16, %s28
    %s100 = ssub.s32 %s17, %s24
    %s101 = sor.u32 %s99, %s100
    %p102 = scmp.eq.s32.totalorder %s101, 0
    %s104 = sadd.s32 %s103, 1
    %s105 = scalar_select %p102, %s103, %s104
    %p108 = pneg %p102
    %p109 = scmp.eq.s32.totalorder %s9, 1
    %p110 = por %p108, %p109
    %p111 = scmp.ne.s32.totalorder %s103, %s106
    %p112 = scmp.eq.s32.totalorder %s9, 0
    %p113 = por %p111, %p112
    %p114 = scmp.ne.s32.totalorder %s103, %s106
    %p115 = scmp.eq.s32.totalorder %s14, 1
    %p116 = por %p114, %p115
    %p117 = scmp.ne.s32.totalorder %s106, %s107
    %p118 = scmp.eq.s32.totalorder %s14, 0
    %p119 = por %p117, %p118
    %p120 = scmp.ne.s32.totalorder %s106, %s107
    %p121 = scmp.eq.s32.totalorder %s15, 1
    %p122 = por %p120, %p121
    %p124 = scmp.ne.s32.totalorder %s107, %s123
    %p125 = scmp.eq.s32.totalorder %s15, 0
    %p126 = por %p124, %p125
    %p127 = scmp.le.s32.totalorder 1, %s9
    %p128 = scmp.lt.s32.totalorder %s9, 3
    %p129 = pnand %p127, %p128
    %p130 = pneg %p129
    // Predicated region
    $region9: #{arnet_forward.3} parent=5 // pred_check
      _
    $region10: #{arnet_forward.3} parent=5 // pred_check_branch
      %132 = sbr.rel (%p129) target = $region12
    $region11: #{arnet_forward.3} parent=5 // pred_region
      %s133 = ssub.s32 %s9, 1
      // Predicated region
      $region13: #{arnet_forward.3} parent=11 // pred_check
        %p134 = pneg %p70
      $region14: #{arnet_forward.3} parent=11 // pred_check_branch
        %136 = sbr.rel (%p134) target = $region16
      $region15: #{arnet_forward.3} parent=11 // pred_region
        _
      $region16: #{arnet_forward.3} parent=11 // pred_fallthru
        _
      // Predicated region
      $region17: #{arnet_forward.3} parent=11 // pred_check
        %p137 = pneg %p91
      $region18: #{arnet_forward.3} parent=11 // pred_check_branch
        %139 = sbr.rel (%p137) target = $region20
      $region19: #{arnet_forward.3} parent=11 // pred_region
        _
      $region20: #{arnet_forward.3} parent=11 // pred_fallthru
        _
    $region12: #{arnet_forward.3} parent=5 // pred_fallthru
      _
    %p140 = scmp.lt.s32.totalorder %s9, 2
    // Predicated region
    $region21: #{arnet_forward.3} parent=5 // pred_check
      %p141 = pneg %p140
    $region22: #{arnet_forward.3} parent=5 // pred_check_branch
      %143 = sbr.rel (%p141) target = $region24
    $region23: #{arnet_forward.3} parent=5 // pred_region
      // Predicated region
      $region25: #{arnet_forward.3} parent=23 // pred_check
        %p144 = pneg %p43
      $region26: #{arnet_forward.3} parent=23 // pred_check_branch
        %146 = sbr.rel (%p144) target = $region28
      $region27: #{arnet_forward.3} parent=23 // pred_region
        %s147 = smul.u32 2, %s17
        %p148 = scmp.lt.s32.totalorder %s16, 1
        %s149 = scalar_select %p148, %s16, 1
        %p150 = scmp.lt.s32.totalorder %s147, 1
        %s151 = scalar_select %p150, %s147, 1
        %s152 = smul.addr %s149, 2
        %s153 = sadd.s32 %s151, %s152
        %s154 = smul.addr %s153, 4
        %s155 = scalar_lea.vmem %s0, %s154
        %s156 = smul.u32 2, %s17
      $region28: #{arnet_forward.3} parent=23 // pred_fallthru
        _
    $region24: #{arnet_forward.3} parent=5 // pred_fallthru
      _
    %p157 = scmp.le.s32.totalorder 1, %s9
    %p158 = scmp.lt.s32.totalorder %s9, 3
    %p159 = pnand %p157, %p158
    %p160 = pneg %p159
    // Predicated region
    $region29: #{arnet_forward.3} parent=5 // pred_check
      _
    $region30: #{arnet_forward.3} parent=5 // pred_check_branch
      %162 = sbr.rel (%p159) target = $region32
    $region31: #{arnet_forward.3} parent=5 // pred_region
      %s163 = ssub.s32 %s9, 1
      %s164 = smul.u32 2, %s19
      %p165 = scmp.lt.s32.totalorder %s18, 1
      %s166 = scalar_select %p165, %s18, 1
      %p167 = scmp.lt.s32.totalorder %s164, 1
      %s168 = scalar_select %p167, %s164, 1
      %s169 = smul.addr %s166, 2
      %s170 = sadd.s32 %s168, %s169
      %s171 = smul.addr %s170, 4
      %s172 = scalar_lea.vmem %s0, %s171
      %p173 = pneg %p49
      %p174 = pneg %p46
      %p175 = pneg %p70
      %p176 = pneg %p67
      %p177 = pneg %p91
      %p178 = pneg %p88
      %p179 = pneg %p119
      %p180 = pneg %p116
      %p181 = scmp.lt.s32.totalorder %s18, 1
      %s182 = scalar_select %p181, %s18, 1
      %p183 = scmp.lt.s32.totalorder %s19, 0
      %s184 = scalar_select %p183, %s19, 0
      %s185 = smul.addr %s184, 16
      %s186 = smul.addr %s182, 16
      %s187 = sadd.s32 %s185, %s186
      %s188 = smul.addr %s187, 8
      %s189 = scalar_lea.vmem %s3, %s188
      %s190 = smul.u32 2, %s19
      %p191 = scmp.lt.s32.totalorder %s18, 1
      %s192 = scalar_select %p191, %s18, 1
      %p193 = scmp.lt.s32.totalorder %s190, 1
      %s194 = scalar_select %p193, %s190, 1
      %s195 = smul.addr %s192, 2
      %s196 = sadd.s32 %s194, %s195
      %s197 = smul.addr %s196, 4
      %s198 = scalar_lea.vmem %s0, %s197
      %s199 = smul.u32 2, %s19
      %p200 = scmp.lt.s32.totalorder %s18, 1
      %s201 = scalar_select %p200, %s18, 1
      %p202 = scmp.lt.s32.totalorder %s19, 0
      %s203 = scalar_select %p202, %s19, 0
      %s204 = smul.addr %s203, 16
      %s205 = smul.addr %s201, 16
      %s206 = sadd.s32 %s204, %s205
      %s207 = smul.addr %s206, 8
      %s208 = scalar_lea.vmem %s3, %s207
      %v209 = vld [vmem:[%s198] sm:$0xff]
      %v210 = vld [vmem:[%s1] sm:$0xff]
      %v211 = vld [vmem:[%s1 + $0x8] sm:$0xff]
      %v212 = vld [vmem:[%s1 + $0x10] sm:$0xff]
      %v213 = vld [vmem:[%s1 + $0x18] sm:$0xff]
      %v214 = vld [vmem:[%s1 + $0x20] sm:$0xff]
      %v215 = vld [vmem:[%s1 + $0x28] sm:$0xff]
      %v216 = vld [vmem:[%s1 + $0x30] sm:$0xff]
      %v217 = vld [vmem:[%s1 + $0x38] sm:$0xff]
      %v218 = vld [vmem:[%s1 + $0x40] sm:$0xff]
      %v219 = vld [vmem:[%s1 + $0x48] sm:$0xff]
      %v220 = vld [vmem:[%s1 + $0x50] sm:$0xff]
      %v221 = vld [vmem:[%s1 + $0x58] sm:$0xff]
      %v222 = vld [vmem:[%s1 + $0x60] sm:$0xff]
      %v223 = vld [vmem:[%s1 + $0x68] sm:$0xff]
      %v224 = vld [vmem:[%s1 + $0x70] sm:$0xff]
      %v225 = vld [vmem:[%s1 + $0x78] sm:$0xff]
      %v226 = vld [vmem:[%s2] sm:$0xff]
      %v227 = vld [vmem:[%s2 + $0x8] sm:$0xff]
      %v228 = vld [vmem:[%s2 + $0x10] sm:$0xff]
      %v229 = vld [vmem:[%s2 + $0x18] sm:$0xff]
      %v230 = vld [vmem:[%s2 + $0x20] sm:$0xff]
      %v231 = vld [vmem:[%s2 + $0x28] sm:$0xff]
      %v232 = vld [vmem:[%s2 + $0x30] sm:$0xff]
      %v233 = vld [vmem:[%s2 + $0x38] sm:$0xff]
      %v234 = vld [vmem:[%s2 + $0x40] sm:$0xff]
      %v235 = vld [vmem:[%s2 + $0x48] sm:$0xff]
      %v236 = vld [vmem:[%s2 + $0x50] sm:$0xff]
      %v237 = vld [vmem:[%s2 + $0x58] sm:$0xff]
      %v238 = vld [vmem:[%s2 + $0x60] sm:$0xff]
      %v239 = vld [vmem:[%s2 + $0x68] sm:$0xff]
      %v240 = vld [vmem:[%s2 + $0x70] sm:$0xff]
      %v241 = vld [vmem:[%s2 + $0x78] sm:$0xff]
      %243 = vset.pattern.permute.xlu0 0
      %244 = vperm.xlu0 %243, %v226
      %v245 = vpop.permute.xlu0 %244
      %248 = vset.pattern.permute.xlu0 0
      %249 = vperm.xlu0 %248, %v227
      %v250 = vpop.permute.xlu0 %249
      %253 = vset.pattern.permute.xlu0 0
      %254 = vperm.xlu0 %253, %v228
      %v255 = vpop.permute.xlu0 %254
      %258 = vset.pattern.permute.xlu0 0
      %259 = vperm.xlu0 %258, %v229
      %v260 = vpop.permute.xlu0 %259
      %263 = vset.pattern.permute.xlu0 0
      %264 = vperm.xlu0 %263, %v230
      %v265 = vpop.permute.xlu0 %264
      %268 = vset.pattern.permute.xlu0 0
      %269 = vperm.xlu0 %268, %v231
      %v270 = vpop.permute.xlu0 %269
      %273 = vset.pattern.permute.xlu0 0
      %274 = vperm.xlu0 %273, %v232
      %v275 = vpop.permute.xlu0 %274
      %278 = vset.pattern.permute.xlu0 0
      %279 = vperm.xlu0 %278, %v233
      %v280 = vpop.permute.xlu0 %279
      %283 = vset.pattern.permute.xlu0 0
      %284 = vperm.xlu0 %283, %v234
      %v285 = vpop.permute.xlu0 %284
      %288 = vset.pattern.permute.xlu0 0
      %289 = vperm.xlu0 %288, %v235
      %v290 = vpop.permute.xlu0 %289
      %293 = vset.pattern.permute.xlu0 0
      %294 = vperm.xlu0 %293, %v236
      %v295 = vpop.permute.xlu0 %294
      %298 = vset.pattern.permute.xlu0 0
      %299 = vperm.xlu0 %298, %v237
      %v300 = vpop.permute.xlu0 %299
      %303 = vset.pattern.permute.xlu0 0
      %304 = vperm.xlu0 %303, %v238
      %v305 = vpop.permute.xlu0 %304
      %308 = vset.pattern.permute.xlu0 0
      %309 = vperm.xlu0 %308, %v239
      %v310 = vpop.permute.xlu0 %309
      %313 = vset.pattern.permute.xlu0 0
      %314 = vperm.xlu0 %313, %v240
      %v315 = vpop.permute.xlu0 %314
      %318 = vset.pattern.permute.xlu0 0
      %319 = vperm.xlu0 %318, %v241
      %v320 = vpop.permute.xlu0 %319
      %323 = vset.pattern.permute.xlu0 0
      %324 = vperm.xlu0 %323, %v210
      %v325 = vpop.permute.xlu0 %324
      %328 = vset.pattern.permute.xlu0 0
      %329 = vperm.xlu0 %328, %v211
      %v330 = vpop.permute.xlu0 %329
      %333 = vset.pattern.permute.xlu0 0
      %334 = vperm.xlu0 %333, %v212
      %v335 = vpop.permute.xlu0 %334
      %338 = vset.pattern.permute.xlu0 0
      %339 = vperm.xlu0 %338, %v213
      %v340 = vpop.permute.xlu0 %339
      %343 = vset.pattern.permute.xlu0 0
      %344 = vperm.xlu0 %343, %v214
      %v345 = vpop.permute.xlu0 %344
      %348 = vset.pattern.permute.xlu0 0
      %349 = vperm.xlu0 %348, %v215
      %v350 = vpop.permute.xlu0 %349
      %353 = vset.pattern.permute.xlu0 0
      %354 = vperm.xlu0 %353, %v216
      %v355 = vpop.permute.xlu0 %354
      %358 = vset.pattern.permute.xlu0 0
      %359 = vperm.xlu0 %358, %v217
      %v360 = vpop.permute.xlu0 %359
      %363 = vset.pattern.permute.xlu0 0
      %364 = vperm.xlu0 %363, %v218
      %v365 = vpop.permute.xlu0 %364
      %368 = vset.pattern.permute.xlu0 0
      %369 = vperm.xlu0 %368, %v219
      %v370 = vpop.permute.xlu0 %369
      %373 = vset.pattern.permute.xlu0 0
      %374 = vperm.xlu0 %373, %v220
      %v375 = vpop.permute.xlu0 %374
      %378 = vset.pattern.permute.xlu0 0
      %379 = vperm.xlu0 %378, %v221
      %v380 = vpop.permute.xlu0 %379
      %383 = vset.pattern.permute.xlu0 0
      %384 = vperm.xlu0 %383, %v222
      %v385 = vpop.permute.xlu0 %384
      %388 = vset.pattern.permute.xlu0 0
      %389 = vperm.xlu0 %388, %v223
      %v390 = vpop.permute.xlu0 %389
      %393 = vset.pattern.permute.xlu0 0
      %394 = vperm.xlu0 %393, %v224
      %v395 = vpop.permute.xlu0 %394
      %398 = vset.pattern.permute.xlu0 0
      %399 = vperm.xlu0 %398, %v225
      %v400 = vpop.permute.xlu0 %399
      %v403 = vlaneseq
      %v404 = vshrl.u32 %v403, 7
      %v405 = vsub.s32 0, %v404
      %v406 = vrot.slane %v209, %v405
      %v407 = vlaneseq
      %v408 = vshrl.u32 %v407, 7
      %v409 = vsub.s32 4, %v408
      %v410 = vrot.slane %v209, %v409
      %v413 = vlaneseq
      %v414 = vshrl.u32 %v413, 7
      %v415 = vsub.s32 0, %v414
      %v416 = vrot.slane %v406, %v415
      %v417 = vlaneseq
      %v418 = vshrl.u32 %v417, 7
      %v419 = vsub.s32 0, %v418
      %v420 = vrot.slane %v410, %v419
      %v421 = vmul.f32 %v325, %v416
      %v422 = vmul.f32 %v325, %v420
      %v423 = vmul.f32 %v330, %v416
      %v424 = vmul.f32 %v330, %v420
      %v425 = vmul.f32 %v335, %v416
      %v426 = vmul.f32 %v335, %v420
      %v427 = vmul.f32 %v340, %v416
      %v428 = vmul.f32 %v340, %v420
      %v429 = vmul.f32 %v345, %v416
      %v430 = vmul.f32 %v345, %v420
      %v431 = vmul.f32 %v350, %v416
      %v432 = vmul.f32 %v350, %v420
      %v433 = vmul.f32 %v355, %v416
      %v434 = vmul.f32 %v355, %v420
      %v435 = vmul.f32 %v360, %v416
      %v436 = vmul.f32 %v360, %v420
      %v437 = vmul.f32 %v365, %v416
      %v438 = vmul.f32 %v365, %v420
      %v439 = vmul.f32 %v370, %v416
      %v440 = vmul.f32 %v370, %v420
      %v441 = vmul.f32 %v375, %v416
      %v442 = vmul.f32 %v375, %v420
      %v443 = vmul.f32 %v380, %v416
      %v444 = vmul.f32 %v380, %v420
      %v445 = vmul.f32 %v385, %v416
      %v446 = vmul.f32 %v385, %v420
      %v447 = vmul.f32 %v390, %v416
      %v448 = vmul.f32 %v390, %v420
      %v449 = vmul.f32 %v395, %v416
      %v450 = vmul.f32 %v395, %v420
      %v451 = vmul.f32 %v400, %v416
      %v452 = vmul.f32 %v400, %v420
      %v453 = vadd.f32 %v245, %v421
      %v454 = vadd.f32 %v245, %v422
      %v455 = vadd.f32 %v250, %v423
      %v456 = vadd.f32 %v250, %v424
      %v457 = vadd.f32 %v255, %v425
      %v458 = vadd.f32 %v255, %v426
      %v459 = vadd.f32 %v260, %v427
      %v460 = vadd.f32 %v260, %v428
      %v461 = vadd.f32 %v265, %v429
      %v462 = vadd.f32 %v265, %v430
      %v463 = vadd.f32 %v270, %v431
      %v464 = vadd.f32 %v270, %v432
      %v465 = vadd.f32 %v275, %v433
      %v466 = vadd.f32 %v275, %v434
      %v467 = vadd.f32 %v280, %v435
      %v468 = vadd.f32 %v280, %v436
      %v469 = vadd.f32 %v285, %v437
      %v470 = vadd.f32 %v285, %v438
      %v471 = vadd.f32 %v290, %v439
      %v472 = vadd.f32 %v290, %v440
      %v473 = vadd.f32 %v295, %v441
      %v474 = vadd.f32 %v295, %v442
      %v475 = vadd.f32 %v300, %v443
      %v476 = vadd.f32 %v300, %v444
      %v477 = vadd.f32 %v305, %v445
      %v478 = vadd.f32 %v305, %v446
      %v479 = vadd.f32 %v310, %v447
      %v480 = vadd.f32 %v310, %v448
      %v481 = vadd.f32 %v315, %v449
      %v482 = vadd.f32 %v315, %v450
      %v483 = vadd.f32 %v320, %v451
      %v484 = vadd.f32 %v320, %v452
      %485 = vset.pattern.permute.xlu0 1
      %486 = vperm.xlu0 %485, %v210
      %v487 = vpop.permute.xlu0 %486
      %489 = vset.pattern.permute.xlu0 1
      %490 = vperm.xlu0 %489, %v211
      %v491 = vpop.permute.xlu0 %490
      %493 = vset.pattern.permute.xlu0 1
      %494 = vperm.xlu0 %493, %v212
      %v495 = vpop.permute.xlu0 %494
      %497 = vset.pattern.permute.xlu0 1
      %498 = vperm.xlu0 %497, %v213
      %v499 = vpop.permute.xlu0 %498
      %501 = vset.pattern.permute.xlu0 1
      %502 = vperm.xlu0 %501, %v214
      %v503 = vpop.permute.xlu0 %502
      %505 = vset.pattern.permute.xlu0 1
      %506 = vperm.xlu0 %505, %v215
      %v507 = vpop.permute.xlu0 %506
      %509 = vset.pattern.permute.xlu0 1
      %510 = vperm.xlu0 %509, %v216
      %v511 = vpop.permute.xlu0 %510
      %513 = vset.pattern.permute.xlu0 1
      %514 = vperm.xlu0 %513, %v217
      %v515 = vpop.permute.xlu0 %514
      %517 = vset.pattern.permute.xlu0 1
      %518 = vperm.xlu0 %517, %v218
      %v519 = vpop.permute.xlu0 %518
      %521 = vset.pattern.permute.xlu0 1
      %522 = vperm.xlu0 %521, %v219
      %v523 = vpop.permute.xlu0 %522
      %525 = vset.pattern.permute.xlu0 1
      %526 = vperm.xlu0 %525, %v220
      %v527 = vpop.permute.xlu0 %526
      %529 = vset.pattern.permute.xlu0 1
      %530 = vperm.xlu0 %529, %v221
      %v531 = vpop.permute.xlu0 %530
      %533 = vset.pattern.permute.xlu0 1
      %534 = vperm.xlu0 %533, %v222
      %v535 = vpop.permute.xlu0 %534
      %537 = vset.pattern.permute.xlu0 1
      %538 = vperm.xlu0 %537, %v223
      %v539 = vpop.permute.xlu0 %538
      %541 = vset.pattern.permute.xlu0 1
      %542 = vperm.xlu0 %541, %v224
      %v543 = vpop.permute.xlu0 %542
      %545 = vset.pattern.permute.xlu0 1
      %546 = vperm.xlu0 %545, %v225
      %v547 = vpop.permute.xlu0 %546
      %v549 = vlaneseq
      %v550 = vshrl.u32 %v549, 7
      %v551 = vsub.s32 1, %v550
      %v552 = vrot.slane %v209, %v551
      %v553 = vlaneseq
      %v554 = vshrl.u32 %v553, 7
      %v555 = vsub.s32 5, %v554
      %v556 = vrot.slane %v209, %v555
      %v559 = vlaneseq
      %v560 = vshrl.u32 %v559, 7
      %v561 = vsub.s32 1, %v560
      %v562 = vrot.slane %v552, %v561
      %v563 = vlaneseq
      %v564 = vshrl.u32 %v563, 7
      %v565 = vsub.s32 1, %v564
      %v566 = vrot.slane %v556, %v565
      %v567 = vmul.f32 %v487, %v562
      %v568 = vmul.f32 %v487, %v566
      %v569 = vmul.f32 %v491, %v562
      %v570 = vmul.f32 %v491, %v566
      %v571 = vmul.f32 %v495, %v562
      %v572 = vmul.f32 %v495, %v566
      %v573 = vmul.f32 %v499, %v562
      %v574 = vmul.f32 %v499, %v566
      %v575 = vmul.f32 %v503, %v562
      %v576 = vmul.f32 %v503, %v566
      %v577 = vmul.f32 %v507, %v562
      %v578 = vmul.f32 %v507, %v566
      %v579 = vmul.f32 %v511, %v562
      %v580 = vmul.f32 %v511, %v566
      %v581 = vmul.f32 %v515, %v562
      %v582 = vmul.f32 %v515, %v566
      %v583 = vmul.f32 %v519, %v562
      %v584 = vmul.f32 %v519, %v566
      %v585 = vmul.f32 %v523, %v562
      %v586 = vmul.f32 %v523, %v566
      %v587 = vmul.f32 %v527, %v562
      %v588 = vmul.f32 %v527, %v566
      %v589 = vmul.f32 %v531, %v562
      %v590 = vmul.f32 %v531, %v566
      %v591 = vmul.f32 %v535, %v562
      %v592 = vmul.f32 %v535, %v566
      %v593 = vmul.f32 %v539, %v562
      %v594 = vmul.f32 %v539, %v566
      %v595 = vmul.f32 %v543, %v562
      %v596 = vmul.f32 %v543, %v566
      %v597 = vmul.f32 %v547, %v562
      %v598 = vmul.f32 %v547, %v566
      %v599 = vadd.f32 %v453, %v567
      %v600 = vadd.f32 %v454, %v568
      %v601 = vadd.f32 %v455, %v569
      %v602 = vadd.f32 %v456, %v570
      %v603 = vadd.f32 %v457, %v571
      %v604 = vadd.f32 %v458, %v572
      %v605 = vadd.f32 %v459, %v573
      %v606 = vadd.f32 %v460, %v574
      %v607 = vadd.f32 %v461, %v575
      %v608 = vadd.f32 %v462, %v576
      %v609 = vadd.f32 %v463, %v577
      %v610 = vadd.f32 %v464, %v578
      %v611 = vadd.f32 %v465, %v579
      %v612 = vadd.f32 %v466, %v580
      %v613 = vadd.f32 %v467, %v581
      %v614 = vadd.f32 %v468, %v582
      %v615 = vadd.f32 %v469, %v583
      %v616 = vadd.f32 %v470, %v584
      %v617 = vadd.f32 %v471, %v585
      %v618 = vadd.f32 %v472, %v586
      %v619 = vadd.f32 %v473, %v587
      %v620 = vadd.f32 %v474, %v588
      %v621 = vadd.f32 %v475, %v589
      %v622 = vadd.f32 %v476, %v590
      %v623 = vadd.f32 %v477, %v591
      %v624 = vadd.f32 %v478, %v592
      %v625 = vadd.f32 %v479, %v593
      %v626 = vadd.f32 %v480, %v594
      %v627 = vadd.f32 %v481, %v595
      %v628 = vadd.f32 %v482, %v596
      %v629 = vadd.f32 %v483, %v597
      %v630 = vadd.f32 %v484, %v598
      %631 = vset.pattern.permute.xlu0 2
      %632 = vperm.xlu0 %631, %v210
      %v633 = vpop.permute.xlu0 %632
      %635 = vset.pattern.permute.xlu0 2
      %636 = vperm.xlu0 %635, %v211
      %v637 = vpop.permute.xlu0 %636
      %639 = vset.pattern.permute.xlu0 2
      %640 = vperm.xlu0 %639, %v212
      %v641 = vpop.permute.xlu0 %640
      %643 = vset.pattern.permute.xlu0 2
      %644 = vperm.xlu0 %643, %v213
      %v645 = vpop.permute.xlu0 %644
      %647 = vset.pattern.permute.xlu0 2
      %648 = vperm.xlu0 %647, %v214
      %v649 = vpop.permute.xlu0 %648
      %651 = vset.pattern.permute.xlu0 2
      %652 = vperm.xlu0 %651, %v215
      %v653 = vpop.permute.xlu0 %652
      %655 = vset.pattern.permute.xlu0 2
      %656 = vperm.xlu0 %655, %v216
      %v657 = vpop.permute.xlu0 %656
      %659 = vset.pattern.permute.xlu0 2
      %660 = vperm.xlu0 %659, %v217
      %v661 = vpop.permute.xlu0 %660
      %663 = vset.pattern.permute.xlu0 2
      %664 = vperm.xlu0 %663, %v218
      %v665 = vpop.permute.xlu0 %664
      %667 = vset.pattern.permute.xlu0 2
      %668 = vperm.xlu0 %667, %v219
      %v669 = vpop.permute.xlu0 %668
      %671 = vset.pattern.permute.xlu0 2
      %672 = vperm.xlu0 %671, %v220
      %v673 = vpop.permute.xlu0 %672
      %675 = vset.pattern.permute.xlu0 2
      %676 = vperm.xlu0 %675, %v221
      %v677 = vpop.permute.xlu0 %676
      %679 = vset.pattern.permute.xlu0 2
      %680 = vperm.xlu0 %679, %v222
      %v681 = vpop.permute.xlu0 %680
      %683 = vset.pattern.permute.xlu0 2
      %684 = vperm.xlu0 %683, %v223
      %v685 = vpop.permute.xlu0 %684
      %687 = vset.pattern.permute.xlu0 2
      %688 = vperm.xlu0 %687, %v224
      %v689 = vpop.permute.xlu0 %688
      %691 = vset.pattern.permute.xlu0 2
      %692 = vperm.xlu0 %691, %v225
      %v693 = vpop.permute.xlu0 %692
      %v695 = vlaneseq
      %v696 = vshrl.u32 %v695, 7
      %v697 = vsub.s32 2, %v696
      %v698 = vrot.slane %v209, %v697
      %v699 = vlaneseq
      %v700 = vshrl.u32 %v699, 7
      %v701 = vsub.s32 6, %v700
      %v702 = vrot.slane %v209, %v701
      %v705 = vlaneseq
      %v706 = vshrl.u32 %v705, 7
      %v707 = vsub.s32 2, %v706
      %v708 = vrot.slane %v698, %v707
      %v709 = vlaneseq
      %v710 = vshrl.u32 %v709, 7
      %v711 = vsub.s32 2, %v710
      %v712 = vrot.slane %v702, %v711
      %v713 = vmul.f32 %v633, %v708
      %v714 = vmul.f32 %v633, %v712
      %v715 = vmul.f32 %v637, %v708
      %v716 = vmul.f32 %v637, %v712
      %v717 = vmul.f32 %v641, %v708
      %v718 = vmul.f32 %v641, %v712
      %v719 = vmul.f32 %v645, %v708
      %v720 = vmul.f32 %v645, %v712
      %v721 = vmul.f32 %v649, %v708
      %v722 = vmul.f32 %v649, %v712
      %v723 = vmul.f32 %v653, %v708
      %v724 = vmul.f32 %v653, %v712
      %v725 = vmul.f32 %v657, %v708
      %v726 = vmul.f32 %v657, %v712
      %v727 = vmul.f32 %v661, %v708
      %v728 = vmul.f32 %v661, %v712
      %v729 = vmul.f32 %v665, %v708
      %v730 = vmul.f32 %v665, %v712
      %v731 = vmul.f32 %v669, %v708
      %v732 = vmul.f32 %v669, %v712
      %v733 = vmul.f32 %v673, %v708
      %v734 = vmul.f32 %v673, %v712
      %v735 = vmul.f32 %v677, %v708
      %v736 = vmul.f32 %v677, %v712
      %v737 = vmul.f32 %v681, %v708
      %v738 = vmul.f32 %v681, %v712
      %v739 = vmul.f32 %v685, %v708
      %v740 = vmul.f32 %v685, %v712
      %v741 = vmul.f32 %v689, %v708
      %v742 = vmul.f32 %v689, %v712
      %v743 = vmul.f32 %v693, %v708
      %v744 = vmul.f32 %v693, %v712
      %v745 = vadd.f32 %v599, %v713
      %v746 = vadd.f32 %v600, %v714
      %v747 = vadd.f32 %v601, %v715
      %v748 = vadd.f32 %v602, %v716
      %v749 = vadd.f32 %v603, %v717
      %v750 = vadd.f32 %v604, %v718
      %v751 = vadd.f32 %v605, %v719
      %v752 = vadd.f32 %v606, %v720
      %v753 = vadd.f32 %v607, %v721
      %v754 = vadd.f32 %v608, %v722
      %v755 = vadd.f32 %v609, %v723
      %v756 = vadd.f32 %v610, %v724
      %v757 = vadd.f32 %v611, %v725
      %v758 = vadd.f32 %v612, %v726
      %v759 = vadd.f32 %v613, %v727
      %v760 = vadd.f32 %v614, %v728
      %v761 = vadd.f32 %v615, %v729
      %v762 = vadd.f32 %v616, %v730
      %v763 = vadd.f32 %v617, %v731
      %v764 = vadd.f32 %v618, %v732
      %v765 = vadd.f32 %v619, %v733
      %v766 = vadd.f32 %v620, %v734
      %v767 = vadd.f32 %v621, %v735
      %v768 = vadd.f32 %v622, %v736
      %v769 = vadd.f32 %v623, %v737
      %v770 = vadd.f32 %v624, %v738
      %v771 = vadd.f32 %v625, %v739
      %v772 = vadd.f32 %v626, %v740
      %v773 = vadd.f32 %v627, %v741
      %v774 = vadd.f32 %v628, %v742
      %v775 = vadd.f32 %v629, %v743
      %v776 = vadd.f32 %v630, %v744
      %777 = vset.pattern.permute.xlu0 3
      %778 = vperm.xlu0 %777, %v210
      %v779 = vpop.permute.xlu0 %778
      %781 = vset.pattern.permute.xlu0 3
      %782 = vperm.xlu0 %781, %v211
      %v783 = vpop.permute.xlu0 %782
      %785 = vset.pattern.permute.xlu0 3
      %786 = vperm.xlu0 %785, %v212
      %v787 = vpop.permute.xlu0 %786
      %789 = vset.pattern.permute.xlu0 3
      %790 = vperm.xlu0 %789, %v213
      %v791 = vpop.permute.xlu0 %790
      %793 = vset.pattern.permute.xlu0 3
      %794 = vperm.xlu0 %793, %v214
      %v795 = vpop.permute.xlu0 %794
      %797 = vset.pattern.permute.xlu0 3
      %798 = vperm.xlu0 %797, %v215
      %v799 = vpop.permute.xlu0 %798
      %801 = vset.pattern.permute.xlu0 3
      %802 = vperm.xlu0 %801, %v216
      %v803 = vpop.permute.xlu0 %802
      %805 = vset.pattern.permute.xlu0 3
      %806 = vperm.xlu0 %805, %v217
      %v807 = vpop.permute.xlu0 %806
      %809 = vset.pattern.permute.xlu0 3
      %810 = vperm.xlu0 %809, %v218
      %v811 = vpop.permute.xlu0 %810
      %813 = vset.pattern.permute.xlu0 3
      %814 = vperm.xlu0 %813, %v219
      %v815 = vpop.permute.xlu0 %814
      %817 = vset.pattern.permute.xlu0 3
      %818 = vperm.xlu0 %817, %v220
      %v819 = vpop.permute.xlu0 %818
      %821 = vset.pattern.permute.xlu0 3
      %822 = vperm.xlu0 %821, %v221
      %v823 = vpop.permute.xlu0 %822
      %825 = vset.pattern.permute.xlu0 3
      %826 = vperm.xlu0 %825, %v222
      %v827 = vpop.permute.xlu0 %826
      %829 = vset.pattern.permute.xlu0 3
      %830 = vperm.xlu0 %829, %v223
      %v831 = vpop.permute.xlu0 %830
      %833 = vset.pattern.permute.xlu0 3
      %834 = vperm.xlu0 %833, %v224
      %v835 = vpop.permute.xlu0 %834
      %837 = vset.pattern.permute.xlu0 3
      %838 = vperm.xlu0 %837, %v225
      %v839 = vpop.permute.xlu0 %838
      %v841 = vlaneseq
      %v842 = vshrl.u32 %v841, 7
      %v843 = vsub.s32 3, %v842
      %v844 = vrot.slane %v209, %v843
      %v845 = vlaneseq
      %v846 = vshrl.u32 %v845, 7
      %v847 = vsub.s32 7, %v846
      %v848 = vrot.slane %v209, %v847
      %v851 = vlaneseq
      %v852 = vshrl.u32 %v851, 7
      %v853 = vsub.s32 3, %v852
      %v854 = vrot.slane %v844, %v853
      %v855 = vlaneseq
      %v856 = vshrl.u32 %v855, 7
      %v857 = vsub.s32 3, %v856
      %v858 = vrot.slane %v848, %v857
      %v859 = vmul.f32 %v779, %v854
      %v860 = vmul.f32 %v779, %v858
      %v861 = vmul.f32 %v783, %v854
      %v862 = vmul.f32 %v783, %v858
      %v863 = vmul.f32 %v787, %v854
      %v864 = vmul.f32 %v787, %v858
      %v865 = vmul.f32 %v791, %v854
      %v866 = vmul.f32 %v791, %v858
      %v867 = vmul.f32 %v795, %v854
      %v868 = vmul.f32 %v795, %v858
      %v869 = vmul.f32 %v799, %v854
      %v870 = vmul.f32 %v799, %v858
      %v871 = vmul.f32 %v803, %v854
      %v872 = vmul.f32 %v803, %v858
      %v873 = vmul.f32 %v807, %v854
      %v874 = vmul.f32 %v807, %v858
      %v875 = vmul.f32 %v811, %v854
      %v876 = vmul.f32 %v811, %v858
      %v877 = vmul.f32 %v815, %v854
      %v878 = vmul.f32 %v815, %v858
      %v879 = vmul.f32 %v819, %v854
      %v880 = vmul.f32 %v819, %v858
      %v881 = vmul.f32 %v823, %v854
      %v882 = vmul.f32 %v823, %v858
      %v883 = vmul.f32 %v827, %v854
      %v884 = vmul.f32 %v827, %v858
      %v885 = vmul.f32 %v831, %v854
      %v886 = vmul.f32 %v831, %v858
      %v887 = vmul.f32 %v835, %v854
      %v888 = vmul.f32 %v835, %v858
      %v889 = vmul.f32 %v839, %v854
      %v890 = vmul.f32 %v839, %v858
      %v891 = vadd.f32 %v745, %v859
      %v892 = vadd.f32 %v746, %v860
      %v893 = vadd.f32 %v747, %v861
      %v894 = vadd.f32 %v748, %v862
      %v895 = vadd.f32 %v749, %v863
      %v896 = vadd.f32 %v750, %v864
      %v897 = vadd.f32 %v751, %v865
      %v898 = vadd.f32 %v752, %v866
      %v899 = vadd.f32 %v753, %v867
      %v900 = vadd.f32 %v754, %v868
      %v901 = vadd.f32 %v755, %v869
      %v902 = vadd.f32 %v756, %v870
      %v903 = vadd.f32 %v757, %v871
      %v904 = vadd.f32 %v758, %v872
      %v905 = vadd.f32 %v759, %v873
      %v906 = vadd.f32 %v760, %v874
      %v907 = vadd.f32 %v761, %v875
      %v908 = vadd.f32 %v762, %v876
      %v909 = vadd.f32 %v763, %v877
      %v910 = vadd.f32 %v764, %v878
      %v911 = vadd.f32 %v765, %v879
      %v912 = vadd.f32 %v766, %v880
      %v913 = vadd.f32 %v767, %v881
      %v914 = vadd.f32 %v768, %v882
      %v915 = vadd.f32 %v769, %v883
      %v916 = vadd.f32 %v770, %v884
      %v917 = vadd.f32 %v771, %v885
      %v918 = vadd.f32 %v772, %v886
      %v919 = vadd.f32 %v773, %v887
      %v920 = vadd.f32 %v774, %v888
      %v921 = vadd.f32 %v775, %v889
      %v922 = vadd.f32 %v776, %v890
      %v923 = vadd.f32 %v891, %v892
      %924 = vadd.xlane.f32.xlu0 %v923
      %v925 = vpop.xlane.xlu0 %924
      %v926 = vadd.f32 %v893, %v894
      %927 = vadd.xlane.f32.xlu0 %v926
      %v928 = vpop.xlane.xlu0 %927
      %v929 = vadd.f32 %v895, %v896
      %930 = vadd.xlane.f32.xlu0 %v929
      %v931 = vpop.xlane.xlu0 %930
      %v932 = vadd.f32 %v897, %v898
      %933 = vadd.xlane.f32.xlu0 %v932
      %v934 = vpop.xlane.xlu0 %933
      %v935 = vadd.f32 %v899, %v900
      %936 = vadd.xlane.f32.xlu0 %v935
      %v937 = vpop.xlane.xlu0 %936
      %v938 = vadd.f32 %v901, %v902
      %939 = vadd.xlane.f32.xlu0 %v938
      %v940 = vpop.xlane.xlu0 %939
      %v941 = vadd.f32 %v903, %v904
      %942 = vadd.xlane.f32.xlu0 %v941
      %v943 = vpop.xlane.xlu0 %942
      %v944 = vadd.f32 %v905, %v906
      %945 = vadd.xlane.f32.xlu0 %v944
      %v946 = vpop.xlane.xlu0 %945
      %v947 = vadd.f32 %v907, %v908
      %948 = vadd.xlane.f32.xlu0 %v947
      %v949 = vpop.xlane.xlu0 %948
      %v950 = vadd.f32 %v909, %v910
      %951 = vadd.xlane.f32.xlu0 %v950
      %v952 = vpop.xlane.xlu0 %951
      %v953 = vadd.f32 %v911, %v912
      %954 = vadd.xlane.f32.xlu0 %v953
      %v955 = vpop.xlane.xlu0 %954
      %v956 = vadd.f32 %v913, %v914
      %957 = vadd.xlane.f32.xlu0 %v956
      %v958 = vpop.xlane.xlu0 %957
      %v959 = vadd.f32 %v915, %v916
      %960 = vadd.xlane.f32.xlu0 %v959
      %v961 = vpop.xlane.xlu0 %960
      %v962 = vadd.f32 %v917, %v918
      %963 = vadd.xlane.f32.xlu0 %v962
      %v964 = vpop.xlane.xlu0 %963
      %v965 = vadd.f32 %v919, %v920
      %966 = vadd.xlane.f32.xlu0 %v965
      %v967 = vpop.xlane.xlu0 %966
      %v968 = vadd.f32 %v921, %v922
      %969 = vadd.xlane.f32.xlu0 %v968
      %v970 = vpop.xlane.xlu0 %969
      %v971 = vmul.f32 %v891, %v891
      %v972 = vmul.f32 %v892, %v892
      %v973 = vmul.f32 %v893, %v893
      %v974 = vmul.f32 %v894, %v894
      %v975 = vmul.f32 %v895, %v895
      %v976 = vmul.f32 %v896, %v896
      %v977 = vmul.f32 %v897, %v897
      %v978 = vmul.f32 %v898, %v898
      %v979 = vmul.f32 %v899, %v899
      %v980 = vmul.f32 %v900, %v900
      %v981 = vmul.f32 %v901, %v901
      %v982 = vmul.f32 %v902, %v902
      %v983 = vmul.f32 %v903, %v903
      %v984 = vmul.f32 %v904, %v904
      %v985 = vmul.f32 %v905, %v905
      %v986 = vmul.f32 %v906, %v906
      %v987 = vmul.f32 %v907, %v907
      %v988 = vmul.f32 %v908, %v908
      %v989 = vmul.f32 %v909, %v909
      %v990 = vmul.f32 %v910, %v910
      %v991 = vmul.f32 %v911, %v911
      %v992 = vmul.f32 %v912, %v912
      %v993 = vmul.f32 %v913, %v913
      %v994 = vmul.f32 %v914, %v914
      %v995 = vmul.f32 %v915, %v915
      %v996 = vmul.f32 %v916, %v916
      %v997 = vmul.f32 %v917, %v917
      %v998 = vmul.f32 %v918, %v918
      %v999 = vmul.f32 %v919, %v919
      %v1000 = vmul.f32 %v920, %v920
      %v1001 = vmul.f32 %v921, %v921
      %v1002 = vmul.f32 %v922, %v922
      %v1003 = vadd.f32 %v971, %v972
      %1004 = vadd.xlane.f32.xlu0 %v1003
      %v1005 = vpop.xlane.xlu0 %1004
      %v1006 = vadd.f32 %v973, %v974
      %1007 = vadd.xlane.f32.xlu0 %v1006
      %v1008 = vpop.xlane.xlu0 %1007
      %v1009 = vadd.f32 %v975, %v976
      %1010 = vadd.xlane.f32.xlu0 %v1009
      %v1011 = vpop.xlane.xlu0 %1010
      %v1012 = vadd.f32 %v977, %v978
      %1013 = vadd.xlane.f32.xlu0 %v1012
      %v1014 = vpop.xlane.xlu0 %1013
      %v1015 = vadd.f32 %v979, %v980
      %1016 = vadd.xlane.f32.xlu0 %v1015
      %v1017 = vpop.xlane.xlu0 %1016
      %v1018 = vadd.f32 %v981, %v982
      %1019 = vadd.xlane.f32.xlu0 %v1018
      %v1020 = vpop.xlane.xlu0 %1019
      %v1021 = vadd.f32 %v983, %v984
      %1022 = vadd.xlane.f32.xlu0 %v1021
      %v1023 = vpop.xlane.xlu0 %1022
      %v1024 = vadd.f32 %v985, %v986
      %1025 = vadd.xlane.f32.xlu0 %v1024
      %v1026 = vpop.xlane.xlu0 %1025
      %v1027 = vadd.f32 %v987, %v988
      %1028 = vadd.xlane.f32.xlu0 %v1027
      %v1029 = vpop.xlane.xlu0 %1028
      %v1030 = vadd.f32 %v989, %v990
      %1031 = vadd.xlane.f32.xlu0 %v1030
      %v1032 = vpop.xlane.xlu0 %1031
      %v1033 = vadd.f32 %v991, %v992
      %1034 = vadd.xlane.f32.xlu0 %v1033
      %v1035 = vpop.xlane.xlu0 %1034
      %v1036 = vadd.f32 %v993, %v994
      %1037 = vadd.xlane.f32.xlu0 %v1036
      %v1038 = vpop.xlane.xlu0 %1037
      %v1039 = vadd.f32 %v995, %v996
      %1040 = vadd.xlane.f32.xlu0 %v1039
      %v1041 = vpop.xlane.xlu0 %1040
      %v1042 = vadd.f32 %v997, %v998
      %1043 = vadd.xlane.f32.xlu0 %v1042
      %v1044 = vpop.xlane.xlu0 %1043
      %v1045 = vadd.f32 %v999, %v1000
      %1046 = vadd.xlane.f32.xlu0 %v1045
      %v1047 = vpop.xlane.xlu0 %1046
      %v1048 = vadd.f32 %v1001, %v1002
      %1049 = vadd.xlane.f32.xlu0 %v1048
      %v1050 = vpop.xlane.xlu0 %1049
      %vm1051 = vcmask 7168
      %v1052 = vsel %vm1051, %v925, %v1005
      %v1053 = vsel %vm1051, %v928, %v1008
      %v1054 = vsel %vm1051, %v931, %v1011
      %v1055 = vsel %vm1051, %v934, %v1014
      %v1056 = vsel %vm1051, %v937, %v1017
      %v1057 = vsel %vm1051, %v940, %v1020
      %v1058 = vsel %vm1051, %v943, %v1023
      %v1059 = vsel %vm1051, %v946, %v1026
      %v1060 = vsel %vm1051, %v949, %v1029
      %v1061 = vsel %vm1051, %v952, %v1032
      %v1062 = vsel %vm1051, %v955, %v1035
      %v1063 = vsel %vm1051, %v958, %v1038
      %v1064 = vsel %vm1051, %v961, %v1041
      %v1065 = vsel %vm1051, %v964, %v1044
      %v1066 = vsel %vm1051, %v967, %v1047
      %v1067 = vsel %vm1051, %v970, %v1050
      %vm1068 = vcmask 15360
      %1069 = vst.msk [vmem:[%s208] sm:$0xff] %vm1068, %v1052
      %1070 = vst.msk [vmem:[%s208 + $0x8] sm:$0xff] %vm1068, %v1053
      %1071 = vst.msk [vmem:[%s208 + $0x10] sm:$0xff] %vm1068, %v1054
      %1072 = vst.msk [vmem:[%s208 + $0x18] sm:$0xff] %vm1068, %v1055
      %1073 = vst.msk [vmem:[%s208 + $0x20] sm:$0xff] %vm1068, %v1056
      %1074 = vst.msk [vmem:[%s208 + $0x28] sm:$0xff] %vm1068, %v1057
      %1075 = vst.msk [vmem:[%s208 + $0x30] sm:$0xff] %vm1068, %v1058
      %1076 = vst.msk [vmem:[%s208 + $0x38] sm:$0xff] %vm1068, %v1059
      %1077 = vst.msk [vmem:[%s208 + $0x40] sm:$0xff] %vm1068, %v1060
      %1078 = vst.msk [vmem:[%s208 + $0x48] sm:$0xff] %vm1068, %v1061
      %1079 = vst.msk [vmem:[%s208 + $0x50] sm:$0xff] %vm1068, %v1062
      %1080 = vst.msk [vmem:[%s208 + $0x58] sm:$0xff] %vm1068, %v1063
      %1081 = vst.msk [vmem:[%s208 + $0x60] sm:$0xff] %vm1068, %v1064
      %1082 = vst.msk [vmem:[%s208 + $0x68] sm:$0xff] %vm1068, %v1065
      %1083 = vst.msk [vmem:[%s208 + $0x70] sm:$0xff] %vm1068, %v1066
      %1084 = vst.msk [vmem:[%s208 + $0x78] sm:$0xff] %vm1068, %v1067
      %p1085 = scmp.lt.s32.totalorder %s18, 1
      %s1086 = scalar_select %p1085, %s18, 1
      %p1087 = scmp.lt.s32.totalorder %s19, 0
      %s1088 = scalar_select %p1087, %s19, 0
      %s1089 = smul.addr %s1088, 16
      %s1090 = smul.addr %s1086, 16
      %s1091 = sadd.s32 %s1089, %s1090
      %s1092 = smul.addr %s1091, 8
      %s1093 = scalar_lea.vmem %s3, %s1092
      // Predicated region
      $region33: #{arnet_forward.3} parent=31 // pred_check
        %p1094 = pneg %p116
      $region34: #{arnet_forward.3} parent=31 // pred_check_branch
        %1096 = sbr.rel (%p1094) target = $region36
      $region35: #{arnet_forward.3} parent=31 // pred_region
        _
      $region36: #{arnet_forward.3} parent=31 // pred_fallthru
        _
    $region32: #{arnet_forward.3} parent=5 // pred_fallthru
      _
    %p1097 = scmp.le.s32.totalorder 2, %s9
    // Predicated region
    $region37: #{arnet_forward.3} parent=5 // pred_check
      %p1098 = pneg %p1097
    $region38: #{arnet_forward.3} parent=5 // pred_check_branch
      %1100 = sbr.rel (%p1098) target = $region40
    $region39: #{arnet_forward.3} parent=5 // pred_region
      %s1101 = ssub.s32 %s9, 2
      // Predicated region
      $region41: #{arnet_forward.3} parent=39 // pred_check
        %p1102 = pneg %p122
      $region42: #{arnet_forward.3} parent=39 // pred_check_branch
        %1104 = sbr.rel (%p1102) target = $region44
      $region43: #{arnet_forward.3} parent=39 // pred_region
        %p1105 = scmp.lt.s32.totalorder %s20, 1
        %s1106 = scalar_select %p1105, %s20, 1
        %p1107 = scmp.lt.s32.totalorder %s21, 0
        %s1108 = scalar_select %p1107, %s21, 0
        %s1109 = smul.addr %s1108, 16
        %s1110 = smul.addr %s1106, 16
        %s1111 = sadd.s32 %s1109, %s1110
        %s1112 = smul.addr %s1111, 8
        %s1113 = scalar_lea.vmem %s3, %s1112
      $region44: #{arnet_forward.3} parent=39 // pred_fallthru
        _
    $region40: #{arnet_forward.3} parent=5 // pred_fallthru
      _
  $region6: #{arnet_forward.3} parent=0 // loop_footer
    %s13 = sadd.s32 1, %s9
  $region7: #{arnet_forward.3} parent=0 // loop_footer_branch
    %8 = sbr.rel target = $region3
  $region8: #{arnet_forward.3} parent=0 // loop_exit
    _

// kernel: arnet_forward.4
$region0: #{arnet_forward.4}
  #allocation0 [shape = 'u32[]', space=smem, size = 0x4, offset = 0x4, fixed_abs, tag = 'smem constant byte address 0x4 - core index']
  #allocation1 [shape = 'u32[144,128]{1,0:T(1,128)}', space=vmem, size = 0x12000, scoped, tag = 'internal scratch']
  %s0 = inlined_call_operand.vmem [shape: f32[2,4,256], index: 0, kind: input, shape index: {}]
  %s1 = inlined_call_operand.vmem [shape: f32[128,4], index: 1, kind: input, shape index: {}]
  %s2 = inlined_call_operand.vmem [shape: f32[128,1], index: 2, kind: input, shape index: {}]
  %s3 = inlined_call_operand.vmem [shape: f32[128,2], index: 3, kind: input, shape index: {}]
  %s4 = inlined_call_operand.vmem [shape: bf16[128,128], index: 4, kind: input, shape index: {}]
  %s5 = inlined_call_operand.vmem [shape: f32[128,1], index: 5, kind: input, shape index: {}]
  %s6 = inlined_call_operand.vmem [shape: f32[2,1,128,2], index: 6, kind: output, shape index: {}]
  %s7 = sld [smem:[#allocation0]]
  $region57: #{arnet_forward.4} parent=0
    _
  %s9 = ssub.s32 1, %s7
  %s10 = scalar_select 0, %s9, %s7
  loop: start=0, step=1, limit=4
  $region2: #{arnet_forward.4} parent=0 // loop_pre_header
    _
  $region3: #{arnet_forward.4} parent=0 // loop_header
    %s12 = sphi 0, %s16
    %p13 = scmp.ge.s32.totalorder %s12, 4
    %s19 = sphi 0, %s31
    %s20 = sphi 0, %s27
    %s21 = sphi 0, %s19
    %s22 = sphi 0, %s20
    %s23 = sphi 0, %s21
    %s24 = sphi 0, %s22
    %s36 = sphi 0, %s38
    %s39 = sphi 0, %s36
    %s40 = sphi 0, %s39
    %s56 = sphi 0, %s40
    %s60 = sphi 0, %s60
    %s62 = sphi 0, %s60
    %s63 = sphi 0, %s62
    %s77 = sphi 0, %s63
    %s81 = sphi 0, %s81
    %s83 = sphi 0, %s81
    %s84 = sphi 0, %s83
    %s98 = sphi 0, %s84
    %s102 = sphi 0, %s102
    %s104 = sphi 0, %s102
    %s105 = sphi 0, %s104
    %s119 = sphi 0, %s105
    %s123 = sphi 0, %s123
    %s125 = sphi 0, %s123
    %s126 = sphi 0, %s125
    %s140 = sphi 0, %s126
    %s144 = sphi 0, %s144
    %s146 = sphi 0, %s144
    %s147 = sphi 0, %s146
    %s161 = sphi 0, %s147
    %s169 = sphi 0, %s171
    %s172 = sphi 0, %s169
    %s173 = sphi 0, %s172
    %s189 = sphi 0, %s173
  $region4: #{arnet_forward.4} parent=0 // loop_header_branch
    %15 = sbr.rel (%p13) target = $region8
  $region5: #{arnet_forward.4} parent=0 // loop_body
    %s17 = ssub.s32 %s12, 1
    %s18 = ssub.s32 %s12, 2
    %s25 = sadd.s32 1, %s20
    %p26 = scmp.ge.s32.totalorder %s25, 1
    %s27 = scalar_select %p26, 0, %s25
    %s28 = sadd.s32 1, %s19
    %s29 = scalar_select %p26, %s28, %s19
    %p30 = scmp.ge.s32.totalorder %s29, 2
    %s31 = scalar_select %p30, 0, %s29
    %s32 = ssub.s32 %s19, %s31
    %s33 = ssub.s32 %s20, %s27
    %s34 = sor.u32 %s32, %s33
    %p35 = scmp.eq.s32.totalorder %s34, 0
    %s37 = sadd.s32 %s36, 1
    %s38 = scalar_select %p35, %s36, %s37
    %p41 = pneg %p35
    %p42 = scmp.eq.s32.totalorder %s12, 1
    %p43 = por %p41, %p42
    %p44 = scmp.ne.s32.totalorder %s36, %s39
    %p45 = scmp.eq.s32.totalorder %s12, 0
    %p46 = por %p44, %p45
    %p47 = scmp.ne.s32.totalorder %s36, %s39
    %p48 = scmp.eq.s32.totalorder %s17, 1
    %p49 = por %p47, %p48
    %p50 = scmp.ne.s32.totalorder %s39, %s40
    %p51 = scmp.eq.s32.totalorder %s17, 0
    %p52 = por %p50, %p51
    %p53 = scmp.ne.s32.totalorder %s39, %s40
    %p54 = scmp.eq.s32.totalorder %s18, 1
    %p55 = por %p53, %p54
    %p57 = scmp.ne.s32.totalorder %s40, %s56
    %p58 = scmp.eq.s32.totalorder %s18, 0
    %p59 = por %p57, %p58
    %s61 = sadd.s32 %s60, 1
    %p64 = scmp.eq.s32.totalorder %s12, 1
    %p65 = scmp.ne.s32.totalorder %s60, %s62
    %p66 = scmp.eq.s32.totalorder %s12, 0
    %p67 = por %p65, %p66
    %p68 = scmp.ne.s32.totalorder %s60, %s62
    %p69 = scmp.eq.s32.totalorder %s17, 1
    %p70 = por %p68, %p69
    %p71 = scmp.ne.s32.totalorder %s62, %s63
    %p72 = scmp.eq.s32.totalorder %s17, 0
    %p73 = por %p71, %p72
    %p74 = scmp.ne.s32.totalorder %s62, %s63
    %p75 = scmp.eq.s32.totalorder %s18, 1
    %p76 = por %p74, %p75
    %p78 = scmp.ne.s32.totalorder %s63, %s77
    %p79 = scmp.eq.s32.totalorder %s18, 0
    %p80 = por %p78, %p79
    %s82 = sadd.s32 %s81, 1
    %p85 = scmp.eq.s32.totalorder %s12, 1
    %p86 = scmp.ne.s32.totalorder %s81, %s83
    %p87 = scmp.eq.s32.totalorder %s12, 0
    %p88 = por %p86, %p87
    %p89 = scmp.ne.s32.totalorder %s81, %s83
    %p90 = scmp.eq.s32.totalorder %s17, 1
    %p91 = por %p89, %p90
    %p92 = scmp.ne.s32.totalorder %s83, %s84
    %p93 = scmp.eq.s32.totalorder %s17, 0
    %p94 = por %p92, %p93
    %p95 = scmp.ne.s32.totalorder %s83, %s84
    %p96 = scmp.eq.s32.totalorder %s18, 1
    %p97 = por %p95, %p96
    %p99 = scmp.ne.s32.totalorder %s84, %s98
    %p100 = scmp.eq.s32.totalorder %s18, 0
    %p101 = por %p99, %p100
    %s103 = sadd.s32 %s102, 1
    %p106 = scmp.eq.s32.totalorder %s12, 1
    %p107 = scmp.ne.s32.totalorder %s102, %s104
    %p108 = scmp.eq.s32.totalorder %s12, 0
    %p109 = por %p107, %p108
    %p110 = scmp.ne.s32.totalorder %s102, %s104
    %p111 = scmp.eq.s32.totalorder %s17, 1
    %p112 = por %p110, %p111
    %p113 = scmp.ne.s32.totalorder %s104, %s105
    %p114 = scmp.eq.s32.totalorder %s17, 0
    %p115 = por %p113, %p114
    %p116 = scmp.ne.s32.totalorder %s104, %s105
    %p117 = scmp.eq.s32.totalorder %s18, 1
    %p118 = por %p116, %p117
    %p120 = scmp.ne.s32.totalorder %s105, %s119
    %p121 = scmp.eq.s32.totalorder %s18, 0
    %p122 = por %p120, %p121
    %s124 = sadd.s32 %s123, 1
    %p127 = scmp.eq.s32.totalorder %s12, 1
    %p128 = scmp.ne.s32.totalorder %s123, %s125
    %p129 = scmp.eq.s32.totalorder %s12, 0
    %p130 = por %p128, %p129
    %p131 = scmp.ne.s32.totalorder %s123, %s125
    %p132 = scmp.eq.s32.totalorder %s17, 1
    %p133 = por %p131, %p132
    %p134 = scmp.ne.s32.totalorder %s125, %s126
    %p135 = scmp.eq.s32.totalorder %s17, 0
    %p136 = por %p134, %p135
    %p137 = scmp.ne.s32.totalorder %s125, %s126
    %p138 = scmp.eq.s32.totalorder %s18, 1
    %p139 = por %p137, %p138
    %p141 = scmp.ne.s32.totalorder %s126, %s140
    %p142 = scmp.eq.s32.totalorder %s18, 0
    %p143 = por %p141, %p142
    %s145 = sadd.s32 %s144, 1
    %p148 = scmp.eq.s32.totalorder %s12, 1
    %p149 = scmp.ne.s32.totalorder %s144, %s146
    %p150 = scmp.eq.s32.totalorder %s12, 0
    %p151 = por %p149, %p150
    %p152 = scmp.ne.s32.totalorder %s144, %s146
    %p153 = scmp.eq.s32.totalorder %s17, 1
    %p154 = por %p152, %p153
    %p155 = scmp.ne.s32.totalorder %s146, %s147
    %p156 = scmp.eq.s32.totalorder %s17, 0
    %p157 = por %p155, %p156
    %p158 = scmp.ne.s32.totalorder %s146, %s147
    %p159 = scmp.eq.s32.totalorder %s18, 1
    %p160 = por %p158, %p159
    %p162 = scmp.ne.s32.totalorder %s147, %s161
    %p163 = scmp.eq.s32.totalorder %s18, 0
    %p164 = por %p162, %p163
    %s165 = ssub.s32 %s19, %s31
    %s166 = ssub.s32 %s20, %s27
    %s167 = sor.u32 %s165, %s166
    %p168 = scmp.eq.s32.totalorder %s167, 0
    %s170 = sadd.s32 %s169, 1
    %s171 = scalar_select %p168, %s169, %s170
    %p174 = pneg %p168
    %p175 = scmp.eq.s32.totalorder %s12, 1
    %p176 = por %p174, %p175
    %p177 = scmp.ne.s32.totalorder %s169, %s172
    %p178 = scmp.eq.s32.totalorder %s12, 0
    %p179 = por %p177, %p178
    %p180 = scmp.ne.s32.totalorder %s169, %s172
    %p181 = scmp.eq.s32.totalorder %s17, 1
    %p182 = por %p180, %p181
    %p183 = scmp.ne.s32.totalorder %s172, %s173
    %p184 = scmp.eq.s32.totalorder %s17, 0
    %p185 = por %p183, %p184
    %p186 = scmp.ne.s32.totalorder %s172, %s173
    %p187 = scmp.eq.s32.totalorder %s18, 1
    %p188 = por %p186, %p187
    %p190 = scmp.ne.s32.totalorder %s173, %s189
    %p191 = scmp.eq.s32.totalorder %s18, 0
    %p192 = por %p190, %p191
    %p193 = scmp.le.s32.totalorder 1, %s12
    %p194 = scmp.lt.s32.totalorder %s12, 3
    %p195 = pnand %p193, %p194
    %p196 = pneg %p195
    // Predicated region
    $region9: #{arnet_forward.4} parent=5 // pred_check
      _
    $region10: #{arnet_forward.4} parent=5 // pred_check_branch
      %198 = sbr.rel (%p195) target = $region12
    $region11: #{arnet_forward.4} parent=5 // pred_region
      %s199 = ssub.s32 %s12, 1
      // Predicated region
      $region13: #{arnet_forward.4} parent=11 // pred_check
        %p200 = pneg %p73
      $region14: #{arnet_forward.4} parent=11 // pred_check_branch
        %202 = sbr.rel (%p200) target = $region16
      $region15: #{arnet_forward.4} parent=11 // pred_region
        _
      $region16: #{arnet_forward.4} parent=11 // pred_fallthru
        _
      // Predicated region
      $region17: #{arnet_forward.4} parent=11 // pred_check
        %p203 = pneg %p94
      $region18: #{arnet_forward.4} parent=11 // pred_check_branch
        %205 = sbr.rel (%p203) target = $region20
      $region19: #{arnet_forward.4} parent=11 // pred_region
        _
      $region20: #{arnet_forward.4} parent=11 // pred_fallthru
        _
      // Predicated region
      $region21: #{arnet_forward.4} parent=11 // pred_check
        %p206 = pneg %p115
      $region22: #{arnet_forward.4} parent=11 // pred_check_branch
        %208 = sbr.rel (%p206) target = $region24
      $region23: #{arnet_forward.4} parent=11 // pred_region
        _
      $region24: #{arnet_forward.4} parent=11 // pred_fallthru
        _
      // Predicated region
      $region25: #{arnet_forward.4} parent=11 // pred_check
        %p209 = pneg %p136
      $region26: #{arnet_forward.4} parent=11 // pred_check_branch
        %211 = sbr.rel (%p209) target = $region28
      $region27: #{arnet_forward.4} parent=11 // pred_region
        _
      $region28: #{arnet_forward.4} parent=11 // pred_fallthru
        _
      // Predicated region
      $region29: #{arnet_forward.4} parent=11 // pred_check
        %p212 = pneg %p157
      $region30: #{arnet_forward.4} parent=11 // pred_check_branch
        %214 = sbr.rel (%p212) target = $region32
      $region31: #{arnet_forward.4} parent=11 // pred_region
        _
      $region32: #{arnet_forward.4} parent=11 // pred_fallthru
        _
    $region12: #{arnet_forward.4} parent=5 // pred_fallthru
      _
    %p215 = scmp.lt.s32.totalorder %s12, 2
    // Predicated region
    $region33: #{arnet_forward.4} parent=5 // pred_check
      %p216 = pneg %p215
    $region34: #{arnet_forward.4} parent=5 // pred_check_branch
      %218 = sbr.rel (%p216) target = $region36
    $region35: #{arnet_forward.4} parent=5 // pred_region
      // Predicated region
      $region37: #{arnet_forward.4} parent=35 // pred_check
        %p219 = pneg %p46
      $region38: #{arnet_forward.4} parent=35 // pred_check_branch
        %221 = sbr.rel (%p219) target = $region40
      $region39: #{arnet_forward.4} parent=35 // pred_region
        %s222 = smul.u32 2, %s20
        %p223 = scmp.lt.s32.totalorder %s19, 1
        %s224 = scalar_select %p223, %s19, 1
        %p225 = scmp.lt.s32.totalorder %s222, 1
        %s226 = scalar_select %p225, %s222, 1
        %s227 = smul.addr %s224, 2
        %s228 = sadd.s32 %s226, %s227
        %s229 = smul.addr %s228, 4
        %s230 = scalar_lea.vmem %s0, %s229
        %s231 = smul.u32 2, %s20
      $region40: #{arnet_forward.4} parent=35 // pred_fallthru
        _
    $region36: #{arnet_forward.4} parent=5 // pred_fallthru
      _
    %p232 = scmp.le.s32.totalorder 1, %s12
    %p233 = scmp.lt.s32.totalorder %s12, 3
    %p234 = pnand %p232, %p233
    %p235 = pneg %p234
    // Predicated region
    $region41: #{arnet_forward.4} parent=5 // pred_check
      _
    $region42: #{arnet_forward.4} parent=5 // pred_check_branch
      %237 = sbr.rel (%p234) target = $region44
    $region43: #{arnet_forward.4} parent=5 // pred_region
      %s238 = ssub.s32 %s12, 1
      %s239 = smul.u32 2, %s22
      %p240 = scmp.lt.s32.totalorder %s21, 1
      %s241 = scalar_select %p240, %s21, 1
      %p242 = scmp.lt.s32.totalorder %s239, 1
      %s243 = scalar_select %p242, %s239, 1
      %s244 = smul.addr %s241, 2
      %s245 = sadd.s32 %s243, %s244
      %s246 = smul.addr %s245, 4
      %s247 = scalar_lea.vmem %s0, %s246
      %p248 = pneg %p52
      %p249 = pneg %p49
      %p250 = pneg %p73
      %p251 = pneg %p70
      %p252 = pneg %p94
      %p253 = pneg %p91
      %p254 = pneg %p115
      %p255 = pneg %p112
      %p256 = pneg %p136
      %p257 = pneg %p133
      %p258 = pneg %p157
      %p259 = pneg %p154
      %p260 = pneg %p185
      %p261 = pneg %p182
      %p262 = scmp.lt.s32.totalorder %s21, 1
      %s263 = scalar_select %p262, %s21, 1
      %p264 = scmp.lt.s32.totalorder %s22, 0
      %s265 = scalar_select %p264, %s22, 0
      %s266 = smul.addr %s265, 16
      %s267 = smul.addr %s263, 16
      %s268 = sadd.s32 %s266, %s267
      %s269 = smul.addr %s268, 8
      %s270 = scalar_lea.vmem %s6, %s269
      %s271 = smul.u32 2, %s22
      %p272 = scmp.lt.s32.totalorder %s21, 1
      %s273 = scalar_select %p272, %s21, 1
      %p274 = scmp.lt.s32.totalorder %s271, 1
      %s275 = scalar_select %p274, %s271, 1
      %s276 = smul.addr %s273, 2
      %s277 = sadd.s32 %s275, %s276
      %s278 = smul.addr %s277, 4
      %s279 = scalar_lea.vmem %s0, %s278
      %s280 = smul.u32 2, %s22
      %p281 = scmp.lt.s32.totalorder %s21, 1
      %s282 = scalar_select %p281, %s21, 1
      %p283 = scmp.lt.s32.totalorder %s22, 0
      %s284 = scalar_select %p283, %s22, 0
      %s285 = smul.addr %s284, 16
      %s286 = smul.addr %s282, 16
      %s287 = sadd.s32 %s285, %s286
      %s288 = smul.addr %s287, 8
      %s289 = scalar_lea.vmem %s6, %s288
      %v291 = vld [vmem:[%s279] sm:$0xff]
      %v292 = vld [vmem:[%s1] sm:$0xff]
      %v293 = vld [vmem:[%s1 + $0x8] sm:$0xff]
      %v294 = vld [vmem:[%s1 + $0x10] sm:$0xff]
      %v295 = vld [vmem:[%s1 + $0x18] sm:$0xff]
      %v296 = vld [vmem:[%s1 + $0x20] sm:$0xff]
      %v297 = vld [vmem:[%s1 + $0x28] sm:$0xff]
      %v298 = vld [vmem:[%s1 + $0x30] sm:$0xff]
      %v299 = vld [vmem:[%s1 + $0x38] sm:$0xff]
      %v300 = vld [vmem:[%s1 + $0x40] sm:$0xff]
      %v301 = vld [vmem:[%s1 + $0x48] sm:$0xff]
      %v302 = vld [vmem:[%s1 + $0x50] sm:$0xff]
      %v303 = vld [vmem:[%s1 + $0x58] sm:$0xff]
      %v304 = vld [vmem:[%s1 + $0x60] sm:$0xff]
      %v305 = vld [vmem:[%s1 + $0x68] sm:$0xff]
      %v306 = vld [vmem:[%s1 + $0x70] sm:$0xff]
      %v307 = vld [vmem:[%s1 + $0x78] sm:$0xff]
      %v308 = vld [vmem:[%s2] sm:$0xff]
      %v309 = vld [vmem:[%s2 + $0x8] sm:$0xff]
      %v310 = vld [vmem:[%s2 + $0x10] sm:$0xff]
      %v311 = vld [vmem:[%s2 + $0x18] sm:$0xff]
      %v312 = vld [vmem:[%s2 + $0x20] sm:$0xff]
      %v313 = vld [vmem:[%s2 + $0x28] sm:$0xff]
      %v314 = vld [vmem:[%s2 + $0x30] sm:$0xff]
      %v315 = vld [vmem:[%s2 + $0x38] sm:$0xff]
      %v316 = vld [vmem:[%s2 + $0x40] sm:$0xff]
      %v317 = vld [vmem:[%s2 + $0x48] sm:$0xff]
      %v318 = vld [vmem:[%s2 + $0x50] sm:$0xff]
      %v319 = vld [vmem:[%s2 + $0x58] sm:$0xff]
      %v320 = vld [vmem:[%s2 + $0x60] sm:$0xff]
      %v321 = vld [vmem:[%s2 + $0x68] sm:$0xff]
      %v322 = vld [vmem:[%s2 + $0x70] sm:$0xff]
      %v323 = vld [vmem:[%s2 + $0x78] sm:$0xff]
      %325 = vset.pattern.permute.xlu0 0
      %326 = vperm.xlu0 %325, %v308
      %v327 = vpop.permute.xlu0 %326
      %330 = vset.pattern.permute.xlu0 0
      %331 = vperm.xlu0 %330, %v309
      %v332 = vpop.permute.xlu0 %331
      %335 = vset.pattern.permute.xlu0 0
      %336 = vperm.xlu0 %335, %v310
      %v337 = vpop.permute.xlu0 %336
      %340 = vset.pattern.permute.xlu0 0
      %341 = vperm.xlu0 %340, %v311
      %v342 = vpop.permute.xlu0 %341
      %345 = vset.pattern.permute.xlu0 0
      %346 = vperm.xlu0 %345, %v312
      %v347 = vpop.permute.xlu0 %346
      %350 = vset.pattern.permute.xlu0 0
      %351 = vperm.xlu0 %350, %v313
      %v352 = vpop.permute.xlu0 %351
      %355 = vset.pattern.permute.xlu0 0
      %356 = vperm.xlu0 %355, %v314
      %v357 = vpop.permute.xlu0 %356
      %360 = vset.pattern.permute.xlu0 0
      %361 = vperm.xlu0 %360, %v315
      %v362 = vpop.permute.xlu0 %361
      %365 = vset.pattern.permute.xlu0 0
      %366 = vperm.xlu0 %365, %v316
      %v367 = vpop.permute.xlu0 %366
      %370 = vset.pattern.permute.xlu0 0
      %371 = vperm.xlu0 %370, %v317
      %v372 = vpop.permute.xlu0 %371
      %375 = vset.pattern.permute.xlu0 0
      %376 = vperm.xlu0 %375, %v318
      %v377 = vpop.permute.xlu0 %376
      %380 = vset.pattern.permute.xlu0 0
      %381 = vperm.xlu0 %380, %v319
      %v382 = vpop.permute.xlu0 %381
      %385 = vset.pattern.permute.xlu0 0
      %386 = vperm.xlu0 %385, %v320
      %v387 = vpop.permute.xlu0 %386
      %390 = vset.pattern.permute.xlu0 0
      %391 = vperm.xlu0 %390, %v321
      %v392 = vpop.permute.xlu0 %391
      %395 = vset.pattern.permute.xlu0 0
      %396 = vperm.xlu0 %395, %v322
      %v397 = vpop.permute.xlu0 %396
      %400 = vset.pattern.permute.xlu0 0
      %401 = vperm.xlu0 %400, %v323
      %v402 = vpop.permute.xlu0 %401
      %405 = vset.pattern.permute.xlu0 0
      %406 = vperm.xlu0 %405, %v292
      %v407 = vpop.permute.xlu0 %406
      %410 = vset.pattern.permute.xlu0 0
      %411 = vperm.xlu0 %410, %v293
      %v412 = vpop.permute.xlu0 %411
      %415 = vset.pattern.permute.xlu0 0
      %416 = vperm.xlu0 %415, %v294
      %v417 = vpop.permute.xlu0 %416
      %420 = vset.pattern.permute.xlu0 0
      %421 = vperm.xlu0 %420, %v295
      %v422 = vpop.permute.xlu0 %421
      %425 = vset.pattern.permute.xlu0 0
      %426 = vperm.xlu0 %425, %v296
      %v427 = vpop.permute.xlu0 %426
      %430 = vset.pattern.permute.xlu0 0
      %431 = vperm.xlu0 %430, %v297
      %v432 = vpop.permute.xlu0 %431
      %435 = vset.pattern.permute.xlu0 0
      %436 = vperm.xlu0 %435, %v298
      %v437 = vpop.permute.xlu0 %436
      %440 = vset.pattern.permute.xlu0 0
      %441 = vperm.xlu0 %440, %v299
      %v442 = vpop.permute.xlu0 %441
      %445 = vset.pattern.permute.xlu0 0
      %446 = vperm.xlu0 %445, %v300
      %v447 = vpop.permute.xlu0 %446
      %450 = vset.pattern.permute.xlu0 0
      %451 = vperm.xlu0 %450, %v301
      %v452 = vpop.permute.xlu0 %451
      %455 = vset.pattern.permute.xlu0 0
      %456 = vperm.xlu0 %455, %v302
      %v457 = vpop.permute.xlu0 %456
      %460 = vset.pattern.permute.xlu0 0
      %461 = vperm.xlu0 %460, %v303
      %v462 = vpop.permute.xlu0 %461
      %465 = vset.pattern.permute.xlu0 0
      %466 = vperm.xlu0 %465, %v304
      %v467 = vpop.permute.xlu0 %466
      %470 = vset.pattern.permute.xlu0 0
      %471 = vperm.xlu0 %470, %v305
      %v472 = vpop.permute.xlu0 %471
      %475 = vset.pattern.permute.xlu0 0
      %476 = vperm.xlu0 %475, %v306
      %v477 = vpop.permute.xlu0 %476
      %480 = vset.pattern.permute.xlu0 0
      %481 = vperm.xlu0 %480, %v307
      %v482 = vpop.permute.xlu0 %481
      %v485 = vlaneseq
      %v486 = vshrl.u32 %v485, 7
      %v487 = vsub.s32 0, %v486
      %v488 = vrot.slane %v291, %v487
      %v489 = vlaneseq
      %v490 = vshrl.u32 %v489, 7
      %v491 = vsub.s32 4, %v490
      %v492 = vrot.slane %v291, %v491
      %v495 = vlaneseq
      %v496 = vshrl.u32 %v495, 7
      %v497 = vsub.s32 0, %v496
      %v498 = vrot.slane %v488, %v497
      %v499 = vlaneseq
      %v500 = vshrl.u32 %v499, 7
      %v501 = vsub.s32 0, %v500
      %v502 = vrot.slane %v492, %v501
      %v503 = vmul.f32 %v407, %v498
      %v504 = vmul.f32 %v407, %v502
      %v505 = vmul.f32 %v412, %v498
      %v506 = vmul.f32 %v412, %v502
      %v507 = vmul.f32 %v417, %v498
      %v508 = vmul.f32 %v417, %v502
      %v509 = vmul.f32 %v422, %v498
      %v510 = vmul.f32 %v422, %v502
      %v511 = vmul.f32 %v427, %v498
      %v512 = vmul.f32 %v427, %v502
      %v513 = vmul.f32 %v432, %v498
      %v514 = vmul.f32 %v432, %v502
      %v515 = vmul.f32 %v437, %v498
      %v516 = vmul.f32 %v437, %v502
      %v517 = vmul.f32 %v442, %v498
      %v518 = vmul.f32 %v442, %v502
      %v519 = vmul.f32 %v447, %v498
      %v520 = vmul.f32 %v447, %v502
      %v521 = vmul.f32 %v452, %v498
      %v522 = vmul.f32 %v452, %v502
      %v523 = vmul.f32 %v457, %v498
      %v524 = vmul.f32 %v457, %v502
      %v525 = vmul.f32 %v462, %v498
      %v526 = vmul.f32 %v462, %v502
      %v527 = vmul.f32 %v467, %v498
      %v528 = vmul.f32 %v467, %v502
      %v529 = vmul.f32 %v472, %v498
      %v530 = vmul.f32 %v472, %v502
      %v531 = vmul.f32 %v477, %v498
      %v532 = vmul.f32 %v477, %v502
      %v533 = vmul.f32 %v482, %v498
      %v534 = vmul.f32 %v482, %v502
      %v535 = vadd.f32 %v327, %v503
      %v536 = vadd.f32 %v327, %v504
      %v537 = vadd.f32 %v332, %v505
      %v538 = vadd.f32 %v332, %v506
      %v539 = vadd.f32 %v337, %v507
      %v540 = vadd.f32 %v337, %v508
      %v541 = vadd.f32 %v342, %v509
      %v542 = vadd.f32 %v342, %v510
      %v543 = vadd.f32 %v347, %v511
      %v544 = vadd.f32 %v347, %v512
      %v545 = vadd.f32 %v352, %v513
      %v546 = vadd.f32 %v352, %v514
      %v547 = vadd.f32 %v357, %v515
      %v548 = vadd.f32 %v357, %v516
      %v549 = vadd.f32 %v362, %v517
      %v550 = vadd.f32 %v362, %v518
      %v551 = vadd.f32 %v367, %v519
      %v552 = vadd.f32 %v367, %v520
      %v553 = vadd.f32 %v372, %v521
      %v554 = vadd.f32 %v372, %v522
      %v555 = vadd.f32 %v377, %v523
      %v556 = vadd.f32 %v377, %v524
      %v557 = vadd.f32 %v382, %v525
      %v558 = vadd.f32 %v382, %v526
      %v559 = vadd.f32 %v387, %v527
      %v560 = vadd.f32 %v387, %v528
      %v561 = vadd.f32 %v392, %v529
      %v562 = vadd.f32 %v392, %v530
      %v563 = vadd.f32 %v397, %v531
      %v564 = vadd.f32 %v397, %v532
      %v565 = vadd.f32 %v402, %v533
      %v566 = vadd.f32 %v402, %v534
      %567 = vset.pattern.permute.xlu0 1
      %568 = vperm.xlu0 %567, %v292
      %v569 = vpop.permute.xlu0 %568
      %571 = vset.pattern.permute.xlu0 1
      %572 = vperm.xlu0 %571, %v293
      %v573 = vpop.permute.xlu0 %572
      %575 = vset.pattern.permute.xlu0 1
      %576 = vperm.xlu0 %575, %v294
      %v577 = vpop.permute.xlu0 %576
      %579 = vset.pattern.permute.xlu0 1
      %580 = vperm.xlu0 %579, %v295
      %v581 = vpop.permute.xlu0 %580
      %583 = vset.pattern.permute.xlu0 1
      %584 = vperm.xlu0 %583, %v296
      %v585 = vpop.permute.xlu0 %584
      %587 = vset.pattern.permute.xlu0 1
      %588 = vperm.xlu0 %587, %v297
      %v589 = vpop.permute.xlu0 %588
      %591 = vset.pattern.permute.xlu0 1
      %592 = vperm.xlu0 %591, %v298
      %v593 = vpop.permute.xlu0 %592
      %595 = vset.pattern.permute.xlu0 1
      %596 = vperm.xlu0 %595, %v299
      %v597 = vpop.permute.xlu0 %596
      %599 = vset.pattern.permute.xlu0 1
      %600 = vperm.xlu0 %599, %v300
      %v601 = vpop.permute.xlu0 %600
      %603 = vset.pattern.permute.xlu0 1
      %604 = vperm.xlu0 %603, %v301
      %v605 = vpop.permute.xlu0 %604
      %607 = vset.pattern.permute.xlu0 1
      %608 = vperm.xlu0 %607, %v302
      %v609 = vpop.permute.xlu0 %608
      %611 = vset.pattern.permute.xlu0 1
      %612 = vperm.xlu0 %611, %v303
      %v613 = vpop.permute.xlu0 %612
      %615 = vset.pattern.permute.xlu0 1
      %616 = vperm.xlu0 %615, %v304
      %v617 = vpop.permute.xlu0 %616
      %619 = vset.pattern.permute.xlu0 1
      %620 = vperm.xlu0 %619, %v305
      %v621 = vpop.permute.xlu0 %620
      %623 = vset.pattern.permute.xlu0 1
      %624 = vperm.xlu0 %623, %v306
      %v625 = vpop.permute.xlu0 %624
      %627 = vset.pattern.permute.xlu0 1
      %628 = vperm.xlu0 %627, %v307
      %v629 = vpop.permute.xlu0 %628
      %v631 = vlaneseq
      %v632 = vshrl.u32 %v631, 7
      %v633 = vsub.s32 1, %v632
      %v634 = vrot.slane %v291, %v633
      %v635 = vlaneseq
      %v636 = vshrl.u32 %v635, 7
      %v637 = vsub.s32 5, %v636
      %v638 = vrot.slane %v291, %v637
      %v641 = vlaneseq
      %v642 = vshrl.u32 %v641, 7
      %v643 = vsub.s32 1, %v642
      %v644 = vrot.slane %v634, %v643
      %v645 = vlaneseq
      %v646 = vshrl.u32 %v645, 7
      %v647 = vsub.s32 1, %v646
      %v648 = vrot.slane %v638, %v647
      %v649 = vmul.f32 %v569, %v644
      %v650 = vmul.f32 %v569, %v648
      %v651 = vmul.f32 %v573, %v644
      %v652 = vmul.f32 %v573, %v648
      %v653 = vmul.f32 %v577, %v644
      %v654 = vmul.f32 %v577, %v648
      %v655 = vmul.f32 %v581, %v644
      %v656 = vmul.f32 %v581, %v648
      %v657 = vmul.f32 %v585, %v644
      %v658 = vmul.f32 %v585, %v648
      %v659 = vmul.f32 %v589, %v644
      %v660 = vmul.f32 %v589, %v648
      %v661 = vmul.f32 %v593, %v644
      %v662 = vmul.f32 %v593, %v648
      %v663 = vmul.f32 %v597, %v644
      %v664 = vmul.f32 %v597, %v648
      %v665 = vmul.f32 %v601, %v644
      %v666 = vmul.f32 %v601, %v648
      %v667 = vmul.f32 %v605, %v644
      %v668 = vmul.f32 %v605, %v648
      %v669 = vmul.f32 %v609, %v644
      %v670 = vmul.f32 %v609, %v648
      %v671 = vmul.f32 %v613, %v644
      %v672 = vmul.f32 %v613, %v648
      %v673 = vmul.f32 %v617, %v644
      %v674 = vmul.f32 %v617, %v648
      %v675 = vmul.f32 %v621, %v644
      %v676 = vmul.f32 %v621, %v648
      %v677 = vmul.f32 %v625, %v644
      %v678 = vmul.f32 %v625, %v648
      %v679 = vmul.f32 %v629, %v644
      %v680 = vmul.f32 %v629, %v648
      %v681 = vadd.f32 %v535, %v649
      %v682 = vadd.f32 %v536, %v650
      %v683 = vadd.f32 %v537, %v651
      %v684 = vadd.f32 %v538, %v652
      %v685 = vadd.f32 %v539, %v653
      %v686 = vadd.f32 %v540, %v654
      %v687 = vadd.f32 %v541, %v655
      %v688 = vadd.f32 %v542, %v656
      %v689 = vadd.f32 %v543, %v657
      %v690 = vadd.f32 %v544, %v658
      %v691 = vadd.f32 %v545, %v659
      %v692 = vadd.f32 %v546, %v660
      %v693 = vadd.f32 %v547, %v661
      %v694 = vadd.f32 %v548, %v662
      %v695 = vadd.f32 %v549, %v663
      %v696 = vadd.f32 %v550, %v664
      %v697 = vadd.f32 %v551, %v665
      %v698 = vadd.f32 %v552, %v666
      %v699 = vadd.f32 %v553, %v667
      %v700 = vadd.f32 %v554, %v668
      %v701 = vadd.f32 %v555, %v669
      %v702 = vadd.f32 %v556, %v670
      %v703 = vadd.f32 %v557, %v671
      %v704 = vadd.f32 %v558, %v672
      %v705 = vadd.f32 %v559, %v673
      %v706 = vadd.f32 %v560, %v674
      %v707 = vadd.f32 %v561, %v675
      %v708 = vadd.f32 %v562, %v676
      %v709 = vadd.f32 %v563, %v677
      %v710 = vadd.f32 %v564, %v678
      %v711 = vadd.f32 %v565, %v679
      %v712 = vadd.f32 %v566, %v680
      %713 = vset.pattern.permute.xlu0 2
      %714 = vperm.xlu0 %713, %v292
      %v715 = vpop.permute.xlu0 %714
      %717 = vset.pattern.permute.xlu0 2
      %718 = vperm.xlu0 %717, %v293
      %v719 = vpop.permute.xlu0 %718
      %721 = vset.pattern.permute.xlu0 2
      %722 = vperm.xlu0 %721, %v294
      %v723 = vpop.permute.xlu0 %722
      %725 = vset.pattern.permute.xlu0 2
      %726 = vperm.xlu0 %725, %v295
      %v727 = vpop.permute.xlu0 %726
      %729 = vset.pattern.permute.xlu0 2
      %730 = vperm.xlu0 %729, %v296
      %v731 = vpop.permute.xlu0 %730
      %733 = vset.pattern.permute.xlu0 2
      %734 = vperm.xlu0 %733, %v297
      %v735 = vpop.permute.xlu0 %734
      %737 = vset.pattern.permute.xlu0 2
      %738 = vperm.xlu0 %737, %v298
      %v739 = vpop.permute.xlu0 %738
      %741 = vset.pattern.permute.xlu0 2
      %742 = vperm.xlu0 %741, %v299
      %v743 = vpop.permute.xlu0 %742
      %745 = vset.pattern.permute.xlu0 2
      %746 = vperm.xlu0 %745, %v300
      %v747 = vpop.permute.xlu0 %746
      %749 = vset.pattern.permute.xlu0 2
      %750 = vperm.xlu0 %749, %v301
      %v751 = vpop.permute.xlu0 %750
      %753 = vset.pattern.permute.xlu0 2
      %754 = vperm.xlu0 %753, %v302
      %v755 = vpop.permute.xlu0 %754
      %757 = vset.pattern.permute.xlu0 2
      %758 = vperm.xlu0 %757, %v303
      %v759 = vpop.permute.xlu0 %758
      %761 = vset.pattern.permute.xlu0 2
      %762 = vperm.xlu0 %761, %v304
      %v763 = vpop.permute.xlu0 %762
      %765 = vset.pattern.permute.xlu0 2
      %766 = vperm.xlu0 %765, %v305
      %v767 = vpop.permute.xlu0 %766
      %769 = vset.pattern.permute.xlu0 2
      %770 = vperm.xlu0 %769, %v306
      %v771 = vpop.permute.xlu0 %770
      %773 = vset.pattern.permute.xlu0 2
      %774 = vperm.xlu0 %773, %v307
      %v775 = vpop.permute.xlu0 %774
      %v777 = vlaneseq
      %v778 = vshrl.u32 %v777, 7
      %v779 = vsub.s32 2, %v778
      %v780 = vrot.slane %v291, %v779
      %v781 = vlaneseq
      %v782 = vshrl.u32 %v781, 7
      %v783 = vsub.s32 6, %v782
      %v784 = vrot.slane %v291, %v783
      %v787 = vlaneseq
      %v788 = vshrl.u32 %v787, 7
      %v789 = vsub.s32 2, %v788
      %v790 = vrot.slane %v780, %v789
      %v791 = vlaneseq
      %v792 = vshrl.u32 %v791, 7
      %v793 = vsub.s32 2, %v792
      %v794 = vrot.slane %v784, %v793
      %v795 = vmul.f32 %v715, %v790
      %v796 = vmul.f32 %v715, %v794
      %v797 = vmul.f32 %v719, %v790
      %v798 = vmul.f32 %v719, %v794
      %v799 = vmul.f32 %v723, %v790
      %v800 = vmul.f32 %v723, %v794
      %v801 = vmul.f32 %v727, %v790
      %v802 = vmul.f32 %v727, %v794
      %v803 = vmul.f32 %v731, %v790
      %v804 = vmul.f32 %v731, %v794
      %v805 = vmul.f32 %v735, %v790
      %v806 = vmul.f32 %v735, %v794
      %v807 = vmul.f32 %v739, %v790
      %v808 = vmul.f32 %v739, %v794
      %v809 = vmul.f32 %v743, %v790
      %v810 = vmul.f32 %v743, %v794
      %v811 = vmul.f32 %v747, %v790
      %v812 = vmul.f32 %v747, %v794
      %v813 = vmul.f32 %v751, %v790
      %v814 = vmul.f32 %v751, %v794
      %v815 = vmul.f32 %v755, %v790
      %v816 = vmul.f32 %v755, %v794
      %v817 = vmul.f32 %v759, %v790
      %v818 = vmul.f32 %v759, %v794
      %v819 = vmul.f32 %v763, %v790
      %v820 = vmul.f32 %v763, %v794
      %v821 = vmul.f32 %v767, %v790
      %v822 = vmul.f32 %v767, %v794
      %v823 = vmul.f32 %v771, %v790
      %v824 = vmul.f32 %v771, %v794
      %v825 = vmul.f32 %v775, %v790
      %v826 = vmul.f32 %v775, %v794
      %v827 = vadd.f32 %v681, %v795
      %v828 = vadd.f32 %v682, %v796
      %v829 = vadd.f32 %v683, %v797
      %v830 = vadd.f32 %v684, %v798
      %v831 = vadd.f32 %v685, %v799
      %v832 = vadd.f32 %v686, %v800
      %v833 = vadd.f32 %v687, %v801
      %v834 = vadd.f32 %v688, %v802
      %v835 = vadd.f32 %v689, %v803
      %v836 = vadd.f32 %v690, %v804
      %v837 = vadd.f32 %v691, %v805
      %v838 = vadd.f32 %v692, %v806
      %v839 = vadd.f32 %v693, %v807
      %v840 = vadd.f32 %v694, %v808
      %v841 = vadd.f32 %v695, %v809
      %v842 = vadd.f32 %v696, %v810
      %v843 = vadd.f32 %v697, %v811
      %v844 = vadd.f32 %v698, %v812
      %v845 = vadd.f32 %v699, %v813
      %v846 = vadd.f32 %v700, %v814
      %v847 = vadd.f32 %v701, %v815
      %v848 = vadd.f32 %v702, %v816
      %v849 = vadd.f32 %v703, %v817
      %v850 = vadd.f32 %v704, %v818
      %v851 = vadd.f32 %v705, %v819
      %v852 = vadd.f32 %v706, %v820
      %v853 = vadd.f32 %v707, %v821
      %v854 = vadd.f32 %v708, %v822
      %v855 = vadd.f32 %v709, %v823
      %v856 = vadd.f32 %v710, %v824
      %v857 = vadd.f32 %v711, %v825
      %v858 = vadd.f32 %v712, %v826
      %859 = vset.pattern.permute.xlu0 3
      %860 = vperm.xlu0 %859, %v292
      %v861 = vpop.permute.xlu0 %860
      %863 = vset.pattern.permute.xlu0 3
      %864 = vperm.xlu0 %863, %v293
      %v865 = vpop.permute.xlu0 %864
      %867 = vset.pattern.permute.xlu0 3
      %868 = vperm.xlu0 %867, %v294
      %v869 = vpop.permute.xlu0 %868
      %871 = vset.pattern.permute.xlu0 3
      %872 = vperm.xlu0 %871, %v295
      %v873 = vpop.permute.xlu0 %872
      %875 = vset.pattern.permute.xlu0 3
      %876 = vperm.xlu0 %875, %v296
      %v877 = vpop.permute.xlu0 %876
      %879 = vset.pattern.permute.xlu0 3
      %880 = vperm.xlu0 %879, %v297
      %v881 = vpop.permute.xlu0 %880
      %883 = vset.pattern.permute.xlu0 3
      %884 = vperm.xlu0 %883, %v298
      %v885 = vpop.permute.xlu0 %884
      %887 = vset.pattern.permute.xlu0 3
      %888 = vperm.xlu0 %887, %v299
      %v889 = vpop.permute.xlu0 %888
      %891 = vset.pattern.permute.xlu0 3
      %892 = vperm.xlu0 %891, %v300
      %v893 = vpop.permute.xlu0 %892
      %895 = vset.pattern.permute.xlu0 3
      %896 = vperm.xlu0 %895, %v301
      %v897 = vpop.permute.xlu0 %896
      %899 = vset.pattern.permute.xlu0 3
      %900 = vperm.xlu0 %899, %v302
      %v901 = vpop.permute.xlu0 %900
      %903 = vset.pattern.permute.xlu0 3
      %904 = vperm.xlu0 %903, %v303
      %v905 = vpop.permute.xlu0 %904
      %907 = vset.pattern.permute.xlu0 3
      %908 = vperm.xlu0 %907, %v304
      %v909 = vpop.permute.xlu0 %908
      %911 = vset.pattern.permute.xlu0 3
      %912 = vperm.xlu0 %911, %v305
      %v913 = vpop.permute.xlu0 %912
      %915 = vset.pattern.permute.xlu0 3
      %916 = vperm.xlu0 %915, %v306
      %v917 = vpop.permute.xlu0 %916
      %919 = vset.pattern.permute.xlu0 3
      %920 = vperm.xlu0 %919, %v307
      %v921 = vpop.permute.xlu0 %920
      %v923 = vlaneseq
      %v924 = vshrl.u32 %v923, 7
      %v925 = vsub.s32 3, %v924
      %v926 = vrot.slane %v291, %v925
      %v927 = vlaneseq
      %v928 = vshrl.u32 %v927, 7
      %v929 = vsub.s32 7, %v928
      %v930 = vrot.slane %v291, %v929
      %v933 = vlaneseq
      %v934 = vshrl.u32 %v933, 7
      %v935 = vsub.s32 3, %v934
      %v936 = vrot.slane %v926, %v935
      %v937 = vlaneseq
      %v938 = vshrl.u32 %v937, 7
      %v939 = vsub.s32 3, %v938
      %v940 = vrot.slane %v930, %v939
      %v941 = vmul.f32 %v861, %v936
      %v942 = vmul.f32 %v861, %v940
      %v943 = vmul.f32 %v865, %v936
      %v944 = vmul.f32 %v865, %v940
      %v945 = vmul.f32 %v869, %v936
      %v946 = vmul.f32 %v869, %v940
      %v947 = vmul.f32 %v873, %v936
      %v948 = vmul.f32 %v873, %v940
      %v949 = vmul.f32 %v877, %v936
      %v950 = vmul.f32 %v877, %v940
      %v951 = vmul.f32 %v881, %v936
      %v952 = vmul.f32 %v881, %v940
      %v953 = vmul.f32 %v885, %v936
      %v954 = vmul.f32 %v885, %v940
      %v955 = vmul.f32 %v889, %v936
      %v956 = vmul.f32 %v889, %v940
      %v957 = vmul.f32 %v893, %v936
      %v958 = vmul.f32 %v893, %v940
      %v959 = vmul.f32 %v897, %v936
      %v960 = vmul.f32 %v897, %v940
      %v961 = vmul.f32 %v901, %v936
      %v962 = vmul.f32 %v901, %v940
      %v963 = vmul.f32 %v905, %v936
      %v964 = vmul.f32 %v905, %v940
      %v965 = vmul.f32 %v909, %v936
      %v966 = vmul.f32 %v909, %v940
      %v967 = vmul.f32 %v913, %v936
      %v968 = vmul.f32 %v913, %v940
      %v969 = vmul.f32 %v917, %v936
      %v970 = vmul.f32 %v917, %v940
      %v971 = vmul.f32 %v921, %v936
      %v972 = vmul.f32 %v921, %v940
      %v973 = vadd.f32 %v827, %v941
      %v974 = vadd.f32 %v828, %v942
      %v975 = vadd.f32 %v829, %v943
      %v976 = vadd.f32 %v830, %v944
      %v977 = vadd.f32 %v831, %v945
      %v978 = vadd.f32 %v832, %v946
      %v979 = vadd.f32 %v833, %v947
      %v980 = vadd.f32 %v834, %v948
      %v981 = vadd.f32 %v835, %v949
      %v982 = vadd.f32 %v836, %v950
      %v983 = vadd.f32 %v837, %v951
      %v984 = vadd.f32 %v838, %v952
      %v985 = vadd.f32 %v839, %v953
      %v986 = vadd.f32 %v840, %v954
      %v987 = vadd.f32 %v841, %v955
      %v988 = vadd.f32 %v842, %v956
      %v989 = vadd.f32 %v843, %v957
      %v990 = vadd.f32 %v844, %v958
      %v991 = vadd.f32 %v845, %v959
      %v992 = vadd.f32 %v846, %v960
      %v993 = vadd.f32 %v847, %v961
      %v994 = vadd.f32 %v848, %v962
      %v995 = vadd.f32 %v849, %v963
      %v996 = vadd.f32 %v850, %v964
      %v997 = vadd.f32 %v851, %v965
      %v998 = vadd.f32 %v852, %v966
      %v999 = vadd.f32 %v853, %v967
      %v1000 = vadd.f32 %v854, %v968
      %v1001 = vadd.f32 %v855, %v969
      %v1002 = vadd.f32 %v856, %v970
      %v1003 = vadd.f32 %v857, %v971
      %v1004 = vadd.f32 %v858, %v972
      %v1005 = vld [vmem:[%s3] sm:$0xff]
      %v1006 = vld [vmem:[%s3 + $0x8] sm:$0xff]
      %v1007 = vld [vmem:[%s3 + $0x10] sm:$0xff]
      %v1008 = vld [vmem:[%s3 + $0x18] sm:$0xff]
      %v1009 = vld [vmem:[%s3 + $0x20] sm:$0xff]
      %v1010 = vld [vmem:[%s3 + $0x28] sm:$0xff]
      %v1011 = vld [vmem:[%s3 + $0x30] sm:$0xff]
      %v1012 = vld [vmem:[%s3 + $0x38] sm:$0xff]
      %v1013 = vld [vmem:[%s3 + $0x40] sm:$0xff]
      %v1014 = vld [vmem:[%s3 + $0x48] sm:$0xff]
      %v1015 = vld [vmem:[%s3 + $0x50] sm:$0xff]
      %v1016 = vld [vmem:[%s3 + $0x58] sm:$0xff]
      %v1017 = vld [vmem:[%s3 + $0x60] sm:$0xff]
      %v1018 = vld [vmem:[%s3 + $0x68] sm:$0xff]
      %v1019 = vld [vmem:[%s3 + $0x70] sm:$0xff]
      %v1020 = vld [vmem:[%s3 + $0x78] sm:$0xff]
      %1022 = vset.pattern.permute.xlu0 0
      %1023 = vperm.xlu0 %1022, %v1005
      %v1024 = vpop.permute.xlu0 %1023
      %1027 = vset.pattern.permute.xlu0 0
      %1028 = vperm.xlu0 %1027, %v1006
      %v1029 = vpop.permute.xlu0 %1028
      %1032 = vset.pattern.permute.xlu0 0
      %1033 = vperm.xlu0 %1032, %v1007
      %v1034 = vpop.permute.xlu0 %1033
      %1037 = vset.pattern.permute.xlu0 0
      %1038 = vperm.xlu0 %1037, %v1008
      %v1039 = vpop.permute.xlu0 %1038
      %1042 = vset.pattern.permute.xlu0 0
      %1043 = vperm.xlu0 %1042, %v1009
      %v1044 = vpop.permute.xlu0 %1043
      %1047 = vset.pattern.permute.xlu0 0
      %1048 = vperm.xlu0 %1047, %v1010
      %v1049 = vpop.permute.xlu0 %1048
      %1052 = vset.pattern.permute.xlu0 0
      %1053 = vperm.xlu0 %1052, %v1011
      %v1054 = vpop.permute.xlu0 %1053
      %1057 = vset.pattern.permute.xlu0 0
      %1058 = vperm.xlu0 %1057, %v1012
      %v1059 = vpop.permute.xlu0 %1058
      %1062 = vset.pattern.permute.xlu0 0
      %1063 = vperm.xlu0 %1062, %v1013
      %v1064 = vpop.permute.xlu0 %1063
      %1067 = vset.pattern.permute.xlu0 0
      %1068 = vperm.xlu0 %1067, %v1014
      %v1069 = vpop.permute.xlu0 %1068
      %1072 = vset.pattern.permute.xlu0 0
      %1073 = vperm.xlu0 %1072, %v1015
      %v1074 = vpop.permute.xlu0 %1073
      %1077 = vset.pattern.permute.xlu0 0
      %1078 = vperm.xlu0 %1077, %v1016
      %v1079 = vpop.permute.xlu0 %1078
      %1082 = vset.pattern.permute.xlu0 0
      %1083 = vperm.xlu0 %1082, %v1017
      %v1084 = vpop.permute.xlu0 %1083
      %1087 = vset.pattern.permute.xlu0 0
      %1088 = vperm.xlu0 %1087, %v1018
      %v1089 = vpop.permute.xlu0 %1088
      %1092 = vset.pattern.permute.xlu0 0
      %1093 = vperm.xlu0 %1092, %v1019
      %v1094 = vpop.permute.xlu0 %1093
      %1097 = vset.pattern.permute.xlu0 0
      %1098 = vperm.xlu0 %1097, %v1020
      %v1099 = vpop.permute.xlu0 %1098
      %v1101 = vmul.f32 %v973, %v1024
      %v1102 = vmul.f32 %v974, %v1024
      %v1103 = vmul.f32 %v975, %v1029
      %v1104 = vmul.f32 %v976, %v1029
      %v1105 = vmul.f32 %v977, %v1034
      %v1106 = vmul.f32 %v978, %v1034
      %v1107 = vmul.f32 %v979, %v1039
      %v1108 = vmul.f32 %v980, %v1039
      %v1109 = vmul.f32 %v981, %v1044
      %v1110 = vmul.f32 %v982, %v1044
      %v1111 = vmul.f32 %v983, %v1049
      %v1112 = vmul.f32 %v984, %v1049
      %v1113 = vmul.f32 %v985, %v1054
      %v1114 = vmul.f32 %v986, %v1054
      %v1115 = vmul.f32 %v987, %v1059
      %v1116 = vmul.f32 %v988, %v1059
      %v1117 = vmul.f32 %v989, %v1064
      %v1118 = vmul.f32 %v990, %v1064
      %v1119 = vmul.f32 %v991, %v1069
      %v1120 = vmul.f32 %v992, %v1069
      %v1121 = vmul.f32 %v993, %v1074
      %v1122 = vmul.f32 %v994, %v1074
      %v1123 = vmul.f32 %v995, %v1079
      %v1124 = vmul.f32 %v996, %v1079
      %v1125 = vmul.f32 %v997, %v1084
      %v1126 = vmul.f32 %v998, %v1084
      %v1127 = vmul.f32 %v999, %v1089
      %v1128 = vmul.f32 %v1000, %v1089
      %v1129 = vmul.f32 %v1001, %v1094
      %v1130 = vmul.f32 %v1002, %v1094
      %v1131 = vmul.f32 %v1003, %v1099
      %v1132 = vmul.f32 %v1004, %v1099
      %1133 = vset.pattern.permute.xlu0 1
      %1134 = vperm.xlu0 %1133, %v1005
      %v1135 = vpop.permute.xlu0 %1134
      %1137 = vset.pattern.permute.xlu0 1
      %1138 = vperm.xlu0 %1137, %v1006
      %v1139 = vpop.permute.xlu0 %1138
      %1141 = vset.pattern.permute.xlu0 1
      %1142 = vperm.xlu0 %1141, %v1007
      %v1143 = vpop.permute.xlu0 %1142
      %1145 = vset.pattern.permute.xlu0 1
      %1146 = vperm.xlu0 %1145, %v1008
      %v1147 = vpop.permute.xlu0 %1146
      %1149 = vset.pattern.permute.xlu0 1
      %1150 = vperm.xlu0 %1149, %v1009
      %v1151 = vpop.permute.xlu0 %1150
      %1153 = vset.pattern.permute.xlu0 1
      %1154 = vperm.xlu0 %1153, %v1010
      %v1155 = vpop.permute.xlu0 %1154
      %1157 = vset.pattern.permute.xlu0 1
      %1158 = vperm.xlu0 %1157, %v1011
      %v1159 = vpop.permute.xlu0 %1158
      %1161 = vset.pattern.permute.xlu0 1
      %1162 = vperm.xlu0 %1161, %v1012
      %v1163 = vpop.permute.xlu0 %1162
      %1165 = vset.pattern.permute.xlu0 1
      %1166 = vperm.xlu0 %1165, %v1013
      %v1167 = vpop.permute.xlu0 %1166
      %1169 = vset.pattern.permute.xlu0 1
      %1170 = vperm.xlu0 %1169, %v1014
      %v1171 = vpop.permute.xlu0 %1170
      %1173 = vset.pattern.permute.xlu0 1
      %1174 = vperm.xlu0 %1173, %v1015
      %v1175 = vpop.permute.xlu0 %1174
      %1177 = vset.pattern.permute.xlu0 1
      %1178 = vperm.xlu0 %1177, %v1016
      %v1179 = vpop.permute.xlu0 %1178
      %1181 = vset.pattern.permute.xlu0 1
      %1182 = vperm.xlu0 %1181, %v1017
      %v1183 = vpop.permute.xlu0 %1182
      %1185 = vset.pattern.permute.xlu0 1
      %1186 = vperm.xlu0 %1185, %v1018
      %v1187 = vpop.permute.xlu0 %1186
      %1189 = vset.pattern.permute.xlu0 1
      %1190 = vperm.xlu0 %1189, %v1019
      %v1191 = vpop.permute.xlu0 %1190
      %1193 = vset.pattern.permute.xlu0 1
      %1194 = vperm.xlu0 %1193, %v1020
      %v1195 = vpop.permute.xlu0 %1194
      %v1197 = vadd.f32 %v1101, %v1135
      %v1198 = vadd.f32 %v1102, %v1135
      %v1199 = vadd.f32 %v1103, %v1139
      %v1200 = vadd.f32 %v1104, %v1139
      %v1201 = vadd.f32 %v1105, %v1143
      %v1202 = vadd.f32 %v1106, %v1143
      %v1203 = vadd.f32 %v1107, %v1147
      %v1204 = vadd.f32 %v1108, %v1147
      %v1205 = vadd.f32 %v1109, %v1151
      %v1206 = vadd.f32 %v1110, %v1151
      %v1207 = vadd.f32 %v1111, %v1155
      %v1208 = vadd.f32 %v1112, %v1155
      %v1209 = vadd.f32 %v1113, %v1159
      %v1210 = vadd.f32 %v1114, %v1159
      %v1211 = vadd.f32 %v1115, %v1163
      %v1212 = vadd.f32 %v1116, %v1163
      %v1213 = vadd.f32 %v1117, %v1167
      %v1214 = vadd.f32 %v1118, %v1167
      %v1215 = vadd.f32 %v1119, %v1171
      %v1216 = vadd.f32 %v1120, %v1171
      %v1217 = vadd.f32 %v1121, %v1175
      %v1218 = vadd.f32 %v1122, %v1175
      %v1219 = vadd.f32 %v1123, %v1179
      %v1220 = vadd.f32 %v1124, %v1179
      %v1221 = vadd.f32 %v1125, %v1183
      %v1222 = vadd.f32 %v1126, %v1183
      %v1223 = vadd.f32 %v1127, %v1187
      %v1224 = vadd.f32 %v1128, %v1187
      %v1225 = vadd.f32 %v1129, %v1191
      %v1226 = vadd.f32 %v1130, %v1191
      %v1227 = vadd.f32 %v1131, %v1195
      %v1228 = vadd.f32 %v1132, %v1195
      %v1229 = vmul.f32 %v1197, 0.5
      %v1230 = vmul.f32 %v1198, 0.5
      %v1231 = vmul.f32 %v1199, 0.5
      %v1232 = vmul.f32 %v1200, 0.5
      %v1233 = vmul.f32 %v1201, 0.5
      %v1234 = vmul.f32 %v1202, 0.5
      %v1235 = vmul.f32 %v1203, 0.5
      %v1236 = vmul.f32 %v1204, 0.5
      %v1237 = vmul.f32 %v1205, 0.5
      %v1238 = vmul.f32 %v1206, 0.5
      %v1239 = vmul.f32 %v1207, 0.5
      %v1240 = vmul.f32 %v1208, 0.5
      %v1241 = vmul.f32 %v1209, 0.5
      %v1242 = vmul.f32 %v1210, 0.5
      %v1243 = vmul.f32 %v1211, 0.5
      %v1244 = vmul.f32 %v1212, 0.5
      %v1245 = vmul.f32 %v1213, 0.5
      %v1246 = vmul.f32 %v1214, 0.5
      %v1247 = vmul.f32 %v1215, 0.5
      %v1248 = vmul.f32 %v1216, 0.5
      %v1249 = vmul.f32 %v1217, 0.5
      %v1250 = vmul.f32 %v1218, 0.5
      %v1251 = vmul.f32 %v1219, 0.5
      %v1252 = vmul.f32 %v1220, 0.5
      %v1253 = vmul.f32 %v1221, 0.5
      %v1254 = vmul.f32 %v1222, 0.5
      %v1255 = vmul.f32 %v1223, 0.5
      %v1256 = vmul.f32 %v1224, 0.5
      %v1257 = vmul.f32 %v1225, 0.5
      %v1258 = vmul.f32 %v1226, 0.5
      %v1259 = vmul.f32 %v1227, 0.5
      %v1260 = vmul.f32 %v1228, 0.5
      %v1261 = vmul.f32 %v1197, 0.70710677
      %v1262 = vmul.f32 %v1198, 0.70710677
      %v1263 = vmul.f32 %v1199, 0.70710677
      %v1264 = vmul.f32 %v1200, 0.70710677
      %v1265 = vmul.f32 %v1201, 0.70710677
      %v1266 = vmul.f32 %v1202, 0.70710677
      %v1267 = vmul.f32 %v1203, 0.70710677
      %v1268 = vmul.f32 %v1204, 0.70710677
      %v1269 = vmul.f32 %v1205, 0.70710677
      %v1270 = vmul.f32 %v1206, 0.70710677
      %v1271 = vmul.f32 %v1207, 0.70710677
      %v1272 = vmul.f32 %v1208, 0.70710677
      %v1273 = vmul.f32 %v1209, 0.70710677
      %v1274 = vmul.f32 %v1210, 0.70710677
      %v1275 = vmul.f32 %v1211, 0.70710677
      %v1276 = vmul.f32 %v1212, 0.70710677
      %v1277 = vmul.f32 %v1213, 0.70710677
      %v1278 = vmul.f32 %v1214, 0.70710677
      %v1279 = vmul.f32 %v1215, 0.70710677
      %v1280 = vmul.f32 %v1216, 0.70710677
      %v1281 = vmul.f32 %v1217, 0.70710677
      %v1282 = vmul.f32 %v1218, 0.70710677
      %v1283 = vmul.f32 %v1219, 0.70710677
      %v1284 = vmul.f32 %v1220, 0.70710677
      %v1285 = vmul.f32 %v1221, 0.70710677
      %v1286 = vmul.f32 %v1222, 0.70710677
      %v1287 = vmul.f32 %v1223, 0.70710677
      %v1288 = vmul.f32 %v1224, 0.70710677
      %v1289 = vmul.f32 %v1225, 0.70710677
      %v1290 = vmul.f32 %v1226, 0.70710677
      %v1291 = vmul.f32 %v1227, 0.70710677
      %v1292 = vmul.f32 %v1228, 0.70710677
      %v1293 = verf.f32.pop %v1261
      %v1294 = verf.f32.pop %v1262
      %v1295 = verf.f32.pop %v1263
      %v1296 = verf.f32.pop %v1264
      %v1297 = verf.f32.pop %v1265
      %v1298 = verf.f32.pop %v1266
      %v1299 = verf.f32.pop %v1267
      %v1300 = verf.f32.pop %v1268
      %v1301 = verf.f32.pop %v1269
      %v1302 = verf.f32.pop %v1270
      %v1303 = verf.f32.pop %v1271
      %v1304 = verf.f32.pop %v1272
      %v1305 = verf.f32.pop %v1273
      %v1306 = verf.f32.pop %v1274
      %v1307 = verf.f32.pop %v1275
      %v1308 = verf.f32.pop %v1276
      %v1309 = verf.f32.pop %v1277
      %v1310 = verf.f32.pop %v1278
      %v1311 = verf.f32.pop %v1279
      %v1312 = verf.f32.pop %v1280
      %v1313 = verf.f32.pop %v1281
      %v1314 = verf.f32.pop %v1282
      %v1315 = verf.f32.pop %v1283
      %v1316 = verf.f32.pop %v1284
      %v1317 = verf.f32.pop %v1285
      %v1318 = verf.f32.pop %v1286
      %v1319 = verf.f32.pop %v1287
      %v1320 = verf.f32.pop %v1288
      %v1321 = verf.f32.pop %v1289
      %v1322 = verf.f32.pop %v1290
      %v1323 = verf.f32.pop %v1291
      %v1324 = verf.f32.pop %v1292
      %v1325 = vadd.f32 %v1293, 1.0
      %v1326 = vadd.f32 %v1294, 1.0
      %v1327 = vadd.f32 %v1295, 1.0
      %v1328 = vadd.f32 %v1296, 1.0
      %v1329 = vadd.f32 %v1297, 1.0
      %v1330 = vadd.f32 %v1298, 1.0
      %v1331 = vadd.f32 %v1299, 1.0
      %v1332 = vadd.f32 %v1300, 1.0
      %v1333 = vadd.f32 %v1301, 1.0
      %v1334 = vadd.f32 %v1302, 1.0
      %v1335 = vadd.f32 %v1303, 1.0
      %v1336 = vadd.f32 %v1304, 1.0
      %v1337 = vadd.f32 %v1305, 1.0
      %v1338 = vadd.f32 %v1306, 1.0
      %v1339 = vadd.f32 %v1307, 1.0
      %v1340 = vadd.f32 %v1308, 1.0
      %v1341 = vadd.f32 %v1309, 1.0
      %v1342 = vadd.f32 %v1310, 1.0
      %v1343 = vadd.f32 %v1311, 1.0
      %v1344 = vadd.f32 %v1312, 1.0
      %v1345 = vadd.f32 %v1313, 1.0
      %v1346 = vadd.f32 %v1314, 1.0
      %v1347 = vadd.f32 %v1315, 1.0
      %v1348 = vadd.f32 %v1316, 1.0
      %v1349 = vadd.f32 %v1317, 1.0
      %v1350 = vadd.f32 %v1318, 1.0
      %v1351 = vadd.f32 %v1319, 1.0
      %v1352 = vadd.f32 %v1320, 1.0
      %v1353 = vadd.f32 %v1321, 1.0
      %v1354 = vadd.f32 %v1322, 1.0
      %v1355 = vadd.f32 %v1323, 1.0
      %v1356 = vadd.f32 %v1324, 1.0
      %v1357 = vmul.f32 %v1229, %v1325
      %v1358 = vmul.f32 %v1230, %v1326
      %v1359 = vmul.f32 %v1231, %v1327
      %v1360 = vmul.f32 %v1232, %v1328
      %v1361 = vmul.f32 %v1233, %v1329
      %v1362 = vmul.f32 %v1234, %v1330
      %v1363 = vmul.f32 %v1235, %v1331
      %v1364 = vmul.f32 %v1236, %v1332
      %v1365 = vmul.f32 %v1237, %v1333
      %v1366 = vmul.f32 %v1238, %v1334
      %v1367 = vmul.f32 %v1239, %v1335
      %v1368 = vmul.f32 %v1240, %v1336
      %v1369 = vmul.f32 %v1241, %v1337
      %v1370 = vmul.f32 %v1242, %v1338
      %v1371 = vmul.f32 %v1243, %v1339
      %v1372 = vmul.f32 %v1244, %v1340
      %v1373 = vmul.f32 %v1245, %v1341
      %v1374 = vmul.f32 %v1246, %v1342
      %v1375 = vmul.f32 %v1247, %v1343
      %v1376 = vmul.f32 %v1248, %v1344
      %v1377 = vmul.f32 %v1249, %v1345
      %v1378 = vmul.f32 %v1250, %v1346
      %v1379 = vmul.f32 %v1251, %v1347
      %v1380 = vmul.f32 %v1252, %v1348
      %v1381 = vmul.f32 %v1253, %v1349
      %v1382 = vmul.f32 %v1254, %v1350
      %v1383 = vmul.f32 %v1255, %v1351
      %v1384 = vmul.f32 %v1256, %v1352
      %v1385 = vmul.f32 %v1257, %v1353
      %v1386 = vmul.f32 %v1258, %v1354
      %v1387 = vmul.f32 %v1259, %v1355
      %v1388 = vmul.f32 %v1260, %v1356
      %v1389 = vld [vmem:[%s4] sm:$0xf]
      %v1390 = vld [vmem:[%s4 + $0x4] sm:$0xf]
      %v1391 = vld [vmem:[%s4 + $0x8] sm:$0xf]
      %v1392 = vld [vmem:[%s4 + $0xc] sm:$0xf]
      %v1393 = vld [vmem:[%s4 + $0x10] sm:$0xf]
      %v1394 = vld [vmem:[%s4 + $0x14] sm:$0xf]
      %v1395 = vld [vmem:[%s4 + $0x18] sm:$0xf]
      %v1396 = vld [vmem:[%s4 + $0x1c] sm:$0xf]
      %v1397 = vld [vmem:[%s4 + $0x20] sm:$0xf]
      %v1398 = vld [vmem:[%s4 + $0x24] sm:$0xf]
      %v1399 = vld [vmem:[%s4 + $0x28] sm:$0xf]
      %v1400 = vld [vmem:[%s4 + $0x2c] sm:$0xf]
      %v1401 = vld [vmem:[%s4 + $0x30] sm:$0xf]
      %v1402 = vld [vmem:[%s4 + $0x34] sm:$0xf]
      %v1403 = vld [vmem:[%s4 + $0x38] sm:$0xf]
      %v1404 = vld [vmem:[%s4 + $0x3c] sm:$0xf]
      %v1405 = vld [vmem:[%s5] sm:$0xff]
      %v1406 = vld [vmem:[%s5 + $0x8] sm:$0xff]
      %v1407 = vld [vmem:[%s5 + $0x10] sm:$0xff]
      %v1408 = vld [vmem:[%s5 + $0x18] sm:$0xff]
      %v1409 = vld [vmem:[%s5 + $0x20] sm:$0xff]
      %v1410 = vld [vmem:[%s5 + $0x28] sm:$0xff]
      %v1411 = vld [vmem:[%s5 + $0x30] sm:$0xff]
      %v1412 = vld [vmem:[%s5 + $0x38] sm:$0xff]
      %v1413 = vld [vmem:[%s5 + $0x40] sm:$0xff]
      %v1414 = vld [vmem:[%s5 + $0x48] sm:$0xff]
      %v1415 = vld [vmem:[%s5 + $0x50] sm:$0xff]
      %v1416 = vld [vmem:[%s5 + $0x58] sm:$0xff]
      %v1417 = vld [vmem:[%s5 + $0x60] sm:$0xff]
      %v1418 = vld [vmem:[%s5 + $0x68] sm:$0xff]
      %v1419 = vld [vmem:[%s5 + $0x70] sm:$0xff]
      %v1420 = vld [vmem:[%s5 + $0x78] sm:$0xff]
      %v1421 = vpack.c.bf16 %v1359, %v1357
      %v1422 = vpack.c.bf16 %v1360, %v1358
      %v1423 = vpack.c.bf16 %v1363, %v1361
      %v1424 = vpack.c.bf16 %v1364, %v1362
      %v1425 = vpack.c.bf16 %v1367, %v1365
      %v1426 = vpack.c.bf16 %v1368, %v1366
      %v1427 = vpack.c.bf16 %v1371, %v1369
      %v1428 = vpack.c.bf16 %v1372, %v1370
      %v1429 = vpack.c.bf16 %v1375, %v1373
      %v1430 = vpack.c.bf16 %v1376, %v1374
      %v1431 = vpack.c.bf16 %v1379, %v1377
      %v1432 = vpack.c.bf16 %v1380, %v1378
      %v1433 = vpack.c.bf16 %v1383, %v1381
      %v1434 = vpack.c.bf16 %v1384, %v1382
      %v1435 = vpack.c.bf16 %v1387, %v1385
      %v1436 = vpack.c.bf16 %v1388, %v1386
      %1438 = vset.pattern.permute.xlu0 0
      %1439 = vperm.xlu0 %1438, %v1405
      %v1440 = vpop.permute.xlu0 %1439
      %1443 = vset.pattern.permute.xlu0 0
      %1444 = vperm.xlu0 %1443, %v1406
      %v1445 = vpop.permute.xlu0 %1444
      %1448 = vset.pattern.permute.xlu0 0
      %1449 = vperm.xlu0 %1448, %v1407
      %v1450 = vpop.permute.xlu0 %1449
      %1453 = vset.pattern.permute.xlu0 0
      %1454 = vperm.xlu0 %1453, %v1408
      %v1455 = vpop.permute.xlu0 %1454
      %1458 = vset.pattern.permute.xlu0 0
      %1459 = vperm.xlu0 %1458, %v1409
      %v1460 = vpop.permute.xlu0 %1459
      %1463 = vset.pattern.permute.xlu0 0
      %1464 = vperm.xlu0 %1463, %v1410
      %v1465 = vpop.permute.xlu0 %1464
      %1468 = vset.pattern.permute.xlu0 0
      %1469 = vperm.xlu0 %1468, %v1411
      %v1470 = vpop.permute.xlu0 %1469
      %1473 = vset.pattern.permute.xlu0 0
      %1474 = vperm.xlu0 %1473, %v1412
      %v1475 = vpop.permute.xlu0 %1474
      %1478 = vset.pattern.permute.xlu0 0
      %1479 = vperm.xlu0 %1478, %v1413
      %v1480 = vpop.permute.xlu0 %1479
      %1483 = vset.pattern.permute.xlu0 0
      %1484 = vperm.xlu0 %1483, %v1414
      %v1485 = vpop.permute.xlu0 %1484
      %1488 = vset.pattern.permute.xlu0 0
      %1489 = vperm.xlu0 %1488, %v1415
      %v1490 = vpop.permute.xlu0 %1489
      %1493 = vset.pattern.permute.xlu0 0
      %1494 = vperm.xlu0 %1493, %v1416
      %v1495 = vpop.permute.xlu0 %1494
      %1498 = vset.pattern.permute.xlu0 0
      %1499 = vperm.xlu0 %1498, %v1417
      %v1500 = vpop.permute.xlu0 %1499
      %1503 = vset.pattern.permute.xlu0 0
      %1504 = vperm.xlu0 %1503, %v1418
      %v1505 = vpop.permute.xlu0 %1504
      %1508 = vset.pattern.permute.xlu0 0
      %1509 = vperm.xlu0 %1508, %v1419
      %v1510 = vpop.permute.xlu0 %1509
      %1513 = vset.pattern.permute.xlu0 0
      %1514 = vperm.xlu0 %1513, %v1420
      %v1515 = vpop.permute.xlu0 %1514
      %v1533 = vunpack.c.l.b16 %v1389
      %v1534 = vunpack.c.l.b16 %v1390
      %v1535 = vunpack.c.l.b16 %v1391
      %v1536 = vunpack.c.l.b16 %v1392
      %v1537 = vunpack.c.l.b16 %v1393
      %v1538 = vunpack.c.l.b16 %v1394
      %v1539 = vunpack.c.l.b16 %v1395
      %v1540 = vunpack.c.l.b16 %v1396
      %v1541 = vunpack.c.l.b16 %v1397
      %v1542 = vunpack.c.l.b16 %v1398
      %v1543 = vunpack.c.l.b16 %v1399
      %v1544 = vunpack.c.l.b16 %v1400
      %v1545 = vunpack.c.l.b16 %v1401
      %v1546 = vunpack.c.l.b16 %v1402
      %v1547 = vunpack.c.l.b16 %v1403
      %v1548 = vunpack.c.l.b16 %v1404
      %v1549 = vpack.c.b16 %v1534, %v1533
      %v1550 = vpack.c.b16 %v1536, %v1535
      %v1551 = vpack.c.b16 %v1538, %v1537
      %v1552 = vpack.c.b16 %v1540, %v1539
      %v1553 = vpack.c.b16 %v1542, %v1541
      %v1554 = vpack.c.b16 %v1544, %v1543
      %v1555 = vpack.c.b16 %v1546, %v1545
      %v1556 = vpack.c.b16 %v1548, %v1547
      %1565 = vmatprep.subr.bf16.mxu0 %v1422
      %1566 = vmatpush1.bf16.msra.mxu0 %v1421
      %1567 = vmatprep.subr.bf16.mxu0 %v1424
      %1568 = vmatpush1.bf16.msra.mxu0 %v1423
      %1569 = vmatprep.subr.bf16.mxu0 %v1426
      %1570 = vmatpush1.bf16.msra.mxu0 %v1425
      %1571 = vmatprep.subr.bf16.mxu0 %v1428
      %1572 = vmatpush1.bf16.msra.mxu0 %v1427
      %1573 = vmatprep.subr.bf16.mxu0 %v1430
      %1574 = vmatpush1.bf16.msra.mxu0 %v1429
      %1575 = vmatprep.subr.bf16.mxu0 %v1432
      %1576 = vmatpush1.bf16.msra.mxu0 %v1431
      %1577 = vmatprep.subr.bf16.mxu0 %v1434
      %1578 = vmatpush1.bf16.msra.mxu0 %v1433
      %1579 = vmatprep.subr.bf16.mxu0 %v1436
      %1580 = vmatpush1.bf16.msra.mxu0 %v1435
      %1581 = vmatprep.subr.bf16.mxu0 0
      %1582 = vmatpush1.bf16.msra.mxu0 0
      %1583 = vmatprep.subr.bf16.mxu0 0
      %1584 = vmatpush1.bf16.msra.mxu0 0
      %1585 = vmatprep.subr.bf16.mxu0 0
      %1586 = vmatpush1.bf16.msra.mxu0 0
      %1587 = vmatprep.subr.bf16.mxu0 0
      %1588 = vmatpush1.bf16.msra.mxu0 0
      %1589 = vmatprep.subr.bf16.mxu0 0
      %1590 = vmatpush1.bf16.msra.mxu0 0
      %1591 = vmatprep.subr.bf16.mxu0 0
      %1592 = vmatpush1.bf16.msra.mxu0 0
      %1593 = vmatprep.subr.bf16.mxu0 0
      %1594 = vmatpush1.bf16.msra.mxu0 0
      %1595 = vmatprep.subr.bf16.mxu0 0
      %1596 = vmatpush1.bf16.msra.mxu0 0
      %1597 = vmatprep.mubr.bf16.mxu0 0
      %1598 = vmatmul.mubr.bf16.gmra.mrb[0].mxu0 %v1549
      %v1599 = vpop.f32.mrb[0].mxu0
      %v1600 = vadd.f32 %v1440, %v1599
      %v1601 = vpop.f32.mrb[0].mxu0
      %v1602 = vadd.f32 %v1440, %v1601
      %v1603 = vpop.f32.mrb[0].mxu0
      %v1604 = vadd.f32 %v1445, %v1603
      %v1605 = vpop.f32.mrb[0].mxu0
      %v1606 = vadd.f32 %v1445, %v1605
      %1607 = vmatprep.mubr.bf16.mxu0 0
      %1608 = vmatmul.mubr.bf16.gmra.mrb[0].mxu0 %v1550
      %v1609 = vpop.f32.mrb[0].mxu0
      %v1610 = vadd.f32 %v1450, %v1609
      %v1611 = vpop.f32.mrb[0].mxu0
      %v1612 = vadd.f32 %v1450, %v1611
      %v1613 = vpop.f32.mrb[0].mxu0
      %v1614 = vadd.f32 %v1455, %v1613
      %v1615 = vpop.f32.mrb[0].mxu0
      %v1616 = vadd.f32 %v1455, %v1615
      %1617 = vmatprep.mubr.bf16.mxu0 0
      %1618 = vmatmul.mubr.bf16.gmra.mrb[0].mxu0 %v1551
      %v1619 = vpop.f32.mrb[0].mxu0
      %v1620 = vadd.f32 %v1460, %v1619
      %v1621 = vpop.f32.mrb[0].mxu0
      %v1622 = vadd.f32 %v1460, %v1621
      %v1623 = vpop.f32.mrb[0].mxu0
      %v1624 = vadd.f32 %v1465, %v1623
      %v1625 = vpop.f32.mrb[0].mxu0
      %v1626 = vadd.f32 %v1465, %v1625
      %1627 = vmatprep.mubr.bf16.mxu0 0
      %1628 = vmatmul.mubr.bf16.gmra.mrb[0].mxu0 %v1552
      %v1629 = vpop.f32.mrb[0].mxu0
      %v1630 = vadd.f32 %v1470, %v1629
      %v1631 = vpop.f32.mrb[0].mxu0
      %v1632 = vadd.f32 %v1470, %v1631
      %v1633 = vpop.f32.mrb[0].mxu0
      %v1634 = vadd.f32 %v1475, %v1633
      %v1635 = vpop.f32.mrb[0].mxu0
      %v1636 = vadd.f32 %v1475, %v1635
      %1637 = vmatprep.mubr.bf16.mxu0 0
      %1638 = vmatmul.mubr.bf16.gmra.mrb[0].mxu0 %v1553
      %v1639 = vpop.f32.mrb[0].mxu0
      %v1640 = vadd.f32 %v1480, %v1639
      %v1641 = vpop.f32.mrb[0].mxu0
      %v1642 = vadd.f32 %v1480, %v1641
      %v1643 = vpop.f32.mrb[0].mxu0
      %v1644 = vadd.f32 %v1485, %v1643
      %v1645 = vpop.f32.mrb[0].mxu0
      %v1646 = vadd.f32 %v1485, %v1645
      %1647 = vmatprep.mubr.bf16.mxu0 0
      %1648 = vmatmul.mubr.bf16.gmra.mrb[0].mxu0 %v1554
      %v1649 = vpop.f32.mrb[0].mxu0
      %v1650 = vadd.f32 %v1490, %v1649
      %v1651 = vpop.f32.mrb[0].mxu0
      %v1652 = vadd.f32 %v1490, %v1651
      %v1653 = vpop.f32.mrb[0].mxu0
      %v1654 = vadd.f32 %v1495, %v1653
      %v1655 = vpop.f32.mrb[0].mxu0
      %v1656 = vadd.f32 %v1495, %v1655
      %1657 = vmatprep.mubr.bf16.mxu0 0
      %1658 = vmatmul.mubr.bf16.gmra.mrb[0].mxu0 %v1555
      %v1659 = vpop.f32.mrb[0].mxu0
      %v1660 = vadd.f32 %v1500, %v1659
      %v1661 = vpop.f32.mrb[0].mxu0
      %v1662 = vadd.f32 %v1500, %v1661
      %v1663 = vpop.f32.mrb[0].mxu0
      %v1664 = vadd.f32 %v1505, %v1663
      %v1665 = vpop.f32.mrb[0].mxu0
      %v1666 = vadd.f32 %v1505, %v1665
      %1667 = vmatprep.mubr.bf16.mxu0 0
      %1668 = vmatmul.mubr.bf16.gmra.mrb[0].mxu0 %v1556
      %v1669 = vpop.f32.mrb[0].mxu0
      %v1670 = vadd.f32 %v1510, %v1669
      %v1671 = vpop.f32.mrb[0].mxu0
      %v1672 = vadd.f32 %v1510, %v1671
      %v1673 = vpop.f32.mrb[0].mxu0
      %v1674 = vadd.f32 %v1515, %v1673
      %v1675 = vpop.f32.mrb[0].mxu0
      %v1676 = vadd.f32 %v1515, %v1675
      %1677 = vdwg.mxu0
      %v1678 = vadd.f32 %v1600, %v1602
      %1679 = vadd.xlane.f32.xlu0 %v1678
      %v1680 = vpop.xlane.xlu0 %1679
      %v1681 = vadd.f32 %v1604, %v1606
      %1682 = vadd.xlane.f32.xlu0 %v1681
      %v1683 = vpop.xlane.xlu0 %1682
      %v1684 = vadd.f32 %v1610, %v1612
      %1685 = vadd.xlane.f32.xlu0 %v1684
      %v1686 = vpop.xlane.xlu0 %1685
      %v1687 = vadd.f32 %v1614, %v1616
      %1688 = vadd.xlane.f32.xlu0 %v1687
      %v1689 = vpop.xlane.xlu0 %1688
      %v1690 = vadd.f32 %v1620, %v1622
      %1691 = vadd.xlane.f32.xlu0 %v1690
      %v1692 = vpop.xlane.xlu0 %1691
      %v1693 = vadd.f32 %v1624, %v1626
      %1694 = vadd.xlane.f32.xlu0 %v1693
      %v1695 = vpop.xlane.xlu0 %1694
      %v1696 = vadd.f32 %v1630, %v1632
      %1697 = vadd.xlane.f32.xlu0 %v1696
      %v1698 = vpop.xlane.xlu0 %1697
      %v1699 = vadd.f32 %v1634, %v1636
      %1700 = vadd.xlane.f32.xlu0 %v1699
      %v1701 = vpop.xlane.xlu0 %1700
      %v1702 = vadd.f32 %v1640, %v1642
      %1703 = vadd.xlane.f32.xlu0 %v1702
      %v1704 = vpop.xlane.xlu0 %1703
      %v1705 = vadd.f32 %v1644, %v1646
      %1706 = vadd.xlane.f32.xlu0 %v1705
      %v1707 = vpop.xlane.xlu0 %1706
      %v1708 = vadd.f32 %v1650, %v1652
      %1709 = vadd.xlane.f32.xlu0 %v1708
      %v1710 = vpop.xlane.xlu0 %1709
      %v1711 = vadd.f32 %v1654, %v1656
      %1712 = vadd.xlane.f32.xlu0 %v1711
      %v1713 = vpop.xlane.xlu0 %1712
      %v1714 = vadd.f32 %v1660, %v1662
      %1715 = vadd.xlane.f32.xlu0 %v1714
      %v1716 = vpop.xlane.xlu0 %1715
      %v1717 = vadd.f32 %v1664, %v1666
      %1718 = vadd.xlane.f32.xlu0 %v1717
      %v1719 = vpop.xlane.xlu0 %1718
      %v1720 = vadd.f32 %v1670, %v1672
      %1721 = vadd.xlane.f32.xlu0 %v1720
      %v1722 = vpop.xlane.xlu0 %1721
      %v1723 = vadd.f32 %v1674, %v1676
      %1724 = vadd.xlane.f32.xlu0 %v1723
      %v1725 = vpop.xlane.xlu0 %1724
      %v1726 = vmul.f32 %v1600, %v1600
      %v1727 = vmul.f32 %v1602, %v1602
      %v1728 = vmul.f32 %v1604, %v1604
      %v1729 = vmul.f32 %v1606, %v1606
      %v1730 = vmul.f32 %v1610, %v1610
      %v1731 = vmul.f32 %v1612, %v1612
      %v1732 = vmul.f32 %v1614, %v1614
      %v1733 = vmul.f32 %v1616, %v1616
      %v1734 = vmul.f32 %v1620, %v1620
      %v1735 = vmul.f32 %v1622, %v1622
      %v1736 = vmul.f32 %v1624, %v1624
      %v1737 = vmul.f32 %v1626, %v1626
      %v1738 = vmul.f32 %v1630, %v1630
      %v1739 = vmul.f32 %v1632, %v1632
      %v1740 = vmul.f32 %v1634, %v1634
      %v1741 = vmul.f32 %v1636, %v1636
      %v1742 = vmul.f32 %v1640, %v1640
      %v1743 = vmul.f32 %v1642, %v1642
      %v1744 = vmul.f32 %v1644, %v1644
      %v1745 = vmul.f32 %v1646, %v1646
      %v1746 = vmul.f32 %v1650, %v1650
      %v1747 = vmul.f32 %v1652, %v1652
      %v1748 = vmul.f32 %v1654, %v1654
      %v1749 = vmul.f32 %v1656, %v1656
      %v1750 = vmul.f32 %v1660, %v1660
      %v1751 = vmul.f32 %v1662, %v1662
      %v1752 = vmul.f32 %v1664, %v1664
      %v1753 = vmul.f32 %v1666, %v1666
      %v1754 = vmul.f32 %v1670, %v1670
      %v1755 = vmul.f32 %v1672, %v1672
      %v1756 = vmul.f32 %v1674, %v1674
      %v1757 = vmul.f32 %v1676, %v1676
      %v1758 = vadd.f32 %v1726, %v1727
      %1759 = vadd.xlane.f32.xlu0 %v1758
      %v1760 = vpop.xlane.xlu0 %1759
      %v1761 = vadd.f32 %v1728, %v1729
      %1762 = vadd.xlane.f32.xlu0 %v1761
      %v1763 = vpop.xlane.xlu0 %1762
      %v1764 = vadd.f32 %v1730, %v1731
      %1765 = vadd.xlane.f32.xlu0 %v1764
      %v1766 = vpop.xlane.xlu0 %1765
      %v1767 = vadd.f32 %v1732, %v1733
      %1768 = vadd.xlane.f32.xlu0 %v1767
      %v1769 = vpop.xlane.xlu0 %1768
      %v1770 = vadd.f32 %v1734, %v1735
      %1771 = vadd.xlane.f32.xlu0 %v1770
      %v1772 = vpop.xlane.xlu0 %1771
      %v1773 = vadd.f32 %v1736, %v1737
      %1774 = vadd.xlane.f32.xlu0 %v1773
      %v1775 = vpop.xlane.xlu0 %1774
      %v1776 = vadd.f32 %v1738, %v1739
      %1777 = vadd.xlane.f32.xlu0 %v1776
      %v1778 = vpop.xlane.xlu0 %1777
      %v1779 = vadd.f32 %v1740, %v1741
      %1780 = vadd.xlane.f32.xlu0 %v1779
      %v1781 = vpop.xlane.xlu0 %1780
      %v1782 = vadd.f32 %v1742, %v1743
      %1783 = vadd.xlane.f32.xlu0 %v1782
      %v1784 = vpop.xlane.xlu0 %1783
      %v1785 = vadd.f32 %v1744, %v1745
      %1786 = vadd.xlane.f32.xlu0 %v1785
      %v1787 = vpop.xlane.xlu0 %1786
      %v1788 = vadd.f32 %v1746, %v1747
      %1789 = vadd.xlane.f32.xlu0 %v1788
      %v1790 = vpop.xlane.xlu0 %1789
      %v1791 = vadd.f32 %v1748, %v1749
      %1792 = vadd.xlane.f32.xlu0 %v1791
      %v1793 = vpop.xlane.xlu0 %1792
      %v1794 = vadd.f32 %v1750, %v1751
      %1795 = vadd.xlane.f32.xlu0 %v1794
      %v1796 = vpop.xlane.xlu0 %1795
      %v1797 = vadd.f32 %v1752, %v1753
      %1798 = vadd.xlane.f32.xlu0 %v1797
      %v1799 = vpop.xlane.xlu0 %1798
      %v1800 = vadd.f32 %v1754, %v1755
      %1801 = vadd.xlane.f32.xlu0 %v1800
      %v1802 = vpop.xlane.xlu0 %1801
      %v1803 = vadd.f32 %v1756, %v1757
      %1804 = vadd.xlane.f32.xlu0 %v1803
      %v1805 = vpop.xlane.xlu0 %1804
      %vm1806 = vcmask 7168
      %v1807 = vsel %vm1806, %v1680, %v1760
      %v1808 = vsel %vm1806, %v1683, %v1763
      %v1809 = vsel %vm1806, %v1686, %v1766
      %v1810 = vsel %vm1806, %v1689, %v1769
      %v1811 = vsel %vm1806, %v1692, %v1772
      %v1812 = vsel %vm1806, %v1695, %v1775
      %v1813 = vsel %vm1806, %v1698, %v1778
      %v1814 = vsel %vm1806, %v1701, %v1781
      %v1815 = vsel %vm1806, %v1704, %v1784
      %v1816 = vsel %vm1806, %v1707, %v1787
      %v1817 = vsel %vm1806, %v1710, %v1790
      %v1818 = vsel %vm1806, %v1713, %v1793
      %v1819 = vsel %vm1806, %v1716, %v1796
      %v1820 = vsel %vm1806, %v1719, %v1799
      %v1821 = vsel %vm1806, %v1722, %v1802
      %v1822 = vsel %vm1806, %v1725, %v1805
      %vm1823 = vcmask 15360
      %1824 = vst.msk [vmem:[%s289] sm:$0xff] %vm1823, %v1807
      %1825 = vst.msk [vmem:[%s289 + $0x8] sm:$0xff] %vm1823, %v1808
      %1826 = vst.msk [vmem:[%s289 + $0x10] sm:$0xff] %vm1823, %v1809
      %1827 = vst.msk [vmem:[%s289 + $0x18] sm:$0xff] %vm1823, %v1810
      %1828 = vst.msk [vmem:[%s289 + $0x20] sm:$0xff] %vm1823, %v1811
      %1829 = vst.msk [vmem:[%s289 + $0x28] sm:$0xff] %vm1823, %v1812
      %1830 = vst.msk [vmem:[%s289 + $0x30] sm:$0xff] %vm1823, %v1813
      %1831 = vst.msk [vmem:[%s289 + $0x38] sm:$0xff] %vm1823, %v1814
      %1832 = vst.msk [vmem:[%s289 + $0x40] sm:$0xff] %vm1823, %v1815
      %1833 = vst.msk [vmem:[%s289 + $0x48] sm:$0xff] %vm1823, %v1816
      %1834 = vst.msk [vmem:[%s289 + $0x50] sm:$0xff] %vm1823, %v1817
      %1835 = vst.msk [vmem:[%s289 + $0x58] sm:$0xff] %vm1823, %v1818
      %1836 = vst.msk [vmem:[%s289 + $0x60] sm:$0xff] %vm1823, %v1819
      %1837 = vst.msk [vmem:[%s289 + $0x68] sm:$0xff] %vm1823, %v1820
      %1838 = vst.msk [vmem:[%s289 + $0x70] sm:$0xff] %vm1823, %v1821
      %1839 = vst.msk [vmem:[%s289 + $0x78] sm:$0xff] %vm1823, %v1822
      %p1840 = scmp.lt.s32.totalorder %s21, 1
      %s1841 = scalar_select %p1840, %s21, 1
      %p1842 = scmp.lt.s32.totalorder %s22, 0
      %s1843 = scalar_select %p1842, %s22, 0
      %s1844 = smul.addr %s1843, 16
      %s1845 = smul.addr %s1841, 16
      %s1846 = sadd.s32 %s1844, %s1845
      %s1847 = smul.addr %s1846, 8
      %s1848 = scalar_lea.vmem %s6, %s1847
      // Predicated region
      $region45: #{arnet_forward.4} parent=43 // pred_check
        %p1849 = pneg %p182
      $region46: #{arnet_forward.4} parent=43 // pred_check_branch
        %1851 = sbr.rel (%p1849) target = $region48
      $region47: #{arnet_forward.4} parent=43 // pred_region
        _
      $region48: #{arnet_forward.4} parent=43 // pred_fallthru
        _
    $region44: #{arnet_forward.4} parent=5 // pred_fallthru
      _
    %p1852 = scmp.le.s32.totalorder 2, %s12
    // Predicated region
    $region49: #{arnet_forward.4} parent=5 // pred_check
      %p1853 = pneg %p1852
    $region50: #{arnet_forward.4} parent=5 // pred_check_branch
      %1855 = sbr.rel (%p1853) target = $region52
    $region51: #{arnet_forward.4} parent=5 // pred_region
      %s1856 = ssub.s32 %s12, 2
      // Predicated region
      $region53: #{arnet_forward.4} parent=51 // pred_check
        %p1857 = pneg %p188
      $region54: #{arnet_forward.4} parent=51 // pred_check_branch
        %1859 = sbr.rel (%p1857) target = $region56
      $region55: #{arnet_forward.4} parent=51 // pred_region
        %p1860 = scmp.lt.s32.totalorder %s23, 1
        %s1861 = scalar_select %p1860, %s23, 1
        %p1862 = scmp.lt.s32.totalorder %s24, 0
        %s1863 = scalar_select %p1862, %s24, 0
        %s1864 = smul.addr %s1863, 16
        %s1865 = smul.addr %s1861, 16
        %s1866 = sadd.s32 %s1864, %s1865
        %s1867 = smul.addr %s1866, 8
        %s1868 = scalar_lea.vmem %s6, %s1867
      $region56: #{arnet_forward.4} parent=51 // pred_fallthru
        _
    $region52: #{arnet_forward.4} parent=5 // pred_fallthru
      _
  $region6: #{arnet_forward.4} parent=0 // loop_footer
    %s16 = sadd.s32 1, %s12
  $region7: #{arnet_forward.4} parent=0 // loop_footer_branch
    %11 = sbr.rel target = $region3
  $region8: #{arnet_forward.4} parent=0 // loop_exit
    _

// kernel: arnet_forward.5
$region0: #{arnet_forward.5}
  #allocation0 [shape = 'u32[]', space=smem, size = 0x4, offset = 0x4, fixed_abs, tag = 'smem constant byte address 0x4 - core index']
  #allocation1 [shape = 'u32[144,128]{1,0:T(1,128)}', space=vmem, size = 0x12000, scoped, tag = 'internal scratch']
  %s0 = inlined_call_operand.vmem [shape: f32[2,4,256], index: 0, kind: input, shape index: {}]
  %s1 = inlined_call_operand.vmem [shape: f32[128,4], index: 1, kind: input, shape index: {}]
  %s2 = inlined_call_operand.vmem [shape: f32[128,1], index: 2, kind: input, shape index: {}]
  %s3 = inlined_call_operand.vmem [shape: f32[128,2], index: 3, kind: input, shape index: {}]
  %s4 = inlined_call_operand.vmem [shape: bf16[128,128], index: 4, kind: input, shape index: {}]
  %s5 = inlined_call_operand.vmem [shape: f32[128,1], index: 5, kind: input, shape index: {}]
  %s6 = inlined_call_operand.vmem [shape: f32[128,2], index: 6, kind: input, shape index: {}]
  %s7 = inlined_call_operand.vmem [shape: bf16[8,128], index: 7, kind: input, shape index: {}]
  %s8 = inlined_call_operand.vmem [shape: f32[8,1], index: 8, kind: input, shape index: {}]
  %s9 = inlined_call_operand.vmem [shape: f32[2,8,256], index: 9, kind: output, shape index: {}]
  %s10 = sld [smem:[#allocation0]]
  $region69: #{arnet_forward.5} parent=0
    _
  %s12 = ssub.s32 1, %s10
  %s13 = scalar_select 0, %s12, %s10
  loop: start=0, step=1, limit=4
  $region2: #{arnet_forward.5} parent=0 // loop_pre_header
    _
  $region3: #{arnet_forward.5} parent=0 // loop_header
    %s15 = sphi 0, %s19
    %p16 = scmp.ge.s32.totalorder %s15, 4
    %s22 = sphi 0, %s34
    %s23 = sphi 0, %s30
    %s24 = sphi 0, %s22
    %s25 = sphi 0, %s23
    %s26 = sphi 0, %s24
    %s27 = sphi 0, %s25
    %s39 = sphi 0, %s41
    %s42 = sphi 0, %s39
    %s43 = sphi 0, %s42
    %s59 = sphi 0, %s43
    %s63 = sphi 0, %s63
    %s65 = sphi 0, %s63
    %s66 = sphi 0, %s65
    %s80 = sphi 0, %s66
    %s84 = sphi 0, %s84
    %s86 = sphi 0, %s84
    %s87 = sphi 0, %s86
    %s101 = sphi 0, %s87
    %s105 = sphi 0, %s105
    %s107 = sphi 0, %s105
    %s108 = sphi 0, %s107
    %s122 = sphi 0, %s108
    %s126 = sphi 0, %s126
    %s128 = sphi 0, %s126
    %s129 = sphi 0, %s128
    %s143 = sphi 0, %s129
    %s147 = sphi 0, %s147
    %s149 = sphi 0, %s147
    %s150 = sphi 0, %s149
    %s164 = sphi 0, %s150
    %s168 = sphi 0, %s168
    %s170 = sphi 0, %s168
    %s171 = sphi 0, %s170
    %s185 = sphi 0, %s171
    %s189 = sphi 0, %s189
    %s191 = sphi 0, %s189
    %s192 = sphi 0, %s191
    %s206 = sphi 0, %s192
    %s210 = sphi 0, %s210
    %s212 = sphi 0, %s210
    %s213 = sphi 0, %s212
    %s227 = sphi 0, %s213
    %s235 = sphi 0, %s237
    %s238 = sphi 0, %s235
    %s239 = sphi 0, %s238
    %s255 = sphi 0, %s239
  $region4: #{arnet_forward.5} parent=0 // loop_header_branch
    %18 = sbr.rel (%p16) target = $region8
  $region5: #{arnet_forward.5} parent=0 // loop_body
    %s20 = ssub.s32 %s15, 1
    %s21 = ssub.s32 %s15, 2
    %s28 = sadd.s32 1, %s23
    %p29 = scmp.ge.s32.totalorder %s28, 1
    %s30 = scalar_select %p29, 0, %s28
    %s31 = sadd.s32 1, %s22
    %s32 = scalar_select %p29, %s31, %s22
    %p33 = scmp.ge.s32.totalorder %s32, 2
    %s34 = scalar_select %p33, 0, %s32
    %s35 = ssub.s32 %s22, %s34
    %s36 = ssub.s32 %s23, %s30
    %s37 = sor.u32 %s35, %s36
    %p38 = scmp.eq.s32.totalorder %s37, 0
    %s40 = sadd.s32 %s39, 1
    %s41 = scalar_select %p38, %s39, %s40
    %p44 = pneg %p38
    %p45 = scmp.eq.s32.totalorder %s15, 1
    %p46 = por %p44, %p45
    %p47 = scmp.ne.s32.totalorder %s39, %s42
    %p48 = scmp.eq.s32.totalorder %s15, 0
    %p49 = por %p47, %p48
    %p50 = scmp.ne.s32.totalorder %s39, %s42
    %p51 = scmp.eq.s32.totalorder %s20, 1
    %p52 = por %p50, %p51
    %p53 = scmp.ne.s32.totalorder %s42, %s43
    %p54 = scmp.eq.s32.totalorder %s20, 0
    %p55 = por %p53, %p54
    %p56 = scmp.ne.s32.totalorder %s42, %s43
    %p57 = scmp.eq.s32.totalorder %s21, 1
    %p58 = por %p56, %p57
    %p60 = scmp.ne.s32.totalorder %s43, %s59
    %p61 = scmp.eq.s32.totalorder %s21, 0
    %p62 = por %p60, %p61
    %s64 = sadd.s32 %s63, 1
    %p67 = scmp.eq.s32.totalorder %s15, 1
    %p68 = scmp.ne.s32.totalorder %s63, %s65
    %p69 = scmp.eq.s32.totalorder %s15, 0
    %p70 = por %p68, %p69
    %p71 = scmp.ne.s32.totalorder %s63, %s65
    %p72 = scmp.eq.s32.totalorder %s20, 1
    %p73 = por %p71, %p72
    %p74 = scmp.ne.s32.totalorder %s65, %s66
    %p75 = scmp.eq.s32.totalorder %s20, 0
    %p76 = por %p74, %p75
    %p77 = scmp.ne.s32.totalorder %s65, %s66
    %p78 = scmp.eq.s32.totalorder %s21, 1
    %p79 = por %p77, %p78
    %p81 = scmp.ne.s32.totalorder %s66, %s80
    %p82 = scmp.eq.s32.totalorder %s21, 0
    %p83 = por %p81, %p82
    %s85 = sadd.s32 %s84, 1
    %p88 = scmp.eq.s32.totalorder %s15, 1
    %p89 = scmp.ne.s32.totalorder %s84, %s86
    %p90 = scmp.eq.s32.totalorder %s15, 0
    %p91 = por %p89, %p90
    %p92 = scmp.ne.s32.totalorder %s84, %s86
    %p93 = scmp.eq.s32.totalorder %s20, 1
    %p94 = por %p92, %p93
    %p95 = scmp.ne.s32.totalorder %s86, %s87
    %p96 = scmp.eq.s32.totalorder %s20, 0
    %p97 = por %p95, %p96
    %p98 = scmp.ne.s32.totalorder %s86, %s87
    %p99 = scmp.eq.s32.totalorder %s21, 1
    %p100 = por %p98, %p99
    %p102 = scmp.ne.s32.totalorder %s87, %s101
    %p103 = scmp.eq.s32.totalorder %s21, 0
    %p104 = por %p102, %p103
    %s106 = sadd.s32 %s105, 1
    %p109 = scmp.eq.s32.totalorder %s15, 1
    %p110 = scmp.ne.s32.totalorder %s105, %s107
    %p111 = scmp.eq.s32.totalorder %s15, 0
    %p112 = por %p110, %p111
    %p113 = scmp.ne.s32.totalorder %s105, %s107
    %p114 = scmp.eq.s32.totalorder %s20, 1
    %p115 = por %p113, %p114
    %p116 = scmp.ne.s32.totalorder %s107, %s108
    %p117 = scmp.eq.s32.totalorder %s20, 0
    %p118 = por %p116, %p117
    %p119 = scmp.ne.s32.totalorder %s107, %s108
    %p120 = scmp.eq.s32.totalorder %s21, 1
    %p121 = por %p119, %p120
    %p123 = scmp.ne.s32.totalorder %s108, %s122
    %p124 = scmp.eq.s32.totalorder %s21, 0
    %p125 = por %p123, %p124
    %s127 = sadd.s32 %s126, 1
    %p130 = scmp.eq.s32.totalorder %s15, 1
    %p131 = scmp.ne.s32.totalorder %s126, %s128
    %p132 = scmp.eq.s32.totalorder %s15, 0
    %p133 = por %p131, %p132
    %p134 = scmp.ne.s32.totalorder %s126, %s128
    %p135 = scmp.eq.s32.totalorder %s20, 1
    %p136 = por %p134, %p135
    %p137 = scmp.ne.s32.totalorder %s128, %s129
    %p138 = scmp.eq.s32.totalorder %s20, 0
    %p139 = por %p137, %p138
    %p140 = scmp.ne.s32.totalorder %s128, %s129
    %p141 = scmp.eq.s32.totalorder %s21, 1
    %p142 = por %p140, %p141
    %p144 = scmp.ne.s32.totalorder %s129, %s143
    %p145 = scmp.eq.s32.totalorder %s21, 0
    %p146 = por %p144, %p145
    %s148 = sadd.s32 %s147, 1
    %p151 = scmp.eq.s32.totalorder %s15, 1
    %p152 = scmp.ne.s32.totalorder %s147, %s149
    %p153 = scmp.eq.s32.totalorder %s15, 0
    %p154 = por %p152, %p153
    %p155 = scmp.ne.s32.totalorder %s147, %s149
    %p156 = scmp.eq.s32.totalorder %s20, 1
    %p157 = por %p155, %p156
    %p158 = scmp.ne.s32.totalorder %s149, %s150
    %p159 = scmp.eq.s32.totalorder %s20, 0
    %p160 = por %p158, %p159
    %p161 = scmp.ne.s32.totalorder %s149, %s150
    %p162 = scmp.eq.s32.totalorder %s21, 1
    %p163 = por %p161, %p162
    %p165 = scmp.ne.s32.totalorder %s150, %s164
    %p166 = scmp.eq.s32.totalorder %s21, 0
    %p167 = por %p165, %p166
    %s169 = sadd.s32 %s168, 1
    %p172 = scmp.eq.s32.totalorder %s15, 1
    %p173 = scmp.ne.s32.totalorder %s168, %s170
    %p174 = scmp.eq.s32.totalorder %s15, 0
    %p175 = por %p173, %p174
    %p176 = scmp.ne.s32.totalorder %s168, %s170
    %p177 = scmp.eq.s32.totalorder %s20, 1
    %p178 = por %p176, %p177
    %p179 = scmp.ne.s32.totalorder %s170, %s171
    %p180 = scmp.eq.s32.totalorder %s20, 0
    %p181 = por %p179, %p180
    %p182 = scmp.ne.s32.totalorder %s170, %s171
    %p183 = scmp.eq.s32.totalorder %s21, 1
    %p184 = por %p182, %p183
    %p186 = scmp.ne.s32.totalorder %s171, %s185
    %p187 = scmp.eq.s32.totalorder %s21, 0
    %p188 = por %p186, %p187
    %s190 = sadd.s32 %s189, 1
    %p193 = scmp.eq.s32.totalorder %s15, 1
    %p194 = scmp.ne.s32.totalorder %s189, %s191
    %p195 = scmp.eq.s32.totalorder %s15, 0
    %p196 = por %p194, %p195
    %p197 = scmp.ne.s32.totalorder %s189, %s191
    %p198 = scmp.eq.s32.totalorder %s20, 1
    %p199 = por %p197, %p198
    %p200 = scmp.ne.s32.totalorder %s191, %s192
    %p201 = scmp.eq.s32.totalorder %s20, 0
    %p202 = por %p200, %p201
    %p203 = scmp.ne.s32.totalorder %s191, %s192
    %p204 = scmp.eq.s32.totalorder %s21, 1
    %p205 = por %p203, %p204
    %p207 = scmp.ne.s32.totalorder %s192, %s206
    %p208 = scmp.eq.s32.totalorder %s21, 0
    %p209 = por %p207, %p208
    %s211 = sadd.s32 %s210, 1
    %p214 = scmp.eq.s32.totalorder %s15, 1
    %p215 = scmp.ne.s32.totalorder %s210, %s212
    %p216 = scmp.eq.s32.totalorder %s15, 0
    %p217 = por %p215, %p216
    %p218 = scmp.ne.s32.totalorder %s210, %s212
    %p219 = scmp.eq.s32.totalorder %s20, 1
    %p220 = por %p218, %p219
    %p221 = scmp.ne.s32.totalorder %s212, %s213
    %p222 = scmp.eq.s32.totalorder %s20, 0
    %p223 = por %p221, %p222
    %p224 = scmp.ne.s32.totalorder %s212, %s213
    %p225 = scmp.eq.s32.totalorder %s21, 1
    %p226 = por %p224, %p225
    %p228 = scmp.ne.s32.totalorder %s213, %s227
    %p229 = scmp.eq.s32.totalorder %s21, 0
    %p230 = por %p228, %p229
    %s231 = ssub.s32 %s22, %s34
    %s232 = ssub.s32 %s23, %s30
    %s233 = sor.u32 %s231, %s232
    %p234 = scmp.eq.s32.totalorder %s233, 0
    %s236 = sadd.s32 %s235, 1
    %s237 = scalar_select %p234, %s235, %s236
    %p240 = pneg %p234
    %p241 = scmp.eq.s32.totalorder %s15, 1
    %p242 = por %p240, %p241
    %p243 = scmp.ne.s32.totalorder %s235, %s238
    %p244 = scmp.eq.s32.totalorder %s15, 0
    %p245 = por %p243, %p244
    %p246 = scmp.ne.s32.totalorder %s235, %s238
    %p247 = scmp.eq.s32.totalorder %s20, 1
    %p248 = por %p246, %p247
    %p249 = scmp.ne.s32.totalorder %s238, %s239
    %p250 = scmp.eq.s32.totalorder %s20, 0
    %p251 = por %p249, %p250
    %p252 = scmp.ne.s32.totalorder %s238, %s239
    %p253 = scmp.eq.s32.totalorder %s21, 1
    %p254 = por %p252, %p253
    %p256 = scmp.ne.s32.totalorder %s239, %s255
    %p257 = scmp.eq.s32.totalorder %s21, 0
    %p258 = por %p256, %p257
    %p259 = scmp.le.s32.totalorder 1, %s15
    %p260 = scmp.lt.s32.totalorder %s15, 3
    %p261 = pnand %p259, %p260
    %p262 = pneg %p261
    // Predicated region
    $region9: #{arnet_forward.5} parent=5 // pred_check
      _
    $region10: #{arnet_forward.5} parent=5 // pred_check_branch
      %264 = sbr.rel (%p261) target = $region12
    $region11: #{arnet_forward.5} parent=5 // pred_region
      %s265 = ssub.s32 %s15, 1
      // Predicated region
      $region13: #{arnet_forward.5} parent=11 // pred_check
        %p266 = pneg %p76
      $region14: #{arnet_forward.5} parent=11 // pred_check_branch
        %268 = sbr.rel (%p266) target = $region16
      $region15: #{arnet_forward.5} parent=11 // pred_region
        _
      $region16: #{arnet_forward.5} parent=11 // pred_fallthru
        _
      // Predicated region
      $region17: #{arnet_forward.5} parent=11 // pred_check
        %p269 = pneg %p97
      $region18: #{arnet_forward.5} parent=11 // pred_check_branch
        %271 = sbr.rel (%p269) target = $region20
      $region19: #{arnet_forward.5} parent=11 // pred_region
        _
      $region20: #{arnet_forward.5} parent=11 // pred_fallthru
        _
      // Predicated region
      $region21: #{arnet_forward.5} parent=11 // pred_check
        %p272 = pneg %p118
      $region22: #{arnet_forward.5} parent=11 // pred_check_branch
        %274 = sbr.rel (%p272) target = $region24
      $region23: #{arnet_forward.5} parent=11 // pred_region
        _
      $region24: #{arnet_forward.5} parent=11 // pred_fallthru
        _
      // Predicated region
      $region25: #{arnet_forward.5} parent=11 // pred_check
        %p275 = pneg %p139
      $region26: #{arnet_forward.5} parent=11 // pred_check_branch
        %277 = sbr.rel (%p275) target = $region28
      $region27: #{arnet_forward.5} parent=11 // pred_region
        _
      $region28: #{arnet_forward.5} parent=11 // pred_fallthru
        _
      // Predicated region
      $region29: #{arnet_forward.5} parent=11 // pred_check
        %p278 = pneg %p160
      $region30: #{arnet_forward.5} parent=11 // pred_check_branch
        %280 = sbr.rel (%p278) target = $region32
      $region31: #{arnet_forward.5} parent=11 // pred_region
        _
      $region32: #{arnet_forward.5} parent=11 // pred_fallthru
        _
      // Predicated region
      $region33: #{arnet_forward.5} parent=11 // pred_check
        %p281 = pneg %p181
      $region34: #{arnet_forward.5} parent=11 // pred_check_branch
        %283 = sbr.rel (%p281) target = $region36
      $region35: #{arnet_forward.5} parent=11 // pred_region
        _
      $region36: #{arnet_forward.5} parent=11 // pred_fallthru
        _
      // Predicated region
      $region37: #{arnet_forward.5} parent=11 // pred_check
        %p284 = pneg %p202
      $region38: #{arnet_forward.5} parent=11 // pred_check_branch
        %286 = sbr.rel (%p284) target = $region40
      $region39: #{arnet_forward.5} parent=11 // pred_region
        _
      $region40: #{arnet_forward.5} parent=11 // pred_fallthru
        _
      // Predicated region
      $region41: #{arnet_forward.5} parent=11 // pred_check
        %p287 = pneg %p223
      $region42: #{arnet_forward.5} parent=11 // pred_check_branch
        %289 = sbr.rel (%p287) target = $region44
      $region43: #{arnet_forward.5} parent=11 // pred_region
        _
      $region44: #{arnet_forward.5} parent=11 // pred_fallthru
        _
    $region12: #{arnet_forward.5} parent=5 // pred_fallthru
      _
    %p290 = scmp.lt.s32.totalorder %s15, 2
    // Predicated region
    $region45: #{arnet_forward.5} parent=5 // pred_check
      %p291 = pneg %p290
    $region46: #{arnet_forward.5} parent=5 // pred_check_branch
      %293 = sbr.rel (%p291) target = $region48
    $region47: #{arnet_forward.5} parent=5 // pred_region
      // Predicated region
      $region49: #{arnet_forward.5} parent=47 // pred_check
        %p294 = pneg %p49
      $region50: #{arnet_forward.5} parent=47 // pred_check_branch
        %296 = sbr.rel (%p294) target = $region52
      $region51: #{arnet_forward.5} parent=47 // pred_region
        %s297 = smul.u32 2, %s23
        %p298 = scmp.lt.s32.totalorder %s22, 1
        %s299 = scalar_select %p298, %s22, 1
        %p300 = scmp.lt.s32.totalorder %s297, 1
        %s301 = scalar_select %p300, %s297, 1
        %s302 = smul.addr %s299, 2
        %s303 = sadd.s32 %s301, %s302
        %s304 = smul.addr %s303, 4
        %s305 = scalar_lea.vmem %s0, %s304
        %s306 = smul.u32 2, %s23
      $region52: #{arnet_forward.5} parent=47 // pred_fallthru
        _
    $region48: #{arnet_forward.5} parent=5 // pred_fallthru
      _
    %p307 = scmp.le.s32.totalorder 1, %s15
    %p308 = scmp.lt.s32.totalorder %s15, 3
    %p309 = pnand %p307, %p308
    %p310 = pneg %p309
    // Predicated region
    $region53: #{arnet_forward.5} parent=5 // pred_check
      _
    $region54: #{arnet_forward.5} parent=5 // pred_check_branch
      %312 = sbr.rel (%p309) target = $region56
    $region55: #{arnet_forward.5} parent=5 // pred_region
      %s313 = ssub.s32 %s15, 1
      %s314 = smul.u32 2, %s25
      %p315 = scmp.lt.s32.totalorder %s24, 1
      %s316 = scalar_select %p315, %s24, 1
      %p317 = scmp.lt.s32.totalorder %s314, 1
      %s318 = scalar_select %p317, %s314, 1
      %s319 = smul.addr %s316, 2
      %s320 = sadd.s32 %s318, %s319
      %s321 = smul.addr %s320, 4
      %s322 = scalar_lea.vmem %s0, %s321
      %p323 = pneg %p55
      %p324 = pneg %p52
      %p325 = pneg %p76
      %p326 = pneg %p73
      %p327 = pneg %p97
      %p328 = pneg %p94
      %p329 = pneg %p118
      %p330 = pneg %p115
      %p331 = pneg %p139
      %p332 = pneg %p136
      %p333 = pneg %p160
      %p334 = pneg %p157
      %p335 = pneg %p181
      %p336 = pneg %p178
      %p337 = pneg %p202
      %p338 = pneg %p199
      %p339 = pneg %p223
      %p340 = pneg %p220
      %p341 = pneg %p251
      %p342 = pneg %p248
      %s343 = smul.u32 2, %s25
      %p344 = scmp.lt.s32.totalorder %s24, 1
      %s345 = scalar_select %p344, %s24, 1
      %p346 = scmp.lt.s32.totalorder %s343, 1
      %s347 = scalar_select %p346, %s343, 1
      %s348 = smul.addr %s345, 2
      %s349 = sadd.s32 %s347, %s348
      %s350 = smul.addr %s349, 8
      %s351 = scalar_lea.vmem %s9, %s350
      %s352 = smul.u32 2, %s25
      %p353 = scmp.lt.s32.totalorder %s24, 1
      %s354 = scalar_select %p353, %s24, 1
      %p355 = scmp.lt.s32.totalorder %s352, 1
      %s356 = scalar_select %p355, %s352, 1
      %s357 = smul.addr %s354, 2
      %s358 = sadd.s32 %s356, %s357
      %s359 = smul.addr %s358, 4
      %s360 = scalar_lea.vmem %s0, %s359
      %s361 = smul.u32 2, %s25
      %s362 = smul.u32 2, %s25
      %p363 = scmp.lt.s32.totalorder %s24, 1
      %s364 = scalar_select %p363, %s24, 1
      %p365 = scmp.lt.s32.totalorder %s362, 1
      %s366 = scalar_select %p365, %s362, 1
      %s367 = smul.addr %s364, 2
      %s368 = sadd.s32 %s366, %s367
      %s369 = smul.addr %s368, 8
      %s370 = scalar_lea.vmem %s9, %s369
      %s371 = smul.u32 2, %s25
      %v373 = vld [vmem:[%s360] sm:$0xff]
      %v374 = vld [vmem:[%s1] sm:$0xff]
      %v375 = vld [vmem:[%s1 + $0x8] sm:$0xff]
      %v376 = vld [vmem:[%s1 + $0x10] sm:$0xff]
      %v377 = vld [vmem:[%s1 + $0x18] sm:$0xff]
      %v378 = vld [vmem:[%s1 + $0x20] sm:$0xff]
      %v379 = vld [vmem:[%s1 + $0x28] sm:$0xff]
      %v380 = vld [vmem:[%s1 + $0x30] sm:$0xff]
      %v381 = vld [vmem:[%s1 + $0x38] sm:$0xff]
      %v382 = vld [vmem:[%s1 + $0x40] sm:$0xff]
      %v383 = vld [vmem:[%s1 + $0x48] sm:$0xff]
      %v384 = vld [vmem:[%s1 + $0x50] sm:$0xff]
      %v385 = vld [vmem:[%s1 + $0x58] sm:$0xff]
      %v386 = vld [vmem:[%s1 + $0x60] sm:$0xff]
      %v387 = vld [vmem:[%s1 + $0x68] sm:$0xff]
      %v388 = vld [vmem:[%s1 + $0x70] sm:$0xff]
      %v389 = vld [vmem:[%s1 + $0x78] sm:$0xff]
      %v390 = vld [vmem:[%s2] sm:$0xff]
      %v391 = vld [vmem:[%s2 + $0x8] sm:$0xff]
      %v392 = vld [vmem:[%s2 + $0x10] sm:$0xff]
      %v393 = vld [vmem:[%s2 + $0x18] sm:$0xff]
      %v394 = vld [vmem:[%s2 + $0x20] sm:$0xff]
      %v395 = vld [vmem:[%s2 + $0x28] sm:$0xff]
      %v396 = vld [vmem:[%s2 + $0x30] sm:$0xff]
      %v397 = vld [vmem:[%s2 + $0x38] sm:$0xff]
      %v398 = vld [vmem:[%s2 + $0x40] sm:$0xff]
      %v399 = vld [vmem:[%s2 + $0x48] sm:$0xff]
      %v400 = vld [vmem:[%s2 + $0x50] sm:$0xff]
      %v401 = vld [vmem:[%s2 + $0x58] sm:$0xff]
      %v402 = vld [vmem:[%s2 + $0x60] sm:$0xff]
      %v403 = vld [vmem:[%s2 + $0x68] sm:$0xff]
      %v404 = vld [vmem:[%s2 + $0x70] sm:$0xff]
      %v405 = vld [vmem:[%s2 + $0x78] sm:$0xff]
      %407 = vset.pattern.permute.xlu0 0
      %408 = vperm.xlu0 %407, %v390
      %v409 = vpop.permute.xlu0 %408
      %412 = vset.pattern.permute.xlu0 0
      %413 = vperm.xlu0 %412, %v391
      %v414 = vpop.permute.xlu0 %413
      %417 = vset.pattern.permute.xlu0 0
      %418 = vperm.xlu0 %417, %v392
      %v419 = vpop.permute.xlu0 %418
      %422 = vset.pattern.permute.xlu0 0
      %423 = vperm.xlu0 %422, %v393
      %v424 = vpop.permute.xlu0 %423
      %427 = vset.pattern.permute.xlu0 0
      %428 = vperm.xlu0 %427, %v394
      %v429 = vpop.permute.xlu0 %428
      %432 = vset.pattern.permute.xlu0 0
      %433 = vperm.xlu0 %432, %v395
      %v434 = vpop.permute.xlu0 %433
      %437 = vset.pattern.permute.xlu0 0
      %438 = vperm.xlu0 %437, %v396
      %v439 = vpop.permute.xlu0 %438
      %442 = vset.pattern.permute.xlu0 0
      %443 = vperm.xlu0 %442, %v397
      %v444 = vpop.permute.xlu0 %443
      %447 = vset.pattern.permute.xlu0 0
      %448 = vperm.xlu0 %447, %v398
      %v449 = vpop.permute.xlu0 %448
      %452 = vset.pattern.permute.xlu0 0
      %453 = vperm.xlu0 %452, %v399
      %v454 = vpop.permute.xlu0 %453
      %457 = vset.pattern.permute.xlu0 0
      %458 = vperm.xlu0 %457, %v400
      %v459 = vpop.permute.xlu0 %458
      %462 = vset.pattern.permute.xlu0 0
      %463 = vperm.xlu0 %462, %v401
      %v464 = vpop.permute.xlu0 %463
      %467 = vset.pattern.permute.xlu0 0
      %468 = vperm.xlu0 %467, %v402
      %v469 = vpop.permute.xlu0 %468
      %472 = vset.pattern.permute.xlu0 0
      %473 = vperm.xlu0 %472, %v403
      %v474 = vpop.permute.xlu0 %473
      %477 = vset.pattern.permute.xlu0 0
      %478 = vperm.xlu0 %477, %v404
      %v479 = vpop.permute.xlu0 %478
      %482 = vset.pattern.permute.xlu0 0
      %483 = vperm.xlu0 %482, %v405
      %v484 = vpop.permute.xlu0 %483
      %487 = vset.pattern.permute.xlu0 0
      %488 = vperm.xlu0 %487, %v374
      %v489 = vpop.permute.xlu0 %488
      %492 = vset.pattern.permute.xlu0 0
      %493 = vperm.xlu0 %492, %v375
      %v494 = vpop.permute.xlu0 %493
      %497 = vset.pattern.permute.xlu0 0
      %498 = vperm.xlu0 %497, %v376
      %v499 = vpop.permute.xlu0 %498
      %502 = vset.pattern.permute.xlu0 0
      %503 = vperm.xlu0 %502, %v377
      %v504 = vpop.permute.xlu0 %503
      %507 = vset.pattern.permute.xlu0 0
      %508 = vperm.xlu0 %507, %v378
      %v509 = vpop.permute.xlu0 %508
      %512 = vset.pattern.permute.xlu0 0
      %513 = vperm.xlu0 %512, %v379
      %v514 = vpop.permute.xlu0 %513
      %517 = vset.pattern.permute.xlu0 0
      %518 = vperm.xlu0 %517, %v380
      %v519 = vpop.permute.xlu0 %518
      %522 = vset.pattern.permute.xlu0 0
      %523 = vperm.xlu0 %522, %v381
      %v524 = vpop.permute.xlu0 %523
      %527 = vset.pattern.permute.xlu0 0
      %528 = vperm.xlu0 %527, %v382
      %v529 = vpop.permute.xlu0 %528
      %532 = vset.pattern.permute.xlu0 0
      %533 = vperm.xlu0 %532, %v383
      %v534 = vpop.permute.xlu0 %533
      %537 = vset.pattern.permute.xlu0 0
      %538 = vperm.xlu0 %537, %v384
      %v539 = vpop.permute.xlu0 %538
      %542 = vset.pattern.permute.xlu0 0
      %543 = vperm.xlu0 %542, %v385
      %v544 = vpop.permute.xlu0 %543
      %547 = vset.pattern.permute.xlu0 0
      %548 = vperm.xlu0 %547, %v386
      %v549 = vpop.permute.xlu0 %548
      %552 = vset.pattern.permute.xlu0 0
      %553 = vperm.xlu0 %552, %v387
      %v554 = vpop.permute.xlu0 %553
      %557 = vset.pattern.permute.xlu0 0
      %558 = vperm.xlu0 %557, %v388
      %v559 = vpop.permute.xlu0 %558
      %562 = vset.pattern.permute.xlu0 0
      %563 = vperm.xlu0 %562, %v389
      %v564 = vpop.permute.xlu0 %563
      %v567 = vlaneseq
      %v568 = vshrl.u32 %v567, 7
      %v569 = vsub.s32 0, %v568
      %v570 = vrot.slane %v373, %v569
      %v571 = vlaneseq
      %v572 = vshrl.u32 %v571, 7
      %v573 = vsub.s32 4, %v572
      %v574 = vrot.slane %v373, %v573
      %v577 = vlaneseq
      %v578 = vshrl.u32 %v577, 7
      %v579 = vsub.s32 0, %v578
      %v580 = vrot.slane %v570, %v579
      %v581 = vlaneseq
      %v582 = vshrl.u32 %v581, 7
      %v583 = vsub.s32 0, %v582
      %v584 = vrot.slane %v574, %v583
      %v585 = vmul.f32 %v489, %v580
      %v586 = vmul.f32 %v489, %v584
      %v587 = vmul.f32 %v494, %v580
      %v588 = vmul.f32 %v494, %v584
      %v589 = vmul.f32 %v499, %v580
      %v590 = vmul.f32 %v499, %v584
      %v591 = vmul.f32 %v504, %v580
      %v592 = vmul.f32 %v504, %v584
      %v593 = vmul.f32 %v509, %v580
      %v594 = vmul.f32 %v509, %v584
      %v595 = vmul.f32 %v514, %v580
      %v596 = vmul.f32 %v514, %v584
      %v597 = vmul.f32 %v519, %v580
      %v598 = vmul.f32 %v519, %v584
      %v599 = vmul.f32 %v524, %v580
      %v600 = vmul.f32 %v524, %v584
      %v601 = vmul.f32 %v529, %v580
      %v602 = vmul.f32 %v529, %v584
      %v603 = vmul.f32 %v534, %v580
      %v604 = vmul.f32 %v534, %v584
      %v605 = vmul.f32 %v539, %v580
      %v606 = vmul.f32 %v539, %v584
      %v607 = vmul.f32 %v544, %v580
      %v608 = vmul.f32 %v544, %v584
      %v609 = vmul.f32 %v549, %v580
      %v610 = vmul.f32 %v549, %v584
      %v611 = vmul.f32 %v554, %v580
      %v612 = vmul.f32 %v554, %v584
      %v613 = vmul.f32 %v559, %v580
      %v614 = vmul.f32 %v559, %v584
      %v615 = vmul.f32 %v564, %v580
      %v616 = vmul.f32 %v564, %v584
      %v617 = vadd.f32 %v409, %v585
      %v618 = vadd.f32 %v409, %v586
      %v619 = vadd.f32 %v414, %v587
      %v620 = vadd.f32 %v414, %v588
      %v621 = vadd.f32 %v419, %v589
      %v622 = vadd.f32 %v419, %v590
      %v623 = vadd.f32 %v424, %v591
      %v624 = vadd.f32 %v424, %v592
      %v625 = vadd.f32 %v429, %v593
      %v626 = vadd.f32 %v429, %v594
      %v627 = vadd.f32 %v434, %v595
      %v628 = vadd.f32 %v434, %v596
      %v629 = vadd.f32 %v439, %v597
      %v630 = vadd.f32 %v439, %v598
      %v631 = vadd.f32 %v444, %v599
      %v632 = vadd.f32 %v444, %v600
      %v633 = vadd.f32 %v449, %v601
      %v634 = vadd.f32 %v449, %v602
      %v635 = vadd.f32 %v454, %v603
      %v636 = vadd.f32 %v454, %v604
      %v637 = vadd.f32 %v459, %v605
      %v638 = vadd.f32 %v459, %v606
      %v639 = vadd.f32 %v464, %v607
      %v640 = vadd.f32 %v464, %v608
      %v641 = vadd.f32 %v469, %v609
      %v642 = vadd.f32 %v469, %v610
      %v643 = vadd.f32 %v474, %v611
      %v644 = vadd.f32 %v474, %v612
      %v645 = vadd.f32 %v479, %v613
      %v646 = vadd.f32 %v479, %v614
      %v647 = vadd.f32 %v484, %v615
      %v648 = vadd.f32 %v484, %v616
      %649 = vset.pattern.permute.xlu0 1
      %650 = vperm.xlu0 %649, %v374
      %v651 = vpop.permute.xlu0 %650
      %653 = vset.pattern.permute.xlu0 1
      %654 = vperm.xlu0 %653, %v375
      %v655 = vpop.permute.xlu0 %654
      %657 = vset.pattern.permute.xlu0 1
      %658 = vperm.xlu0 %657, %v376
      %v659 = vpop.permute.xlu0 %658
      %661 = vset.pattern.permute.xlu0 1
      %662 = vperm.xlu0 %661, %v377
      %v663 = vpop.permute.xlu0 %662
      %665 = vset.pattern.permute.xlu0 1
      %666 = vperm.xlu0 %665, %v378
      %v667 = vpop.permute.xlu0 %666
      %669 = vset.pattern.permute.xlu0 1
      %670 = vperm.xlu0 %669, %v379
      %v671 = vpop.permute.xlu0 %670
      %673 = vset.pattern.permute.xlu0 1
      %674 = vperm.xlu0 %673, %v380
      %v675 = vpop.permute.xlu0 %674
      %677 = vset.pattern.permute.xlu0 1
      %678 = vperm.xlu0 %677, %v381
      %v679 = vpop.permute.xlu0 %678
      %681 = vset.pattern.permute.xlu0 1
      %682 = vperm.xlu0 %681, %v382
      %v683 = vpop.permute.xlu0 %682
      %685 = vset.pattern.permute.xlu0 1
      %686 = vperm.xlu0 %685, %v383
      %v687 = vpop.permute.xlu0 %686
      %689 = vset.pattern.permute.xlu0 1
      %690 = vperm.xlu0 %689, %v384
      %v691 = vpop.permute.xlu0 %690
      %693 = vset.pattern.permute.xlu0 1
      %694 = vperm.xlu0 %693, %v385
      %v695 = vpop.permute.xlu0 %694
      %697 = vset.pattern.permute.xlu0 1
      %698 = vperm.xlu0 %697, %v386
      %v699 = vpop.permute.xlu0 %698
      %701 = vset.pattern.permute.xlu0 1
      %702 = vperm.xlu0 %701, %v387
      %v703 = vpop.permute.xlu0 %702
      %705 = vset.pattern.permute.xlu0 1
      %706 = vperm.xlu0 %705, %v388
      %v707 = vpop.permute.xlu0 %706
      %709 = vset.pattern.permute.xlu0 1
      %710 = vperm.xlu0 %709, %v389
      %v711 = vpop.permute.xlu0 %710
      %v713 = vlaneseq
      %v714 = vshrl.u32 %v713, 7
      %v715 = vsub.s32 1, %v714
      %v716 = vrot.slane %v373, %v715
      %v717 = vlaneseq
      %v718 = vshrl.u32 %v717, 7
      %v719 = vsub.s32 5, %v718
      %v720 = vrot.slane %v373, %v719
      %v723 = vlaneseq
      %v724 = vshrl.u32 %v723, 7
      %v725 = vsub.s32 1, %v724
      %v726 = vrot.slane %v716, %v725
      %v727 = vlaneseq
      %v728 = vshrl.u32 %v727, 7
      %v729 = vsub.s32 1, %v728
      %v730 = vrot.slane %v720, %v729
      %v731 = vmul.f32 %v651, %v726
      %v732 = vmul.f32 %v651, %v730
      %v733 = vmul.f32 %v655, %v726
      %v734 = vmul.f32 %v655, %v730
      %v735 = vmul.f32 %v659, %v726
      %v736 = vmul.f32 %v659, %v730
      %v737 = vmul.f32 %v663, %v726
      %v738 = vmul.f32 %v663, %v730
      %v739 = vmul.f32 %v667, %v726
      %v740 = vmul.f32 %v667, %v730
      %v741 = vmul.f32 %v671, %v726
      %v742 = vmul.f32 %v671, %v730
      %v743 = vmul.f32 %v675, %v726
      %v744 = vmul.f32 %v675, %v730
      %v745 = vmul.f32 %v679, %v726
      %v746 = vmul.f32 %v679, %v730
      %v747 = vmul.f32 %v683, %v726
      %v748 = vmul.f32 %v683, %v730
      %v749 = vmul.f32 %v687, %v726
      %v750 = vmul.f32 %v687, %v730
      %v751 = vmul.f32 %v691, %v726
      %v752 = vmul.f32 %v691, %v730
      %v753 = vmul.f32 %v695, %v726
      %v754 = vmul.f32 %v695, %v730
      %v755 = vmul.f32 %v699, %v726
      %v756 = vmul.f32 %v699, %v730
      %v757 = vmul.f32 %v703, %v726
      %v758 = vmul.f32 %v703, %v730
      %v759 = vmul.f32 %v707, %v726
      %v760 = vmul.f32 %v707, %v730
      %v761 = vmul.f32 %v711, %v726
      %v762 = vmul.f32 %v711, %v730
      %v763 = vadd.f32 %v617, %v731
      %v764 = vadd.f32 %v618, %v732
      %v765 = vadd.f32 %v619, %v733
      %v766 = vadd.f32 %v620, %v734
      %v767 = vadd.f32 %v621, %v735
      %v768 = vadd.f32 %v622, %v736
      %v769 = vadd.f32 %v623, %v737
      %v770 = vadd.f32 %v624, %v738
      %v771 = vadd.f32 %v625, %v739
      %v772 = vadd.f32 %v626, %v740
      %v773 = vadd.f32 %v627, %v741
      %v774 = vadd.f32 %v628, %v742
      %v775 = vadd.f32 %v629, %v743
      %v776 = vadd.f32 %v630, %v744
      %v777 = vadd.f32 %v631, %v745
      %v778 = vadd.f32 %v632, %v746
      %v779 = vadd.f32 %v633, %v747
      %v780 = vadd.f32 %v634, %v748
      %v781 = vadd.f32 %v635, %v749
      %v782 = vadd.f32 %v636, %v750
      %v783 = vadd.f32 %v637, %v751
      %v784 = vadd.f32 %v638, %v752
      %v785 = vadd.f32 %v639, %v753
      %v786 = vadd.f32 %v640, %v754
      %v787 = vadd.f32 %v641, %v755
      %v788 = vadd.f32 %v642, %v756
      %v789 = vadd.f32 %v643, %v757
      %v790 = vadd.f32 %v644, %v758
      %v791 = vadd.f32 %v645, %v759
      %v792 = vadd.f32 %v646, %v760
      %v793 = vadd.f32 %v647, %v761
      %v794 = vadd.f32 %v648, %v762
      %795 = vset.pattern.permute.xlu0 2
      %796 = vperm.xlu0 %795, %v374
      %v797 = vpop.permute.xlu0 %796
      %799 = vset.pattern.permute.xlu0 2
      %800 = vperm.xlu0 %799, %v375
      %v801 = vpop.permute.xlu0 %800
      %803 = vset.pattern.permute.xlu0 2
      %804 = vperm.xlu0 %803, %v376
      %v805 = vpop.permute.xlu0 %804
      %807 = vset.pattern.permute.xlu0 2
      %808 = vperm.xlu0 %807, %v377
      %v809 = vpop.permute.xlu0 %808
      %811 = vset.pattern.permute.xlu0 2
      %812 = vperm.xlu0 %811, %v378
      %v813 = vpop.permute.xlu0 %812
      %815 = vset.pattern.permute.xlu0 2
      %816 = vperm.xlu0 %815, %v379
      %v817 = vpop.permute.xlu0 %816
      %819 = vset.pattern.permute.xlu0 2
      %820 = vperm.xlu0 %819, %v380
      %v821 = vpop.permute.xlu0 %820
      %823 = vset.pattern.permute.xlu0 2
      %824 = vperm.xlu0 %823, %v381
      %v825 = vpop.permute.xlu0 %824
      %827 = vset.pattern.permute.xlu0 2
      %828 = vperm.xlu0 %827, %v382
      %v829 = vpop.permute.xlu0 %828
      %831 = vset.pattern.permute.xlu0 2
      %832 = vperm.xlu0 %831, %v383
      %v833 = vpop.permute.xlu0 %832
      %835 = vset.pattern.permute.xlu0 2
      %836 = vperm.xlu0 %835, %v384
      %v837 = vpop.permute.xlu0 %836
      %839 = vset.pattern.permute.xlu0 2
      %840 = vperm.xlu0 %839, %v385
      %v841 = vpop.permute.xlu0 %840
      %843 = vset.pattern.permute.xlu0 2
      %844 = vperm.xlu0 %843, %v386
      %v845 = vpop.permute.xlu0 %844
      %847 = vset.pattern.permute.xlu0 2
      %848 = vperm.xlu0 %847, %v387
      %v849 = vpop.permute.xlu0 %848
      %851 = vset.pattern.permute.xlu0 2
      %852 = vperm.xlu0 %851, %v388
      %v853 = vpop.permute.xlu0 %852
      %855 = vset.pattern.permute.xlu0 2
      %856 = vperm.xlu0 %855, %v389
      %v857 = vpop.permute.xlu0 %856
      %v859 = vlaneseq
      %v860 = vshrl.u32 %v859, 7
      %v861 = vsub.s32 2, %v860
      %v862 = vrot.slane %v373, %v861
      %v863 = vlaneseq
      %v864 = vshrl.u32 %v863, 7
      %v865 = vsub.s32 6, %v864
      %v866 = vrot.slane %v373, %v865
      %v869 = vlaneseq
      %v870 = vshrl.u32 %v869, 7
      %v871 = vsub.s32 2, %v870
      %v872 = vrot.slane %v862, %v871
      %v873 = vlaneseq
      %v874 = vshrl.u32 %v873, 7
      %v875 = vsub.s32 2, %v874
      %v876 = vrot.slane %v866, %v875
      %v877 = vmul.f32 %v797, %v872
      %v878 = vmul.f32 %v797, %v876
      %v879 = vmul.f32 %v801, %v872
      %v880 = vmul.f32 %v801, %v876
      %v881 = vmul.f32 %v805, %v872
      %v882 = vmul.f32 %v805, %v876
      %v883 = vmul.f32 %v809, %v872
      %v884 = vmul.f32 %v809, %v876
      %v885 = vmul.f32 %v813, %v872
      %v886 = vmul.f32 %v813, %v876
      %v887 = vmul.f32 %v817, %v872
      %v888 = vmul.f32 %v817, %v876
      %v889 = vmul.f32 %v821, %v872
      %v890 = vmul.f32 %v821, %v876
      %v891 = vmul.f32 %v825, %v872
      %v892 = vmul.f32 %v825, %v876
      %v893 = vmul.f32 %v829, %v872
      %v894 = vmul.f32 %v829, %v876
      %v895 = vmul.f32 %v833, %v872
      %v896 = vmul.f32 %v833, %v876
      %v897 = vmul.f32 %v837, %v872
      %v898 = vmul.f32 %v837, %v876
      %v899 = vmul.f32 %v841, %v872
      %v900 = vmul.f32 %v841, %v876
      %v901 = vmul.f32 %v845, %v872
      %v902 = vmul.f32 %v845, %v876
      %v903 = vmul.f32 %v849, %v872
      %v904 = vmul.f32 %v849, %v876
      %v905 = vmul.f32 %v853, %v872
      %v906 = vmul.f32 %v853, %v876
      %v907 = vmul.f32 %v857, %v872
      %v908 = vmul.f32 %v857, %v876
      %v909 = vadd.f32 %v763, %v877
      %v910 = vadd.f32 %v764, %v878
      %v911 = vadd.f32 %v765, %v879
      %v912 = vadd.f32 %v766, %v880
      %v913 = vadd.f32 %v767, %v881
      %v914 = vadd.f32 %v768, %v882
      %v915 = vadd.f32 %v769, %v883
      %v916 = vadd.f32 %v770, %v884
      %v917 = vadd.f32 %v771, %v885
      %v918 = vadd.f32 %v772, %v886
      %v919 = vadd.f32 %v773, %v887
      %v920 = vadd.f32 %v774, %v888
      %v921 = vadd.f32 %v775, %v889
      %v922 = vadd.f32 %v776, %v890
      %v923 = vadd.f32 %v777, %v891
      %v924 = vadd.f32 %v778, %v892
      %v925 = vadd.f32 %v779, %v893
      %v926 = vadd.f32 %v780, %v894
      %v927 = vadd.f32 %v781, %v895
      %v928 = vadd.f32 %v782, %v896
      %v929 = vadd.f32 %v783, %v897
      %v930 = vadd.f32 %v784, %v898
      %v931 = vadd.f32 %v785, %v899
      %v932 = vadd.f32 %v786, %v900
      %v933 = vadd.f32 %v787, %v901
      %v934 = vadd.f32 %v788, %v902
      %v935 = vadd.f32 %v789, %v903
      %v936 = vadd.f32 %v790, %v904
      %v937 = vadd.f32 %v791, %v905
      %v938 = vadd.f32 %v792, %v906
      %v939 = vadd.f32 %v793, %v907
      %v940 = vadd.f32 %v794, %v908
      %941 = vset.pattern.permute.xlu0 3
      %942 = vperm.xlu0 %941, %v374
      %v943 = vpop.permute.xlu0 %942
      %945 = vset.pattern.permute.xlu0 3
      %946 = vperm.xlu0 %945, %v375
      %v947 = vpop.permute.xlu0 %946
      %949 = vset.pattern.permute.xlu0 3
      %950 = vperm.xlu0 %949, %v376
      %v951 = vpop.permute.xlu0 %950
      %953 = vset.pattern.permute.xlu0 3
      %954 = vperm.xlu0 %953, %v377
      %v955 = vpop.permute.xlu0 %954
      %957 = vset.pattern.permute.xlu0 3
      %958 = vperm.xlu0 %957, %v378
      %v959 = vpop.permute.xlu0 %958
      %961 = vset.pattern.permute.xlu0 3
      %962 = vperm.xlu0 %961, %v379
      %v963 = vpop.permute.xlu0 %962
      %965 = vset.pattern.permute.xlu0 3
      %966 = vperm.xlu0 %965, %v380
      %v967 = vpop.permute.xlu0 %966
      %969 = vset.pattern.permute.xlu0 3
      %970 = vperm.xlu0 %969, %v381
      %v971 = vpop.permute.xlu0 %970
      %973 = vset.pattern.permute.xlu0 3
      %974 = vperm.xlu0 %973, %v382
      %v975 = vpop.permute.xlu0 %974
      %977 = vset.pattern.permute.xlu0 3
      %978 = vperm.xlu0 %977, %v383
      %v979 = vpop.permute.xlu0 %978
      %981 = vset.pattern.permute.xlu0 3
      %982 = vperm.xlu0 %981, %v384
      %v983 = vpop.permute.xlu0 %982
      %985 = vset.pattern.permute.xlu0 3
      %986 = vperm.xlu0 %985, %v385
      %v987 = vpop.permute.xlu0 %986
      %989 = vset.pattern.permute.xlu0 3
      %990 = vperm.xlu0 %989, %v386
      %v991 = vpop.permute.xlu0 %990
      %993 = vset.pattern.permute.xlu0 3
      %994 = vperm.xlu0 %993, %v387
      %v995 = vpop.permute.xlu0 %994
      %997 = vset.pattern.permute.xlu0 3
      %998 = vperm.xlu0 %997, %v388
      %v999 = vpop.permute.xlu0 %998
      %1001 = vset.pattern.permute.xlu0 3
      %1002 = vperm.xlu0 %1001, %v389
      %v1003 = vpop.permute.xlu0 %1002
      %v1005 = vlaneseq
      %v1006 = vshrl.u32 %v1005, 7
      %v1007 = vsub.s32 3, %v1006
      %v1008 = vrot.slane %v373, %v1007
      %v1009 = vlaneseq
      %v1010 = vshrl.u32 %v1009, 7
      %v1011 = vsub.s32 7, %v1010
      %v1012 = vrot.slane %v373, %v1011
      %v1015 = vlaneseq
      %v1016 = vshrl.u32 %v1015, 7
      %v1017 = vsub.s32 3, %v1016
      %v1018 = vrot.slane %v1008, %v1017
      %v1019 = vlaneseq
      %v1020 = vshrl.u32 %v1019, 7
      %v1021 = vsub.s32 3, %v1020
      %v1022 = vrot.slane %v1012, %v1021
      %v1023 = vmul.f32 %v943, %v1018
      %v1024 = vmul.f32 %v943, %v1022
      %v1025 = vmul.f32 %v947, %v1018
      %v1026 = vmul.f32 %v947, %v1022
      %v1027 = vmul.f32 %v951, %v1018
      %v1028 = vmul.f32 %v951, %v1022
      %v1029 = vmul.f32 %v955, %v1018
      %v1030 = vmul.f32 %v955, %v1022
      %v1031 = vmul.f32 %v959, %v1018
      %v1032 = vmul.f32 %v959, %v1022
      %v1033 = vmul.f32 %v963, %v1018
      %v1034 = vmul.f32 %v963, %v1022
      %v1035 = vmul.f32 %v967, %v1018
      %v1036 = vmul.f32 %v967, %v1022
      %v1037 = vmul.f32 %v971, %v1018
      %v1038 = vmul.f32 %v971, %v1022
      %v1039 = vmul.f32 %v975, %v1018
      %v1040 = vmul.f32 %v975, %v1022
      %v1041 = vmul.f32 %v979, %v1018
      %v1042 = vmul.f32 %v979, %v1022
      %v1043 = vmul.f32 %v983, %v1018
      %v1044 = vmul.f32 %v983, %v1022
      %v1045 = vmul.f32 %v987, %v1018
      %v1046 = vmul.f32 %v987, %v1022
      %v1047 = vmul.f32 %v991, %v1018
      %v1048 = vmul.f32 %v991, %v1022
      %v1049 = vmul.f32 %v995, %v1018
      %v1050 = vmul.f32 %v995, %v1022
      %v1051 = vmul.f32 %v999, %v1018
      %v1052 = vmul.f32 %v999, %v1022
      %v1053 = vmul.f32 %v1003, %v1018
      %v1054 = vmul.f32 %v1003, %v1022
      %v1055 = vadd.f32 %v909, %v1023
      %v1056 = vadd.f32 %v910, %v1024
      %v1057 = vadd.f32 %v911, %v1025
      %v1058 = vadd.f32 %v912, %v1026
      %v1059 = vadd.f32 %v913, %v1027
      %v1060 = vadd.f32 %v914, %v1028
      %v1061 = vadd.f32 %v915, %v1029
      %v1062 = vadd.f32 %v916, %v1030
      %v1063 = vadd.f32 %v917, %v1031
      %v1064 = vadd.f32 %v918, %v1032
      %v1065 = vadd.f32 %v919, %v1033
      %v1066 = vadd.f32 %v920, %v1034
      %v1067 = vadd.f32 %v921, %v1035
      %v1068 = vadd.f32 %v922, %v1036
      %v1069 = vadd.f32 %v923, %v1037
      %v1070 = vadd.f32 %v924, %v1038
      %v1071 = vadd.f32 %v925, %v1039
      %v1072 = vadd.f32 %v926, %v1040
      %v1073 = vadd.f32 %v927, %v1041
      %v1074 = vadd.f32 %v928, %v1042
      %v1075 = vadd.f32 %v929, %v1043
      %v1076 = vadd.f32 %v930, %v1044
      %v1077 = vadd.f32 %v931, %v1045
      %v1078 = vadd.f32 %v932, %v1046
      %v1079 = vadd.f32 %v933, %v1047
      %v1080 = vadd.f32 %v934, %v1048
      %v1081 = vadd.f32 %v935, %v1049
      %v1082 = vadd.f32 %v936, %v1050
      %v1083 = vadd.f32 %v937, %v1051
      %v1084 = vadd.f32 %v938, %v1052
      %v1085 = vadd.f32 %v939, %v1053
      %v1086 = vadd.f32 %v940, %v1054
      %v1087 = vld [vmem:[%s3] sm:$0xff]
      %v1088 = vld [vmem:[%s3 + $0x8] sm:$0xff]
      %v1089 = vld [vmem:[%s3 + $0x10] sm:$0xff]
      %v1090 = vld [vmem:[%s3 + $0x18] sm:$0xff]
      %v1091 = vld [vmem:[%s3 + $0x20] sm:$0xff]
      %v1092 = vld [vmem:[%s3 + $0x28] sm:$0xff]
      %v1093 = vld [vmem:[%s3 + $0x30] sm:$0xff]
      %v1094 = vld [vmem:[%s3 + $0x38] sm:$0xff]
      %v1095 = vld [vmem:[%s3 + $0x40] sm:$0xff]
      %v1096 = vld [vmem:[%s3 + $0x48] sm:$0xff]
      %v1097 = vld [vmem:[%s3 + $0x50] sm:$0xff]
      %v1098 = vld [vmem:[%s3 + $0x58] sm:$0xff]
      %v1099 = vld [vmem:[%s3 + $0x60] sm:$0xff]
      %v1100 = vld [vmem:[%s3 + $0x68] sm:$0xff]
      %v1101 = vld [vmem:[%s3 + $0x70] sm:$0xff]
      %v1102 = vld [vmem:[%s3 + $0x78] sm:$0xff]
      %1104 = vset.pattern.permute.xlu0 0
      %1105 = vperm.xlu0 %1104, %v1087
      %v1106 = vpop.permute.xlu0 %1105
      %1109 = vset.pattern.permute.xlu0 0
      %1110 = vperm.xlu0 %1109, %v1088
      %v1111 = vpop.permute.xlu0 %1110
      %1114 = vset.pattern.permute.xlu0 0
      %1115 = vperm.xlu0 %1114, %v1089
      %v1116 = vpop.permute.xlu0 %1115
      %1119 = vset.pattern.permute.xlu0 0
      %1120 = vperm.xlu0 %1119, %v1090
      %v1121 = vpop.permute.xlu0 %1120
      %1124 = vset.pattern.permute.xlu0 0
      %1125 = vperm.xlu0 %1124, %v1091
      %v1126 = vpop.permute.xlu0 %1125
      %1129 = vset.pattern.permute.xlu0 0
      %1130 = vperm.xlu0 %1129, %v1092
      %v1131 = vpop.permute.xlu0 %1130
      %1134 = vset.pattern.permute.xlu0 0
      %1135 = vperm.xlu0 %1134, %v1093
      %v1136 = vpop.permute.xlu0 %1135
      %1139 = vset.pattern.permute.xlu0 0
      %1140 = vperm.xlu0 %1139, %v1094
      %v1141 = vpop.permute.xlu0 %1140
      %1144 = vset.pattern.permute.xlu0 0
      %1145 = vperm.xlu0 %1144, %v1095
      %v1146 = vpop.permute.xlu0 %1145
      %1149 = vset.pattern.permute.xlu0 0
      %1150 = vperm.xlu0 %1149, %v1096
      %v1151 = vpop.permute.xlu0 %1150
      %1154 = vset.pattern.permute.xlu0 0
      %1155 = vperm.xlu0 %1154, %v1097
      %v1156 = vpop.permute.xlu0 %1155
      %1159 = vset.pattern.permute.xlu0 0
      %1160 = vperm.xlu0 %1159, %v1098
      %v1161 = vpop.permute.xlu0 %1160
      %1164 = vset.pattern.permute.xlu0 0
      %1165 = vperm.xlu0 %1164, %v1099
      %v1166 = vpop.permute.xlu0 %1165
      %1169 = vset.pattern.permute.xlu0 0
      %1170 = vperm.xlu0 %1169, %v1100
      %v1171 = vpop.permute.xlu0 %1170
      %1174 = vset.pattern.permute.xlu0 0
      %1175 = vperm.xlu0 %1174, %v1101
      %v1176 = vpop.permute.xlu0 %1175
      %1179 = vset.pattern.permute.xlu0 0
      %1180 = vperm.xlu0 %1179, %v1102
      %v1181 = vpop.permute.xlu0 %1180
      %v1183 = vmul.f32 %v1055, %v1106
      %v1184 = vmul.f32 %v1056, %v1106
      %v1185 = vmul.f32 %v1057, %v1111
      %v1186 = vmul.f32 %v1058, %v1111
      %v1187 = vmul.f32 %v1059, %v1116
      %v1188 = vmul.f32 %v1060, %v1116
      %v1189 = vmul.f32 %v1061, %v1121
      %v1190 = vmul.f32 %v1062, %v1121
      %v1191 = vmul.f32 %v1063, %v1126
      %v1192 = vmul.f32 %v1064, %v1126
      %v1193 = vmul.f32 %v1065, %v1131
      %v1194 = vmul.f32 %v1066, %v1131
      %v1195 = vmul.f32 %v1067, %v1136
      %v1196 = vmul.f32 %v1068, %v1136
      %v1197 = vmul.f32 %v1069, %v1141
      %v1198 = vmul.f32 %v1070, %v1141
      %v1199 = vmul.f32 %v1071, %v1146
      %v1200 = vmul.f32 %v1072, %v1146
      %v1201 = vmul.f32 %v1073, %v1151
      %v1202 = vmul.f32 %v1074, %v1151
      %v1203 = vmul.f32 %v1075, %v1156
      %v1204 = vmul.f32 %v1076, %v1156
      %v1205 = vmul.f32 %v1077, %v1161
      %v1206 = vmul.f32 %v1078, %v1161
      %v1207 = vmul.f32 %v1079, %v1166
      %v1208 = vmul.f32 %v1080, %v1166
      %v1209 = vmul.f32 %v1081, %v1171
      %v1210 = vmul.f32 %v1082, %v1171
      %v1211 = vmul.f32 %v1083, %v1176
      %v1212 = vmul.f32 %v1084, %v1176
      %v1213 = vmul.f32 %v1085, %v1181
      %v1214 = vmul.f32 %v1086, %v1181
      %1215 = vset.pattern.permute.xlu0 1
      %1216 = vperm.xlu0 %1215, %v1087
      %v1217 = vpop.permute.xlu0 %1216
      %1219 = vset.pattern.permute.xlu0 1
      %1220 = vperm.xlu0 %1219, %v1088
      %v1221 = vpop.permute.xlu0 %1220
      %1223 = vset.pattern.permute.xlu0 1
      %1224 = vperm.xlu0 %1223, %v1089
      %v1225 = vpop.permute.xlu0 %1224
      %1227 = vset.pattern.permute.xlu0 1
      %1228 = vperm.xlu0 %1227, %v1090
      %v1229 = vpop.permute.xlu0 %1228
      %1231 = vset.pattern.permute.xlu0 1
      %1232 = vperm.xlu0 %1231, %v1091
      %v1233 = vpop.permute.xlu0 %1232
      %1235 = vset.pattern.permute.xlu0 1
      %1236 = vperm.xlu0 %1235, %v1092
      %v1237 = vpop.permute.xlu0 %1236
      %1239 = vset.pattern.permute.xlu0 1
      %1240 = vperm.xlu0 %1239, %v1093
      %v1241 = vpop.permute.xlu0 %1240
      %1243 = vset.pattern.permute.xlu0 1
      %1244 = vperm.xlu0 %1243, %v1094
      %v1245 = vpop.permute.xlu0 %1244
      %1247 = vset.pattern.permute.xlu0 1
      %1248 = vperm.xlu0 %1247, %v1095
      %v1249 = vpop.permute.xlu0 %1248
      %1251 = vset.pattern.permute.xlu0 1
      %1252 = vperm.xlu0 %1251, %v1096
      %v1253 = vpop.permute.xlu0 %1252
      %1255 = vset.pattern.permute.xlu0 1
      %1256 = vperm.xlu0 %1255, %v1097
      %v1257 = vpop.permute.xlu0 %1256
      %1259 = vset.pattern.permute.xlu0 1
      %1260 = vperm.xlu0 %1259, %v1098
      %v1261 = vpop.permute.xlu0 %1260
      %1263 = vset.pattern.permute.xlu0 1
      %1264 = vperm.xlu0 %1263, %v1099
      %v1265 = vpop.permute.xlu0 %1264
      %1267 = vset.pattern.permute.xlu0 1
      %1268 = vperm.xlu0 %1267, %v1100
      %v1269 = vpop.permute.xlu0 %1268
      %1271 = vset.pattern.permute.xlu0 1
      %1272 = vperm.xlu0 %1271, %v1101
      %v1273 = vpop.permute.xlu0 %1272
      %1275 = vset.pattern.permute.xlu0 1
      %1276 = vperm.xlu0 %1275, %v1102
      %v1277 = vpop.permute.xlu0 %1276
      %v1279 = vadd.f32 %v1183, %v1217
      %v1280 = vadd.f32 %v1184, %v1217
      %v1281 = vadd.f32 %v1185, %v1221
      %v1282 = vadd.f32 %v1186, %v1221
      %v1283 = vadd.f32 %v1187, %v1225
      %v1284 = vadd.f32 %v1188, %v1225
      %v1285 = vadd.f32 %v1189, %v1229
      %v1286 = vadd.f32 %v1190, %v1229
      %v1287 = vadd.f32 %v1191, %v1233
      %v1288 = vadd.f32 %v1192, %v1233
      %v1289 = vadd.f32 %v1193, %v1237
      %v1290 = vadd.f32 %v1194, %v1237
      %v1291 = vadd.f32 %v1195, %v1241
      %v1292 = vadd.f32 %v1196, %v1241
      %v1293 = vadd.f32 %v1197, %v1245
      %v1294 = vadd.f32 %v1198, %v1245
      %v1295 = vadd.f32 %v1199, %v1249
      %v1296 = vadd.f32 %v1200, %v1249
      %v1297 = vadd.f32 %v1201, %v1253
      %v1298 = vadd.f32 %v1202, %v1253
      %v1299 = vadd.f32 %v1203, %v1257
      %v1300 = vadd.f32 %v1204, %v1257
      %v1301 = vadd.f32 %v1205, %v1261
      %v1302 = vadd.f32 %v1206, %v1261
      %v1303 = vadd.f32 %v1207, %v1265
      %v1304 = vadd.f32 %v1208, %v1265
      %v1305 = vadd.f32 %v1209, %v1269
      %v1306 = vadd.f32 %v1210, %v1269
      %v1307 = vadd.f32 %v1211, %v1273
      %v1308 = vadd.f32 %v1212, %v1273
      %v1309 = vadd.f32 %v1213, %v1277
      %v1310 = vadd.f32 %v1214, %v1277
      %v1311 = vmul.f32 %v1279, 0.5
      %v1312 = vmul.f32 %v1280, 0.5
      %v1313 = vmul.f32 %v1281, 0.5
      %v1314 = vmul.f32 %v1282, 0.5
      %v1315 = vmul.f32 %v1283, 0.5
      %v1316 = vmul.f32 %v1284, 0.5
      %v1317 = vmul.f32 %v1285, 0.5
      %v1318 = vmul.f32 %v1286, 0.5
      %v1319 = vmul.f32 %v1287, 0.5
      %v1320 = vmul.f32 %v1288, 0.5
      %v1321 = vmul.f32 %v1289, 0.5
      %v1322 = vmul.f32 %v1290, 0.5
      %v1323 = vmul.f32 %v1291, 0.5
      %v1324 = vmul.f32 %v1292, 0.5
      %v1325 = vmul.f32 %v1293, 0.5
      %v1326 = vmul.f32 %v1294, 0.5
      %v1327 = vmul.f32 %v1295, 0.5
      %v1328 = vmul.f32 %v1296, 0.5
      %v1329 = vmul.f32 %v1297, 0.5
      %v1330 = vmul.f32 %v1298, 0.5
      %v1331 = vmul.f32 %v1299, 0.5
      %v1332 = vmul.f32 %v1300, 0.5
      %v1333 = vmul.f32 %v1301, 0.5
      %v1334 = vmul.f32 %v1302, 0.5
      %v1335 = vmul.f32 %v1303, 0.5
      %v1336 = vmul.f32 %v1304, 0.5
      %v1337 = vmul.f32 %v1305, 0.5
      %v1338 = vmul.f32 %v1306, 0.5
      %v1339 = vmul.f32 %v1307, 0.5
      %v1340 = vmul.f32 %v1308, 0.5
      %v1341 = vmul.f32 %v1309, 0.5
      %v1342 = vmul.f32 %v1310, 0.5
      %v1343 = vmul.f32 %v1279, 0.70710677
      %v1344 = vmul.f32 %v1280, 0.70710677
      %v1345 = vmul.f32 %v1281, 0.70710677
      %v1346 = vmul.f32 %v1282, 0.70710677
      %v1347 = vmul.f32 %v1283, 0.70710677
      %v1348 = vmul.f32 %v1284, 0.70710677
      %v1349 = vmul.f32 %v1285, 0.70710677
      %v1350 = vmul.f32 %v1286, 0.70710677
      %v1351 = vmul.f32 %v1287, 0.70710677
      %v1352 = vmul.f32 %v1288, 0.70710677
      %v1353 = vmul.f32 %v1289, 0.70710677
      %v1354 = vmul.f32 %v1290, 0.70710677
      %v1355 = vmul.f32 %v1291, 0.70710677
      %v1356 = vmul.f32 %v1292, 0.70710677
      %v1357 = vmul.f32 %v1293, 0.70710677
      %v1358 = vmul.f32 %v1294, 0.70710677
      %v1359 = vmul.f32 %v1295, 0.70710677
      %v1360 = vmul.f32 %v1296, 0.70710677
      %v1361 = vmul.f32 %v1297, 0.70710677
      %v1362 = vmul.f32 %v1298, 0.70710677
      %v1363 = vmul.f32 %v1299, 0.70710677
      %v1364 = vmul.f32 %v1300, 0.70710677
      %v1365 = vmul.f32 %v1301, 0.70710677
      %v1366 = vmul.f32 %v1302, 0.70710677
      %v1367 = vmul.f32 %v1303, 0.70710677
      %v1368 = vmul.f32 %v1304, 0.70710677
      %v1369 = vmul.f32 %v1305, 0.70710677
      %v1370 = vmul.f32 %v1306, 0.70710677
      %v1371 = vmul.f32 %v1307, 0.70710677
      %v1372 = vmul.f32 %v1308, 0.70710677
      %v1373 = vmul.f32 %v1309, 0.70710677
      %v1374 = vmul.f32 %v1310, 0.70710677
      %v1375 = verf.f32.pop %v1343
      %v1376 = verf.f32.pop %v1344
      %v1377 = verf.f32.pop %v1345
      %v1378 = verf.f32.pop %v1346
      %v1379 = verf.f32.pop %v1347
      %v1380 = verf.f32.pop %v1348
      %v1381 = verf.f32.pop %v1349
      %v1382 = verf.f32.pop %v1350
      %v1383 = verf.f32.pop %v1351
      %v1384 = verf.f32.pop %v1352
      %v1385 = verf.f32.pop %v1353
      %v1386 = verf.f32.pop %v1354
      %v1387 = verf.f32.pop %v1355
      %v1388 = verf.f32.pop %v1356
      %v1389 = verf.f32.pop %v1357
      %v1390 = verf.f32.pop %v1358
      %v1391 = verf.f32.pop %v1359
      %v1392 = verf.f32.pop %v1360
      %v1393 = verf.f32.pop %v1361
      %v1394 = verf.f32.pop %v1362
      %v1395 = verf.f32.pop %v1363
      %v1396 = verf.f32.pop %v1364
      %v1397 = verf.f32.pop %v1365
      %v1398 = verf.f32.pop %v1366
      %v1399 = verf.f32.pop %v1367
      %v1400 = verf.f32.pop %v1368
      %v1401 = verf.f32.pop %v1369
      %v1402 = verf.f32.pop %v1370
      %v1403 = verf.f32.pop %v1371
      %v1404 = verf.f32.pop %v1372
      %v1405 = verf.f32.pop %v1373
      %v1406 = verf.f32.pop %v1374
      %v1407 = vadd.f32 %v1375, 1.0
      %v1408 = vadd.f32 %v1376, 1.0
      %v1409 = vadd.f32 %v1377, 1.0
      %v1410 = vadd.f32 %v1378, 1.0
      %v1411 = vadd.f32 %v1379, 1.0
      %v1412 = vadd.f32 %v1380, 1.0
      %v1413 = vadd.f32 %v1381, 1.0
      %v1414 = vadd.f32 %v1382, 1.0
      %v1415 = vadd.f32 %v1383, 1.0
      %v1416 = vadd.f32 %v1384, 1.0
      %v1417 = vadd.f32 %v1385, 1.0
      %v1418 = vadd.f32 %v1386, 1.0
      %v1419 = vadd.f32 %v1387, 1.0
      %v1420 = vadd.f32 %v1388, 1.0
      %v1421 = vadd.f32 %v1389, 1.0
      %v1422 = vadd.f32 %v1390, 1.0
      %v1423 = vadd.f32 %v1391, 1.0
      %v1424 = vadd.f32 %v1392, 1.0
      %v1425 = vadd.f32 %v1393, 1.0
      %v1426 = vadd.f32 %v1394, 1.0
      %v1427 = vadd.f32 %v1395, 1.0
      %v1428 = vadd.f32 %v1396, 1.0
      %v1429 = vadd.f32 %v1397, 1.0
      %v1430 = vadd.f32 %v1398, 1.0
      %v1431 = vadd.f32 %v1399, 1.0
      %v1432 = vadd.f32 %v1400, 1.0
      %v1433 = vadd.f32 %v1401, 1.0
      %v1434 = vadd.f32 %v1402, 1.0
      %v1435 = vadd.f32 %v1403, 1.0
      %v1436 = vadd.f32 %v1404, 1.0
      %v1437 = vadd.f32 %v1405, 1.0
      %v1438 = vadd.f32 %v1406, 1.0
      %v1439 = vmul.f32 %v1311, %v1407
      %v1440 = vmul.f32 %v1312, %v1408
      %v1441 = vmul.f32 %v1313, %v1409
      %v1442 = vmul.f32 %v1314, %v1410
      %v1443 = vmul.f32 %v1315, %v1411
      %v1444 = vmul.f32 %v1316, %v1412
      %v1445 = vmul.f32 %v1317, %v1413
      %v1446 = vmul.f32 %v1318, %v1414
      %v1447 = vmul.f32 %v1319, %v1415
      %v1448 = vmul.f32 %v1320, %v1416
      %v1449 = vmul.f32 %v1321, %v1417
      %v1450 = vmul.f32 %v1322, %v1418
      %v1451 = vmul.f32 %v1323, %v1419
      %v1452 = vmul.f32 %v1324, %v1420
      %v1453 = vmul.f32 %v1325, %v1421
      %v1454 = vmul.f32 %v1326, %v1422
      %v1455 = vmul.f32 %v1327, %v1423
      %v1456 = vmul.f32 %v1328, %v1424
      %v1457 = vmul.f32 %v1329, %v1425
      %v1458 = vmul.f32 %v1330, %v1426
      %v1459 = vmul.f32 %v1331, %v1427
      %v1460 = vmul.f32 %v1332, %v1428
      %v1461 = vmul.f32 %v1333, %v1429
      %v1462 = vmul.f32 %v1334, %v1430
      %v1463 = vmul.f32 %v1335, %v1431
      %v1464 = vmul.f32 %v1336, %v1432
      %v1465 = vmul.f32 %v1337, %v1433
      %v1466 = vmul.f32 %v1338, %v1434
      %v1467 = vmul.f32 %v1339, %v1435
      %v1468 = vmul.f32 %v1340, %v1436
      %v1469 = vmul.f32 %v1341, %v1437
      %v1470 = vmul.f32 %v1342, %v1438
      %v1471 = vld [vmem:[%s4] sm:$0xf]
      %v1472 = vld [vmem:[%s4 + $0x4] sm:$0xf]
      %v1473 = vld [vmem:[%s4 + $0x8] sm:$0xf]
      %v1474 = vld [vmem:[%s4 + $0xc] sm:$0xf]
      %v1475 = vld [vmem:[%s4 + $0x10] sm:$0xf]
      %v1476 = vld [vmem:[%s4 + $0x14] sm:$0xf]
      %v1477 = vld [vmem:[%s4 + $0x18] sm:$0xf]
      %v1478 = vld [vmem:[%s4 + $0x1c] sm:$0xf]
      %v1479 = vld [vmem:[%s4 + $0x20] sm:$0xf]
      %v1480 = vld [vmem:[%s4 + $0x24] sm:$0xf]
      %v1481 = vld [vmem:[%s4 + $0x28] sm:$0xf]
      %v1482 = vld [vmem:[%s4 + $0x2c] sm:$0xf]
      %v1483 = vld [vmem:[%s4 + $0x30] sm:$0xf]
      %v1484 = vld [vmem:[%s4 + $0x34] sm:$0xf]
      %v1485 = vld [vmem:[%s4 + $0x38] sm:$0xf]
      %v1486 = vld [vmem:[%s4 + $0x3c] sm:$0xf]
      %v1487 = vld [vmem:[%s5] sm:$0xff]
      %v1488 = vld [vmem:[%s5 + $0x8] sm:$0xff]
      %v1489 = vld [vmem:[%s5 + $0x10] sm:$0xff]
      %v1490 = vld [vmem:[%s5 + $0x18] sm:$0xff]
      %v1491 = vld [vmem:[%s5 + $0x20] sm:$0xff]
      %v1492 = vld [vmem:[%s5 + $0x28] sm:$0xff]
      %v1493 = vld [vmem:[%s5 + $0x30] sm:$0xff]
      %v1494 = vld [vmem:[%s5 + $0x38] sm:$0xff]
      %v1495 = vld [vmem:[%s5 + $0x40] sm:$0xff]
      %v1496 = vld [vmem:[%s5 + $0x48] sm:$0xff]
      %v1497 = vld [vmem:[%s5 + $0x50] sm:$0xff]
      %v1498 = vld [vmem:[%s5 + $0x58] sm:$0xff]
      %v1499 = vld [vmem:[%s5 + $0x60] sm:$0xff]
      %v1500 = vld [vmem:[%s5 + $0x68] sm:$0xff]
      %v1501 = vld [vmem:[%s5 + $0x70] sm:$0xff]
      %v1502 = vld [vmem:[%s5 + $0x78] sm:$0xff]
      %v1503 = vpack.c.bf16 %v1441, %v1439
      %v1504 = vpack.c.bf16 %v1442, %v1440
      %v1505 = vpack.c.bf16 %v1445, %v1443
      %v1506 = vpack.c.bf16 %v1446, %v1444
      %v1507 = vpack.c.bf16 %v1449, %v1447
      %v1508 = vpack.c.bf16 %v1450, %v1448
      %v1509 = vpack.c.bf16 %v1453, %v1451
      %v1510 = vpack.c.bf16 %v1454, %v1452
      %v1511 = vpack.c.bf16 %v1457, %v1455
      %v1512 = vpack.c.bf16 %v1458, %v1456
      %v1513 = vpack.c.bf16 %v1461, %v1459
      %v1514 = vpack.c.bf16 %v1462, %v1460
      %v1515 = vpack.c.bf16 %v1465, %v1463
      %v1516 = vpack.c.bf16 %v1466, %v1464
      %v1517 = vpack.c.bf16 %v1469, %v1467
      %v1518 = vpack.c.bf16 %v1470, %v1468
      %1520 = vset.pattern.permute.xlu0 0
      %1521 = vperm.xlu0 %1520, %v1487
      %v1522 = vpop.permute.xlu0 %1521
      %1525 = vset.pattern.permute.xlu0 0
      %1526 = vperm.xlu0 %1525, %v1488
      %v1527 = vpop.permute.xlu0 %1526
      %1530 = vset.pattern.permute.xlu0 0
      %1531 = vperm.xlu0 %1530, %v1489
      %v1532 = vpop.permute.xlu0 %1531
      %1535 = vset.pattern.permute.xlu0 0
      %1536 = vperm.xlu0 %1535, %v1490
      %v1537 = vpop.permute.xlu0 %1536
      %1540 = vset.pattern.permute.xlu0 0
      %1541 = vperm.xlu0 %1540, %v1491
      %v1542 = vpop.permute.xlu0 %1541
      %1545 = vset.pattern.permute.xlu0 0
      %1546 = vperm.xlu0 %1545, %v1492
      %v1547 = vpop.permute.xlu0 %1546
      %1550 = vset.pattern.permute.xlu0 0
      %1551 = vperm.xlu0 %1550, %v1493
      %v1552 = vpop.permute.xlu0 %1551
      %1555 = vset.pattern.permute.xlu0 0
      %1556 = vperm.xlu0 %1555, %v1494
      %v1557 = vpop.permute.xlu0 %1556
      %1560 = vset.pattern.permute.xlu0 0
      %1561 = vperm.xlu0 %1560, %v1495
      %v1562 = vpop.permute.xlu0 %1561
      %1565 = vset.pattern.permute.xlu0 0
      %1566 = vperm.xlu0 %1565, %v1496
      %v1567 = vpop.permute.xlu0 %1566
      %1570 = vset.pattern.permute.xlu0 0
      %1571 = vperm.xlu0 %1570, %v1497
      %v1572 = vpop.permute.xlu0 %1571
      %1575 = vset.pattern.permute.xlu0 0
      %1576 = vperm.xlu0 %1575, %v1498
      %v1577 = vpop.permute.xlu0 %1576
      %1580 = vset.pattern.permute.xlu0 0
      %1581 = vperm.xlu0 %1580, %v1499
      %v1582 = vpop.permute.xlu0 %1581
      %1585 = vset.pattern.permute.xlu0 0
      %1586 = vperm.xlu0 %1585, %v1500
      %v1587 = vpop.permute.xlu0 %1586
      %1590 = vset.pattern.permute.xlu0 0
      %1591 = vperm.xlu0 %1590, %v1501
      %v1592 = vpop.permute.xlu0 %1591
      %1595 = vset.pattern.permute.xlu0 0
      %1596 = vperm.xlu0 %1595, %v1502
      %v1597 = vpop.permute.xlu0 %1596
      %v1615 = vunpack.c.l.b16 %v1471
      %v1616 = vunpack.c.l.b16 %v1472
      %v1617 = vunpack.c.l.b16 %v1473
      %v1618 = vunpack.c.l.b16 %v1474
      %v1619 = vunpack.c.l.b16 %v1475
      %v1620 = vunpack.c.l.b16 %v1476
      %v1621 = vunpack.c.l.b16 %v1477
      %v1622 = vunpack.c.l.b16 %v1478
      %v1623 = vunpack.c.l.b16 %v1479
      %v1624 = vunpack.c.l.b16 %v1480
      %v1625 = vunpack.c.l.b16 %v1481
      %v1626 = vunpack.c.l.b16 %v1482
      %v1627 = vunpack.c.l.b16 %v1483
      %v1628 = vunpack.c.l.b16 %v1484
      %v1629 = vunpack.c.l.b16 %v1485
      %v1630 = vunpack.c.l.b16 %v1486
      %v1631 = vpack.c.b16 %v1616, %v1615
      %v1632 = vpack.c.b16 %v1618, %v1617
      %v1633 = vpack.c.b16 %v1620, %v1619
      %v1634 = vpack.c.b16 %v1622, %v1621
      %v1635 = vpack.c.b16 %v1624, %v1623
      %v1636 = vpack.c.b16 %v1626, %v1625
      %v1637 = vpack.c.b16 %v1628, %v1627
      %v1638 = vpack.c.b16 %v1630, %v1629
      %1647 = vmatprep.subr.bf16.mxu0 %v1504
      %1648 = vmatpush1.bf16.msra.mxu0 %v1503
      %1649 = vmatprep.subr.bf16.mxu0 %v1506
      %1650 = vmatpush1.bf16.msra.mxu0 %v1505
      %1651 = vmatprep.subr.bf16.mxu0 %v1508
      %1652 = vmatpush1.bf16.msra.mxu0 %v1507
      %1653 = vmatprep.subr.bf16.mxu0 %v1510
      %1654 = vmatpush1.bf16.msra.mxu0 %v1509
      %1655 = vmatprep.subr.bf16.mxu0 %v1512
      %1656 = vmatpush1.bf16.msra.mxu0 %v1511
      %1657 = vmatprep.subr.bf16.mxu0 %v1514
      %1658 = vmatpush1.bf16.msra.mxu0 %v1513
      %1659 = vmatprep.subr.bf16.mxu0 %v1516
      %1660 = vmatpush1.bf16.msra.mxu0 %v1515
      %1661 = vmatprep.subr.bf16.mxu0 %v1518
      %1662 = vmatpush1.bf16.msra.mxu0 %v1517
      %1663 = vmatprep.subr.bf16.mxu0 0
      %1664 = vmatpush1.bf16.msra.mxu0 0
      %1665 = vmatprep.subr.bf16.mxu0 0
      %1666 = vmatpush1.bf16.msra.mxu0 0
      %1667 = vmatprep.subr.bf16.mxu0 0
      %1668 = vmatpush1.bf16.msra.mxu0 0
      %1669 = vmatprep.subr.bf16.mxu0 0
      %1670 = vmatpush1.bf16.msra.mxu0 0
      %1671 = vmatprep.subr.bf16.mxu0 0
      %1672 = vmatpush1.bf16.msra.mxu0 0
      %1673 = vmatprep.subr.bf16.mxu0 0
      %1674 = vmatpush1.bf16.msra.mxu0 0
      %1675 = vmatprep.subr.bf16.mxu0 0
      %1676 = vmatpush1.bf16.msra.mxu0 0
      %1677 = vmatprep.subr.bf16.mxu0 0
      %1678 = vmatpush1.bf16.msra.mxu0 0
      %1679 = vmatprep.mubr.bf16.mxu0 0
      %1680 = vmatmul.mubr.bf16.gmra.mrb[0].mxu0 %v1631
      %v1681 = vpop.f32.mrb[0].mxu0
      %v1682 = vadd.f32 %v1522, %v1681
      %v1683 = vpop.f32.mrb[0].mxu0
      %v1684 = vadd.f32 %v1522, %v1683
      %v1685 = vpop.f32.mrb[0].mxu0
      %v1686 = vadd.f32 %v1527, %v1685
      %v1687 = vpop.f32.mrb[0].mxu0
      %v1688 = vadd.f32 %v1527, %v1687
      %1689 = vmatprep.mubr.bf16.mxu0 0
      %1690 = vmatmul.mubr.bf16.gmra.mrb[0].mxu0 %v1632
      %v1691 = vpop.f32.mrb[0].mxu0
      %v1692 = vadd.f32 %v1532, %v1691
      %v1693 = vpop.f32.mrb[0].mxu0
      %v1694 = vadd.f32 %v1532, %v1693
      %v1695 = vpop.f32.mrb[0].mxu0
      %v1696 = vadd.f32 %v1537, %v1695
      %v1697 = vpop.f32.mrb[0].mxu0
      %v1698 = vadd.f32 %v1537, %v1697
      %1699 = vmatprep.mubr.bf16.mxu0 0
      %1700 = vmatmul.mubr.bf16.gmra.mrb[0].mxu0 %v1633
      %v1701 = vpop.f32.mrb[0].mxu0
      %v1702 = vadd.f32 %v1542, %v1701
      %v1703 = vpop.f32.mrb[0].mxu0
      %v1704 = vadd.f32 %v1542, %v1703
      %v1705 = vpop.f32.mrb[0].mxu0
      %v1706 = vadd.f32 %v1547, %v1705
      %v1707 = vpop.f32.mrb[0].mxu0
      %v1708 = vadd.f32 %v1547, %v1707
      %1709 = vmatprep.mubr.bf16.mxu0 0
      %1710 = vmatmul.mubr.bf16.gmra.mrb[0].mxu0 %v1634
      %v1711 = vpop.f32.mrb[0].mxu0
      %v1712 = vadd.f32 %v1552, %v1711
      %v1713 = vpop.f32.mrb[0].mxu0
      %v1714 = vadd.f32 %v1552, %v1713
      %v1715 = vpop.f32.mrb[0].mxu0
      %v1716 = vadd.f32 %v1557, %v1715
      %v1717 = vpop.f32.mrb[0].mxu0
      %v1718 = vadd.f32 %v1557, %v1717
      %1719 = vmatprep.mubr.bf16.mxu0 0
      %1720 = vmatmul.mubr.bf16.gmra.mrb[0].mxu0 %v1635
      %v1721 = vpop.f32.mrb[0].mxu0
      %v1722 = vadd.f32 %v1562, %v1721
      %v1723 = vpop.f32.mrb[0].mxu0
      %v1724 = vadd.f32 %v1562, %v1723
      %v1725 = vpop.f32.mrb[0].mxu0
      %v1726 = vadd.f32 %v1567, %v1725
      %v1727 = vpop.f32.mrb[0].mxu0
      %v1728 = vadd.f32 %v1567, %v1727
      %1729 = vmatprep.mubr.bf16.mxu0 0
      %1730 = vmatmul.mubr.bf16.gmra.mrb[0].mxu0 %v1636
      %v1731 = vpop.f32.mrb[0].mxu0
      %v1732 = vadd.f32 %v1572, %v1731
      %v1733 = vpop.f32.mrb[0].mxu0
      %v1734 = vadd.f32 %v1572, %v1733
      %v1735 = vpop.f32.mrb[0].mxu0
      %v1736 = vadd.f32 %v1577, %v1735
      %v1737 = vpop.f32.mrb[0].mxu0
      %v1738 = vadd.f32 %v1577, %v1737
      %1739 = vmatprep.mubr.bf16.mxu0 0
      %1740 = vmatmul.mubr.bf16.gmra.mrb[0].mxu0 %v1637
      %v1741 = vpop.f32.mrb[0].mxu0
      %v1742 = vadd.f32 %v1582, %v1741
      %v1743 = vpop.f32.mrb[0].mxu0
      %v1744 = vadd.f32 %v1582, %v1743
      %v1745 = vpop.f32.mrb[0].mxu0
      %v1746 = vadd.f32 %v1587, %v1745
      %v1747 = vpop.f32.mrb[0].mxu0
      %v1748 = vadd.f32 %v1587, %v1747
      %1749 = vmatprep.mubr.bf16.mxu0 0
      %1750 = vmatmul.mubr.bf16.gmra.mrb[0].mxu0 %v1638
      %v1751 = vpop.f32.mrb[0].mxu0
      %v1752 = vadd.f32 %v1592, %v1751
      %v1753 = vpop.f32.mrb[0].mxu0
      %v1754 = vadd.f32 %v1592, %v1753
      %v1755 = vpop.f32.mrb[0].mxu0
      %v1756 = vadd.f32 %v1597, %v1755
      %v1757 = vpop.f32.mrb[0].mxu0
      %v1758 = vadd.f32 %v1597, %v1757
      %1759 = vdwg.mxu0
      %v1760 = vld [vmem:[%s6] sm:$0xff]
      %v1761 = vld [vmem:[%s6 + $0x8] sm:$0xff]
      %v1762 = vld [vmem:[%s6 + $0x10] sm:$0xff]
      %v1763 = vld [vmem:[%s6 + $0x18] sm:$0xff]
      %v1764 = vld [vmem:[%s6 + $0x20] sm:$0xff]
      %v1765 = vld [vmem:[%s6 + $0x28] sm:$0xff]
      %v1766 = vld [vmem:[%s6 + $0x30] sm:$0xff]
      %v1767 = vld [vmem:[%s6 + $0x38] sm:$0xff]
      %v1768 = vld [vmem:[%s6 + $0x40] sm:$0xff]
      %v1769 = vld [vmem:[%s6 + $0x48] sm:$0xff]
      %v1770 = vld [vmem:[%s6 + $0x50] sm:$0xff]
      %v1771 = vld [vmem:[%s6 + $0x58] sm:$0xff]
      %v1772 = vld [vmem:[%s6 + $0x60] sm:$0xff]
      %v1773 = vld [vmem:[%s6 + $0x68] sm:$0xff]
      %v1774 = vld [vmem:[%s6 + $0x70] sm:$0xff]
      %v1775 = vld [vmem:[%s6 + $0x78] sm:$0xff]
      %1777 = vset.pattern.permute.xlu0 0
      %1778 = vperm.xlu0 %1777, %v1760
      %v1779 = vpop.permute.xlu0 %1778
      %1782 = vset.pattern.permute.xlu0 0
      %1783 = vperm.xlu0 %1782, %v1761
      %v1784 = vpop.permute.xlu0 %1783
      %1787 = vset.pattern.permute.xlu0 0
      %1788 = vperm.xlu0 %1787, %v1762
      %v1789 = vpop.permute.xlu0 %1788
      %1792 = vset.pattern.permute.xlu0 0
      %1793 = vperm.xlu0 %1792, %v1763
      %v1794 = vpop.permute.xlu0 %1793
      %1797 = vset.pattern.permute.xlu0 0
      %1798 = vperm.xlu0 %1797, %v1764
      %v1799 = vpop.permute.xlu0 %1798
      %1802 = vset.pattern.permute.xlu0 0
      %1803 = vperm.xlu0 %1802, %v1765
      %v1804 = vpop.permute.xlu0 %1803
      %1807 = vset.pattern.permute.xlu0 0
      %1808 = vperm.xlu0 %1807, %v1766
      %v1809 = vpop.permute.xlu0 %1808
      %1812 = vset.pattern.permute.xlu0 0
      %1813 = vperm.xlu0 %1812, %v1767
      %v1814 = vpop.permute.xlu0 %1813
      %1817 = vset.pattern.permute.xlu0 0
      %1818 = vperm.xlu0 %1817, %v1768
      %v1819 = vpop.permute.xlu0 %1818
      %1822 = vset.pattern.permute.xlu0 0
      %1823 = vperm.xlu0 %1822, %v1769
      %v1824 = vpop.permute.xlu0 %1823
      %1827 = vset.pattern.permute.xlu0 0
      %1828 = vperm.xlu0 %1827, %v1770
      %v1829 = vpop.permute.xlu0 %1828
      %1832 = vset.pattern.permute.xlu0 0
      %1833 = vperm.xlu0 %1832, %v1771
      %v1834 = vpop.permute.xlu0 %1833
      %1837 = vset.pattern.permute.xlu0 0
      %1838 = vperm.xlu0 %1837, %v1772
      %v1839 = vpop.permute.xlu0 %1838
      %1842 = vset.pattern.permute.xlu0 0
      %1843 = vperm.xlu0 %1842, %v1773
      %v1844 = vpop.permute.xlu0 %1843
      %1847 = vset.pattern.permute.xlu0 0
      %1848 = vperm.xlu0 %1847, %v1774
      %v1849 = vpop.permute.xlu0 %1848
      %1852 = vset.pattern.permute.xlu0 0
      %1853 = vperm.xlu0 %1852, %v1775
      %v1854 = vpop.permute.xlu0 %1853
      %v1856 = vmul.f32 %v1682, %v1779
      %v1857 = vmul.f32 %v1684, %v1779
      %v1858 = vmul.f32 %v1686, %v1784
      %v1859 = vmul.f32 %v1688, %v1784
      %v1860 = vmul.f32 %v1692, %v1789
      %v1861 = vmul.f32 %v1694, %v1789
      %v1862 = vmul.f32 %v1696, %v1794
      %v1863 = vmul.f32 %v1698, %v1794
      %v1864 = vmul.f32 %v1702, %v1799
      %v1865 = vmul.f32 %v1704, %v1799
      %v1866 = vmul.f32 %v1706, %v1804
      %v1867 = vmul.f32 %v1708, %v1804
      %v1868 = vmul.f32 %v1712, %v1809
      %v1869 = vmul.f32 %v1714, %v1809
      %v1870 = vmul.f32 %v1716, %v1814
      %v1871 = vmul.f32 %v1718, %v1814
      %v1872 = vmul.f32 %v1722, %v1819
      %v1873 = vmul.f32 %v1724, %v1819
      %v1874 = vmul.f32 %v1726, %v1824
      %v1875 = vmul.f32 %v1728, %v1824
      %v1876 = vmul.f32 %v1732, %v1829
      %v1877 = vmul.f32 %v1734, %v1829
      %v1878 = vmul.f32 %v1736, %v1834
      %v1879 = vmul.f32 %v1738, %v1834
      %v1880 = vmul.f32 %v1742, %v1839
      %v1881 = vmul.f32 %v1744, %v1839
      %v1882 = vmul.f32 %v1746, %v1844
      %v1883 = vmul.f32 %v1748, %v1844
      %v1884 = vmul.f32 %v1752, %v1849
      %v1885 = vmul.f32 %v1754, %v1849
      %v1886 = vmul.f32 %v1756, %v1854
      %v1887 = vmul.f32 %v1758, %v1854
      %1888 = vset.pattern.permute.xlu0 1
      %1889 = vperm.xlu0 %1888, %v1760
      %v1890 = vpop.permute.xlu0 %1889
      %1892 = vset.pattern.permute.xlu0 1
      %1893 = vperm.xlu0 %1892, %v1761
      %v1894 = vpop.permute.xlu0 %1893
      %1896 = vset.pattern.permute.xlu0 1
      %1897 = vperm.xlu0 %1896, %v1762
      %v1898 = vpop.permute.xlu0 %1897
      %1900 = vset.pattern.permute.xlu0 1
      %1901 = vperm.xlu0 %1900, %v1763
      %v1902 = vpop.permute.xlu0 %1901
      %1904 = vset.pattern.permute.xlu0 1
      %1905 = vperm.xlu0 %1904, %v1764
      %v1906 = vpop.permute.xlu0 %1905
      %1908 = vset.pattern.permute.xlu0 1
      %1909 = vperm.xlu0 %1908, %v1765
      %v1910 = vpop.permute.xlu0 %1909
      %1912 = vset.pattern.permute.xlu0 1
      %1913 = vperm.xlu0 %1912, %v1766
      %v1914 = vpop.permute.xlu0 %1913
      %1916 = vset.pattern.permute.xlu0 1
      %1917 = vperm.xlu0 %1916, %v1767
      %v1918 = vpop.permute.xlu0 %1917
      %1920 = vset.pattern.permute.xlu0 1
      %1921 = vperm.xlu0 %1920, %v1768
      %v1922 = vpop.permute.xlu0 %1921
      %1924 = vset.pattern.permute.xlu0 1
      %1925 = vperm.xlu0 %1924, %v1769
      %v1926 = vpop.permute.xlu0 %1925
      %1928 = vset.pattern.permute.xlu0 1
      %1929 = vperm.xlu0 %1928, %v1770
      %v1930 = vpop.permute.xlu0 %1929
      %1932 = vset.pattern.permute.xlu0 1
      %1933 = vperm.xlu0 %1932, %v1771
      %v1934 = vpop.permute.xlu0 %1933
      %1936 = vset.pattern.permute.xlu0 1
      %1937 = vperm.xlu0 %1936, %v1772
      %v1938 = vpop.permute.xlu0 %1937
      %1940 = vset.pattern.permute.xlu0 1
      %1941 = vperm.xlu0 %1940, %v1773
      %v1942 = vpop.permute.xlu0 %1941
      %1944 = vset.pattern.permute.xlu0 1
      %1945 = vperm.xlu0 %1944, %v1774
      %v1946 = vpop.permute.xlu0 %1945
      %1948 = vset.pattern.permute.xlu0 1
      %1949 = vperm.xlu0 %1948, %v1775
      %v1950 = vpop.permute.xlu0 %1949
      %v1952 = vadd.f32 %v1856, %v1890
      %v1953 = vadd.f32 %v1857, %v1890
      %v1954 = vadd.f32 %v1858, %v1894
      %v1955 = vadd.f32 %v1859, %v1894
      %v1956 = vadd.f32 %v1860, %v1898
      %v1957 = vadd.f32 %v1861, %v1898
      %v1958 = vadd.f32 %v1862, %v1902
      %v1959 = vadd.f32 %v1863, %v1902
      %v1960 = vadd.f32 %v1864, %v1906
      %v1961 = vadd.f32 %v1865, %v1906
      %v1962 = vadd.f32 %v1866, %v1910
      %v1963 = vadd.f32 %v1867, %v1910
      %v1964 = vadd.f32 %v1868, %v1914
      %v1965 = vadd.f32 %v1869, %v1914
      %v1966 = vadd.f32 %v1870, %v1918
      %v1967 = vadd.f32 %v1871, %v1918
      %v1968 = vadd.f32 %v1872, %v1922
      %v1969 = vadd.f32 %v1873, %v1922
      %v1970 = vadd.f32 %v1874, %v1926
      %v1971 = vadd.f32 %v1875, %v1926
      %v1972 = vadd.f32 %v1876, %v1930
      %v1973 = vadd.f32 %v1877, %v1930
      %v1974 = vadd.f32 %v1878, %v1934
      %v1975 = vadd.f32 %v1879, %v1934
      %v1976 = vadd.f32 %v1880, %v1938
      %v1977 = vadd.f32 %v1881, %v1938
      %v1978 = vadd.f32 %v1882, %v1942
      %v1979 = vadd.f32 %v1883, %v1942
      %v1980 = vadd.f32 %v1884, %v1946
      %v1981 = vadd.f32 %v1885, %v1946
      %v1982 = vadd.f32 %v1886, %v1950
      %v1983 = vadd.f32 %v1887, %v1950
      %v1984 = vmul.f32 %v1952, 0.5
      %v1985 = vmul.f32 %v1953, 0.5
      %v1986 = vmul.f32 %v1954, 0.5
      %v1987 = vmul.f32 %v1955, 0.5
      %v1988 = vmul.f32 %v1956, 0.5
      %v1989 = vmul.f32 %v1957, 0.5
      %v1990 = vmul.f32 %v1958, 0.5
      %v1991 = vmul.f32 %v1959, 0.5
      %v1992 = vmul.f32 %v1960, 0.5
      %v1993 = vmul.f32 %v1961, 0.5
      %v1994 = vmul.f32 %v1962, 0.5
      %v1995 = vmul.f32 %v1963, 0.5
      %v1996 = vmul.f32 %v1964, 0.5
      %v1997 = vmul.f32 %v1965, 0.5
      %v1998 = vmul.f32 %v1966, 0.5
      %v1999 = vmul.f32 %v1967, 0.5
      %v2000 = vmul.f32 %v1968, 0.5
      %v2001 = vmul.f32 %v1969, 0.5
      %v2002 = vmul.f32 %v1970, 0.5
      %v2003 = vmul.f32 %v1971, 0.5
      %v2004 = vmul.f32 %v1972, 0.5
      %v2005 = vmul.f32 %v1973, 0.5
      %v2006 = vmul.f32 %v1974, 0.5
      %v2007 = vmul.f32 %v1975, 0.5
      %v2008 = vmul.f32 %v1976, 0.5
      %v2009 = vmul.f32 %v1977, 0.5
      %v2010 = vmul.f32 %v1978, 0.5
      %v2011 = vmul.f32 %v1979, 0.5
      %v2012 = vmul.f32 %v1980, 0.5
      %v2013 = vmul.f32 %v1981, 0.5
      %v2014 = vmul.f32 %v1982, 0.5
      %v2015 = vmul.f32 %v1983, 0.5
      %v2016 = vmul.f32 %v1952, 0.70710677
      %v2017 = vmul.f32 %v1953, 0.70710677
      %v2018 = vmul.f32 %v1954, 0.70710677
      %v2019 = vmul.f32 %v1955, 0.70710677
      %v2020 = vmul.f32 %v1956, 0.70710677
      %v2021 = vmul.f32 %v1957, 0.70710677
      %v2022 = vmul.f32 %v1958, 0.70710677
      %v2023 = vmul.f32 %v1959, 0.70710677
      %v2024 = vmul.f32 %v1960, 0.70710677
      %v2025 = vmul.f32 %v1961, 0.70710677
      %v2026 = vmul.f32 %v1962, 0.70710677
      %v2027 = vmul.f32 %v1963, 0.70710677
      %v2028 = vmul.f32 %v1964, 0.70710677
      %v2029 = vmul.f32 %v1965, 0.70710677
      %v2030 = vmul.f32 %v1966, 0.70710677
      %v2031 = vmul.f32 %v1967, 0.70710677
      %v2032 = vmul.f32 %v1968, 0.70710677
      %v2033 = vmul.f32 %v1969, 0.70710677
      %v2034 = vmul.f32 %v1970, 0.70710677
      %v2035 = vmul.f32 %v1971, 0.70710677
      %v2036 = vmul.f32 %v1972, 0.70710677
      %v2037 = vmul.f32 %v1973, 0.70710677
      %v2038 = vmul.f32 %v1974, 0.70710677
      %v2039 = vmul.f32 %v1975, 0.70710677
      %v2040 = vmul.f32 %v1976, 0.70710677
      %v2041 = vmul.f32 %v1977, 0.70710677
      %v2042 = vmul.f32 %v1978, 0.70710677
      %v2043 = vmul.f32 %v1979, 0.70710677
      %v2044 = vmul.f32 %v1980, 0.70710677
      %v2045 = vmul.f32 %v1981, 0.70710677
      %v2046 = vmul.f32 %v1982, 0.70710677
      %v2047 = vmul.f32 %v1983, 0.70710677
      %v2048 = verf.f32.pop %v2016
      %v2049 = verf.f32.pop %v2017
      %v2050 = verf.f32.pop %v2018
      %v2051 = verf.f32.pop %v2019
      %v2052 = verf.f32.pop %v2020
      %v2053 = verf.f32.pop %v2021
      %v2054 = verf.f32.pop %v2022
      %v2055 = verf.f32.pop %v2023
      %v2056 = verf.f32.pop %v2024
      %v2057 = verf.f32.pop %v2025
      %v2058 = verf.f32.pop %v2026
      %v2059 = verf.f32.pop %v2027
      %v2060 = verf.f32.pop %v2028
      %v2061 = verf.f32.pop %v2029
      %v2062 = verf.f32.pop %v2030
      %v2063 = verf.f32.pop %v2031
      %v2064 = verf.f32.pop %v2032
      %v2065 = verf.f32.pop %v2033
      %v2066 = verf.f32.pop %v2034
      %v2067 = verf.f32.pop %v2035
      %v2068 = verf.f32.pop %v2036
      %v2069 = verf.f32.pop %v2037
      %v2070 = verf.f32.pop %v2038
      %v2071 = verf.f32.pop %v2039
      %v2072 = verf.f32.pop %v2040
      %v2073 = verf.f32.pop %v2041
      %v2074 = verf.f32.pop %v2042
      %v2075 = verf.f32.pop %v2043
      %v2076 = verf.f32.pop %v2044
      %v2077 = verf.f32.pop %v2045
      %v2078 = verf.f32.pop %v2046
      %v2079 = verf.f32.pop %v2047
      %v2080 = vadd.f32 %v2048, 1.0
      %v2081 = vadd.f32 %v2049, 1.0
      %v2082 = vadd.f32 %v2050, 1.0
      %v2083 = vadd.f32 %v2051, 1.0
      %v2084 = vadd.f32 %v2052, 1.0
      %v2085 = vadd.f32 %v2053, 1.0
      %v2086 = vadd.f32 %v2054, 1.0
      %v2087 = vadd.f32 %v2055, 1.0
      %v2088 = vadd.f32 %v2056, 1.0
      %v2089 = vadd.f32 %v2057, 1.0
      %v2090 = vadd.f32 %v2058, 1.0
      %v2091 = vadd.f32 %v2059, 1.0
      %v2092 = vadd.f32 %v2060, 1.0
      %v2093 = vadd.f32 %v2061, 1.0
      %v2094 = vadd.f32 %v2062, 1.0
      %v2095 = vadd.f32 %v2063, 1.0
      %v2096 = vadd.f32 %v2064, 1.0
      %v2097 = vadd.f32 %v2065, 1.0
      %v2098 = vadd.f32 %v2066, 1.0
      %v2099 = vadd.f32 %v2067, 1.0
      %v2100 = vadd.f32 %v2068, 1.0
      %v2101 = vadd.f32 %v2069, 1.0
      %v2102 = vadd.f32 %v2070, 1.0
      %v2103 = vadd.f32 %v2071, 1.0
      %v2104 = vadd.f32 %v2072, 1.0
      %v2105 = vadd.f32 %v2073, 1.0
      %v2106 = vadd.f32 %v2074, 1.0
      %v2107 = vadd.f32 %v2075, 1.0
      %v2108 = vadd.f32 %v2076, 1.0
      %v2109 = vadd.f32 %v2077, 1.0
      %v2110 = vadd.f32 %v2078, 1.0
      %v2111 = vadd.f32 %v2079, 1.0
      %v2112 = vmul.f32 %v1984, %v2080
      %v2113 = vmul.f32 %v1985, %v2081
      %v2114 = vmul.f32 %v1986, %v2082
      %v2115 = vmul.f32 %v1987, %v2083
      %v2116 = vmul.f32 %v1988, %v2084
      %v2117 = vmul.f32 %v1989, %v2085
      %v2118 = vmul.f32 %v1990, %v2086
      %v2119 = vmul.f32 %v1991, %v2087
      %v2120 = vmul.f32 %v1992, %v2088
      %v2121 = vmul.f32 %v1993, %v2089
      %v2122 = vmul.f32 %v1994, %v2090
      %v2123 = vmul.f32 %v1995, %v2091
      %v2124 = vmul.f32 %v1996, %v2092
      %v2125 = vmul.f32 %v1997, %v2093
      %v2126 = vmul.f32 %v1998, %v2094
      %v2127 = vmul.f32 %v1999, %v2095
      %v2128 = vmul.f32 %v2000, %v2096
      %v2129 = vmul.f32 %v2001, %v2097
      %v2130 = vmul.f32 %v2002, %v2098
      %v2131 = vmul.f32 %v2003, %v2099
      %v2132 = vmul.f32 %v2004, %v2100
      %v2133 = vmul.f32 %v2005, %v2101
      %v2134 = vmul.f32 %v2006, %v2102
      %v2135 = vmul.f32 %v2007, %v2103
      %v2136 = vmul.f32 %v2008, %v2104
      %v2137 = vmul.f32 %v2009, %v2105
      %v2138 = vmul.f32 %v2010, %v2106
      %v2139 = vmul.f32 %v2011, %v2107
      %v2140 = vmul.f32 %v2012, %v2108
      %v2141 = vmul.f32 %v2013, %v2109
      %v2142 = vmul.f32 %v2014, %v2110
      %v2143 = vmul.f32 %v2015, %v2111
      %v2144 = vld [vmem:[%s7] sm:$0xf]
      %v2145 = vld [vmem:[%s8] sm:$0xff]
      %v2146 = vpack.c.bf16 %v2114, %v2112
      %v2147 = vpack.c.bf16 %v2115, %v2113
      %v2148 = vpack.c.bf16 %v2118, %v2116
      %v2149 = vpack.c.bf16 %v2119, %v2117
      %v2150 = vpack.c.bf16 %v2122, %v2120
      %v2151 = vpack.c.bf16 %v2123, %v2121
      %v2152 = vpack.c.bf16 %v2126, %v2124
      %v2153 = vpack.c.bf16 %v2127, %v2125
      %v2154 = vpack.c.bf16 %v2130, %v2128
      %v2155 = vpack.c.bf16 %v2131, %v2129
      %v2156 = vpack.c.bf16 %v2134, %v2132
      %v2157 = vpack.c.bf16 %v2135, %v2133
      %v2158 = vpack.c.bf16 %v2138, %v2136
      %v2159 = vpack.c.bf16 %v2139, %v2137
      %v2160 = vpack.c.bf16 %v2142, %v2140
      %v2161 = vpack.c.bf16 %v2143, %v2141
      %2163 = vset.pattern.permute.xlu0 0
      %2164 = vperm.xlu0 %2163, %v2145
      %v2165 = vpop.permute.xlu0 %2164
      %2167 = vmatprep.subr.bf16.mxu0 %v2147
      %2168 = vmatpush1.bf16.msra.mxu0 %v2146
      %2169 = vmatprep.subr.bf16.mxu0 %v2149
      %2170 = vmatpush1.bf16.msra.mxu0 %v2148
      %2171 = vmatprep.subr.bf16.mxu0 %v2151
      %2172 = vmatpush1.bf16.msra.mxu0 %v2150
      %2173 = vmatprep.subr.bf16.mxu0 %v2153
      %2174 = vmatpush1.bf16.msra.mxu0 %v2152
      %2175 = vmatprep.subr.bf16.mxu0 %v2155
      %2176 = vmatpush1.bf16.msra.mxu0 %v2154
      %2177 = vmatprep.subr.bf16.mxu0 %v2157
      %2178 = vmatpush1.bf16.msra.mxu0 %v2156
      %2179 = vmatprep.subr.bf16.mxu0 %v2159
      %2180 = vmatpush1.bf16.msra.mxu0 %v2158
      %2181 = vmatprep.subr.bf16.mxu0 %v2161
      %2182 = vmatpush1.bf16.msra.mxu0 %v2160
      %2183 = vmatprep.subr.bf16.mxu0 0
      %2184 = vmatpush1.bf16.msra.mxu0 0
      %2185 = vmatprep.subr.bf16.mxu0 0
      %2186 = vmatpush1.bf16.msra.mxu0 0
      %2187 = vmatprep.subr.bf16.mxu0 0
      %2188 = vmatpush1.bf16.msra.mxu0 0
      %2189 = vmatprep.subr.bf16.mxu0 0
      %2190 = vmatpush1.bf16.msra.mxu0 0
      %2191 = vmatprep.subr.bf16.mxu0 0
      %2192 = vmatpush1.bf16.msra.mxu0 0
      %2193 = vmatprep.subr.bf16.mxu0 0
      %2194 = vmatpush1.bf16.msra.mxu0 0
      %2195 = vmatprep.subr.bf16.mxu0 0
      %2196 = vmatpush1.bf16.msra.mxu0 0
      %2197 = vmatprep.subr.bf16.mxu0 0
      %2198 = vmatpush1.bf16.msra.mxu0 0
      %2199 = vmatprep.mubr.bf16.mxu0 0
      %2200 = vmatmul.mubr.bf16.gmra.mrb[0].mxu0 %v2144
      %v2201 = vpop.f32.mrb[0].mxu0
      %v2202 = vadd.f32 %v2165, %v2201
      %v2203 = vpop.f32.mrb[0].mxu0
      %v2204 = vadd.f32 %v2165, %v2203
      %v2205 = vpop.f32.mrb[0].mxu0
      %v2206 = vpop.f32.mrb[0].mxu0
      %2207 = vdwg.mxu0
      %v2208 = vmax.f32 %v2202, 0.0
      %v2209 = vmax.f32 %v2204, 0.0
      %2210 = vst [vmem:[%s370] sm:$0xff] %v2208
      %2211 = vst [vmem:[%s370 + $0x8] sm:$0xff] %v2209
      %s2212 = smul.u32 2, %s25
      %p2213 = scmp.lt.s32.totalorder %s24, 1
      %s2214 = scalar_select %p2213, %s24, 1
      %p2215 = scmp.lt.s32.totalorder %s2212, 1
      %s2216 = scalar_select %p2215, %s2212, 1
      %s2217 = smul.addr %s2214, 2
      %s2218 = sadd.s32 %s2216, %s2217
      %s2219 = smul.addr %s2218, 8
      %s2220 = scalar_lea.vmem %s9, %s2219
      // Predicated region
      $region57: #{arnet_forward.5} parent=55 // pred_check
        %p2221 = pneg %p248
      $region58: #{arnet_forward.5} parent=55 // pred_check_branch
        %2223 = sbr.rel (%p2221) target = $region60
      $region59: #{arnet_forward.5} parent=55 // pred_region
        %s2224 = smul.u32 2, %s25
      $region60: #{arnet_forward.5} parent=55 // pred_fallthru
        _
    $region56: #{arnet_forward.5} parent=5 // pred_fallthru
      _
    %p2225 = scmp.le.s32.totalorder 2, %s15
    // Predicated region
    $region61: #{arnet_forward.5} parent=5 // pred_check
      %p2226 = pneg %p2225
    $region62: #{arnet_forward.5} parent=5 // pred_check_branch
      %2228 = sbr.rel (%p2226) target = $region64
    $region63: #{arnet_forward.5} parent=5 // pred_region
      %s2229 = ssub.s32 %s15, 2
      // Predicated region
      $region65: #{arnet_forward.5} parent=63 // pred_check
        %p2230 = pneg %p254
      $region66: #{arnet_forward.5} parent=63 // pred_check_branch
        %2232 = sbr.rel (%p2230) target = $region68
      $region67: #{arnet_forward.5} parent=63 // pred_region
        %s2233 = smul.u32 2, %s27
        %p2234 = scmp.lt.s32.totalorder %s26, 1
        %s2235 = scalar_select %p2234, %s26, 1
        %p2236 = scmp.lt.s32.totalorder %s2233, 1
        %s2237 = scalar_select %p2236, %s2233, 1
        %s2238 = smul.addr %s2235, 2
        %s2239 = sadd.s32 %s2237, %s2238
        %s2240 = smul.addr %s2239, 8
        %s2241 = scalar_lea.vmem %s9, %s2240
      $region68: #{arnet_forward.5} parent=63 // pred_fallthru
        _
    $region64: #{arnet_forward.5} parent=5 // pred_fallthru
      _
  $region6: #{arnet_forward.5} parent=0 // loop_footer
    %s19 = sadd.s32 1, %s15
  $region7: #{arnet_forward.5} parent=0 // loop_footer_branch
    %14 = sbr.rel target = $region3
  $region8: #{arnet_forward.5} parent=0 // loop_exit
    _

</llo_original>
